<compile_context>
chip_gen: v5e
topology: v5e:2x2
jax: 0.10.0
libtpu: 0.0.40
codegen_flags: <defaults>
</compile_context>

<pallas_src>
import functools

import jax
import jax.numpy as jnp
from jax.experimental import pallas as pl
from jax.experimental.pallas import tpu as pltpu

BN_EPS = 1e-05


def _round_up(x, m):
    return ((x + m - 1) // m) * m


def _bn_swish_conv_kernel(x_ref, scale_ref, shift_ref, w_ref, b_ref, o_ref,
                          ypad_ref, col_ref, *,
                          H, W, C_in, C_in_p, k, stride, pad, dil,
                          OH, OW, ROWS, ROWS_P, col_dtype):
    co = pl.program_id(1)

    # Build the padded+activated image and the im2col slab once per batch element.
    # NOTE (contract): this relies on `co` being the innermost, sequentially revisited
    # ("arbitrary") grid axis and on VMEM scratch persisting across grid steps.  Do NOT
    # mark `co` "parallel", reorder the grid, or insert an axis between b and co without
    # also rebuilding the slab — co > 0 tiles would otherwise read a stale/unbuilt col_ref.
    @pl.when(co == 0)
    def _build_im2col():
        Hp, Wp = H + 2 * pad, W + 2 * pad
        K = k * k * C_in_p

        # Zero only the halo; the interior is fully overwritten below.
        if pad > 0:
            ypad_ref[0:pad, :, :] = jnp.zeros((pad, Wp, C_in_p), jnp.float32)
            ypad_ref[Hp - pad:Hp, :, :] = jnp.zeros((pad, Wp, C_in_p), jnp.float32)
            ypad_ref[:, 0:pad, :] = jnp.zeros((Hp, pad, C_in_p), jnp.float32)
            ypad_ref[:, Wp - pad:Wp, :] = jnp.zeros((Hp, pad, C_in_p), jnp.float32)
        if C_in_p > C_in:
            # Zero the lane-padding channels once (their weight rows are zero too).
            ypad_ref[pad:pad + H, pad:pad + W, C_in:C_in_p] = (
                jnp.zeros((H, W, C_in_p - C_in), jnp.float32))

        # Fused BatchNorm (pre-folded scale/shift) + Swish, kept in f32 (VPU/EUP).
        x = x_ref[0]                                       # (H, W, C_in)
        y = x * scale_ref[...] + shift_ref[...]            # (1, C_in) broadcasts over (H, W, C_in)
        y = y * jax.nn.sigmoid(y)
        ypad_ref[pad:pad + H, pad:pad + W, 0:C_in] = y

        # Zero the sublane-padding rows of the col slab once (they are read by the dot;
        # the corresponding output rows are discarded in the wrapper).
        if ROWS_P > ROWS:
            col_ref[ROWS:ROWS_P, :] = jnp.zeros((ROWS_P - ROWS, K), col_dtype)

        # im2col: fill a (ROWS_P, k*k*C_in_p) slab tap by tap, casting to the matmul dtype
        # ONCE here — tiles of this slab are re-read by every C_out tile below.
        for kh in range(k):
            for kw in range(k):
                tap = kh * k + kw
                if stride == 1:
                    patch = ypad_ref[pl.ds(kh * dil, OH), pl.ds(kw * dil, OW), :]
                else:
                    # TODO(synk): for stride>1, decimate once into a compacted scratch instead
                    # of issuing k*k strided reads (verify the strided-read lowering).
                    patch = ypad_ref[pl.ds(kh * dil, OH, stride),
                                     pl.ds(kw * dil, OW, stride), :]
                col_ref[0:ROWS, tap * C_in_p:(tap + 1) * C_in_p] = (
                    patch.reshape(ROWS, C_in_p).astype(col_dtype))

    # Single MXU matmul over the whole receptive field (K = k*k*C_in_p), f32 accumulation.
    # col_ref and w_ref are already in the matmul dtype (bf16 default) — no per-tile recast.
    out = jnp.dot(col_ref[...], w_ref[...], preferred_element_type=jnp.float32)
    o_ref[0] = out + b_ref[...]                            # lane-dense (ROWS_P, TCO) store


def bn_swish_conv(x_nchw, gamma, beta, weight_oihw, bias, *,
                  stride=1, padding=0, dilation=1, eps=BN_EPS,
                  matmul_dtype=jnp.bfloat16):
    """Forward pass of BNSwishConv. Returns NCHW output like the PyTorch module.

    matmul_dtype=jnp.bfloat16 (default) feeds the MXU natively; BN/Swish math and
    accumulation stay f32.  Pass jnp.float32 for an exactness-preserving (slower) path.
    """
    # TODO(synk): stride == -1 (nearest 2x upsample between BN-Swish and the conv) not implemented.
    assert stride >= 1, "upsample path (stride == -1) not implemented"
    B, C_in, H, W = x_nchw.shape
    C_out, C_in_w, k, k2 = weight_oihw.shape
    assert C_in_w == C_in and k == k2
    OH = (H + 2 * padding - dilation * (k - 1) - 1) // stride + 1
    OW = (W + 2 * padding - dilation * (k - 1) - 1) // stride + 1
    ROWS = OH * OW
    ROWS_P = _round_up(ROWS, 16)          # sublane-pack M for bf16 col slab / f32 output

    # Lane-aligned im2col taps: pad C_in up to a multiple of 128 only when the blow-up is
    # modest (<= ~2x); tiny channel counts keep the compact (masked-store) layout.
    if C_in % 128 != 0 and C_in >= 64:
        C_in_p = _round_up(C_in, 128)
    else:
        C_in_p = C_in
    K = k * k * C_in_p

    x_f32 = x_nchw.astype(jnp.float32)

    # ---- Hoisted BatchNorm batch statistics (training mode, biased var) -> scale/shift ----
    mean = jnp.mean(x_f32, axis=(0, 2, 3))
    var = jnp.mean(jnp.square(x_f32 - mean.reshape(1, C_in, 1, 1)), axis=(0, 2, 3))
    scale = (gamma.astype(jnp.float32) * jax.lax.rsqrt(var + eps)).reshape(1, C_in)
    shift = beta.astype(jnp.float32).reshape(1, C_in) - mean.reshape(1, C_in) * scale

    # ---- NVAE weight normalization ----
    # NOTE: log_weight_norm is assumed frozen at its init value log(||w|| + 1e-2); if it is
    # trained, it must be passed in and used in place of jnp.log(wnorm + 1e-2).
    w = weight_oihw.astype(jnp.float32)
    wnorm = jnp.sqrt(jnp.sum(w * w, axis=(1, 2, 3), keepdims=True))
    w_n = jnp.exp(jnp.log(wnorm + 1e-2)) * w / (wnorm + 1e-5)

    # ---- Wrapper-side layout plumbing: OIHW -> (k*k*C_in_p, C_out padded to 128 lanes) ----
    # TODO(synk): read the NCHW block directly and transpose in-kernel (XLU) — or keep the
    # model NHWC end-to-end — to drop this extra HBM read+write pass.
    x_nhwc = jnp.transpose(x_f32, (0, 2, 3, 1))                       # (B, H, W, C_in)
    w_khwc = jnp.transpose(w_n, (2, 3, 1, 0))                         # (k, k, C_in, C_out)
    if C_in_p > C_in:
        w_khwc = jnp.pad(w_khwc, ((0, 0), (0, 0), (0, C_in_p - C_in), (0, 0)))
    w2d = w_khwc.reshape(K, C_out)
    C_out_p = _round_up(C_out, 128)                                   # lane-dense output slab
    w2d = jnp.pad(w2d, ((0, 0), (0, C_out_p - C_out))).astype(matmul_dtype)
    bias2 = jnp.pad(bias.astype(jnp.float32).reshape(1, C_out),
                    ((0, 0), (0, C_out_p - C_out)))

    itemsize = jnp.dtype(matmul_dtype).itemsize
    # Skip the C_out grid axis entirely when the whole weight slab comfortably fits VMEM:
    # one wide matmul keeps the MXU fed and the weights are fetched from HBM exactly once.
    if K * C_out_p * itemsize <= 4 * 1024 * 1024:
        TCO = C_out_p
    elif C_out_p % 256 == 0:
        TCO = 256
    else:
        TCO = 128
    n_co = C_out_p // TCO

    kernel = functools.partial(
        _bn_swish_conv_kernel, H=H, W=W, C_in=C_in, C_in_p=C_in_p, k=k,
        stride=stride, pad=padding, dil=dilation, OH=OH, OW=OW,
        ROWS=ROWS, ROWS_P=ROWS_P, col_dtype=matmul_dtype)

    # VMEM budget: double buffers for the blocked operands + persistent scratch, with
    # headroom.  Generation-aware clamp: ~0.8 of the physical per-core VMEM (leaves room for
    # compiler internal scratch / spill slack) instead of a hard 64 MiB cap.
    Hp, Wp = H + 2 * padding, W + 2 * padding
    blocked = (H * W * C_in * 4             # activation tile (f32)
               + K * TCO * itemsize         # weight tile
               + TCO * 4                    # bias tile
               + 2 * C_in * 4               # BN scale + shift
               + ROWS_P * TCO * 4)          # output tile (f32)
    scratch = Hp * Wp * C_in_p * 4 + ROWS_P * K * itemsize
    est = 2 * blocked + scratch
    try:
        phys_vmem = pltpu.get_tpu_info().vmem_capacity_bytes
    except Exception:
        phys_vmem = 64 * 1024 * 1024        # conservative fallback (v7x per-TC VMEM)
    cap = int(0.8 * phys_vmem)
    vmem_limit = int(min(max(2 * est, 32 * 1024 * 1024), cap))

    out_flat = pl.pallas_call(
        kernel,
        out_shape=jax.ShapeDtypeStruct((B, ROWS_P, C_out_p), jnp.float32),
        grid=(B, n_co),
        in_specs=[
            pl.BlockSpec((1, H, W, C_in), lambda b, co: (b, 0, 0, 0)),  # one image per step
            pl.BlockSpec((1, C_in), lambda b, co: (0, 0)),              # BN scale (resident)
            pl.BlockSpec((1, C_in), lambda b, co: (0, 0)),              # BN shift (resident)
            pl.BlockSpec((K, TCO), lambda b, co: (0, co)),              # im2col weight tile
            pl.BlockSpec((1, TCO), lambda b, co: (0, co)),              # bias tile
        ],
        out_specs=pl.BlockSpec((1, ROWS_P, TCO), lambda b, co: (b, 0, co)),
        scratch_shapes=[
            pltpu.VMEM((Hp, Wp, C_in_p), jnp.float32),   # padded activation (per batch elem)
            pltpu.VMEM((ROWS_P, K), matmul_dtype),       # im2col slab (matmul dtype, cast once)
        ],
        compiler_params=pltpu.CompilerParams(
            dimension_semantics=("parallel", "arbitrary"),
            vmem_limit_bytes=vmem_limit),
    )(x_nhwc, scale, shift, w2d, bias2)

    # TODO(synk): for large H*W (v7x has only 64 MiB VMEM/TC), add OH-strip tiling with a
    # dilation*(k-1)-row halo as an extra "parallel" grid axis so ypad/col stay strip-sized
    # and both TensorCores are busy even when B == 1.
    out = out_flat[:, :ROWS, :C_out].reshape(B, OH, OW, C_out)
    return jnp.transpose(out, (0, 3, 1, 2))                           # back to NCHW


def _reference(x, gamma, beta, w, b, stride, padding, dilation, eps):
    """Pure-JAX reference of the same forward pass (for a sanity check)."""
    mean = jnp.mean(x, axis=(0, 2, 3), keepdims=True)
    var = jnp.mean((x - mean) ** 2, axis=(0, 2, 3), keepdims=True)
    y = (x - mean) * jax.lax.rsqrt(var + eps) * gamma.reshape(1, -1, 1, 1) + beta.reshape(1, -1, 1, 1)
    y = y * jax.nn.sigmoid(y)
    wnorm = jnp.sqrt(jnp.sum(w * w, axis=(1, 2, 3), keepdims=True))
    wn = jnp.exp(jnp.log(wnorm + 1e-2)) * w / (wnorm + 1e-5)
    out = jax.lax.conv_general_dilated(
        y, wn, window_strides=(stride, stride),
        padding=[(padding, padding), (padding, padding)],
        rhs_dilation=(dilation, dilation),
        dimension_numbers=('NCHW', 'OIHW', 'NCHW'))
    return out + b.reshape(1, -1, 1, 1)


if __name__ == "__main__":
    # Small, deterministic config consistent with the module's forward:
    # x: (B, C_in, H, W); conv: C_in -> C_out, 3x3, stride=1, padding=1, dilation=1.
    B, C_in, C_out, H, W = 2, 4, 8, 16, 16
    ksize, stride, padding, dilation = 3, 1, 1, 1

    key = jax.random.PRNGKey(0)
    kx, kg, kb, kw, kbias = jax.random.split(key, 5)
    x = jax.random.normal(kx, (B, C_in, H, W), dtype=jnp.float32)
    gamma = 1.0 + 0.1 * jax.random.normal(kg, (C_in,), dtype=jnp.float32)   # BN weight
    beta = 0.1 * jax.random.normal(kb, (C_in,), dtype=jnp.float32)          # BN bias
    weight = 0.1 * jax.random.normal(kw, (C_out, C_in, ksize, ksize), dtype=jnp.float32)
    bias = 0.1 * jax.random.normal(kbias, (C_out,), dtype=jnp.float32)

    ref = _reference(x, gamma, beta, weight, bias, stride, padding, dilation, BN_EPS)
    ref = jax.block_until_ready(ref)

    # Default fast path: bf16 at the MXU (v5e/v6e/v7x native), f32 BN/Swish + accumulation.
    out = bn_swish_conv(x, gamma, beta, weight, bias,
                        stride=stride, padding=padding, dilation=dilation, eps=BN_EPS)
    out = jax.block_until_ready(out)
    assert out.shape == (B, C_out, H, W), out.shape
    assert jnp.allclose(out, ref, rtol=5e-2, atol=5e-2), \
        f"bf16 path: max abs err {jnp.max(jnp.abs(out - ref))}"

    # Opt-in exact path (f32 MXU emulation) — preserves the PyTorch module's numerics.
    out_f32 = bn_swish_conv(x, gamma, beta, weight, bias,
                            stride=stride, padding=padding, dilation=dilation, eps=BN_EPS,
                            matmul_dtype=jnp.float32)
    out_f32 = jax.block_until_ready(out_f32)
    assert jnp.allclose(out_f32, ref, rtol=1e-4, atol=1e-4), \
        f"f32 path: max abs err {jnp.max(jnp.abs(out_f32 - ref))}"

    print("KERNEL_OK")
</pallas_src>

<mosaic_0001>
module attributes {stable_mosaic.version = 11 : i64} {
  func.func @_bn_swish_conv_kernel(%arg0: i32, %arg1: i32, %arg2: memref<1x16x16x4xf32, #tpu.memory_space<vmem>>, %arg3: memref<1x4xf32, #tpu.memory_space<vmem>>, %arg4: memref<1x4xf32, #tpu.memory_space<vmem>>, %arg5: memref<36x128xbf16, #tpu.memory_space<vmem>>, %arg6: memref<1x128xf32, #tpu.memory_space<vmem>>, %arg7: memref<1x256x128xf32, #tpu.memory_space<vmem>>, %arg8: memref<18x18x4xf32, #tpu.memory_space<vmem>>, %arg9: memref<256x36xbf16, #tpu.memory_space<vmem>>) attributes {dimension_semantics = [#tpu.dimension_semantics<parallel>, #tpu.dimension_semantics<arbitrary>], iteration_bounds = array<i64: 2, 1>, scalar_prefetch = 0 : i64, scratch_operands = 2 : i64, tpu.core_type = #tpu.core_type<tc>, window_params = [{transform_indices = @transform_0, window_bounds = array<i64: 1, 16, 16, 4>}, {pipeline_mode = #tpu.pipeline_mode<synchronous>, transform_indices = @transform_1, window_bounds = array<i64: 1, 4>}, {pipeline_mode = #tpu.pipeline_mode<synchronous>, transform_indices = @transform_2, window_bounds = array<i64: 1, 4>}, {transform_indices = @transform_3, window_bounds = array<i64: 36, 128>}, {transform_indices = @transform_4, window_bounds = array<i64: 1, 128>}, {transform_indices = @transform_5, window_bounds = array<i64: 1, 256, 128>}]} {
    %c0_i32 = arith.constant 0 : i32
    %0 = arith.cmpi eq, %arg1, %c0_i32 : i32
    %1 = arith.extui %0 : i1 to i32
    %c0_i32_0 = arith.constant 0 : i32
    %2 = arith.cmpi ne, %1, %c0_i32_0 : i32
    scf.if %2 {
      %cst_9 = arith.constant 0.000000e+00 : f32
      %12 = vector.broadcast %cst_9 : f32 to vector<1x18x4xf32>
      %c0_10 = arith.constant 0 : index
      %c0_11 = arith.constant 0 : index
      %c0_12 = arith.constant 0 : index
      %13 = vector.load %arg8[%c0_10, %c0_11, %c0_12] : memref<18x18x4xf32, #tpu.memory_space<vmem>>, vector<1x18x4xf32>
      tpu.vector_store %arg8[%c0_10, %c0_11, %c0_12], %12 {strides = array<i32>} : memref<18x18x4xf32, #tpu.memory_space<vmem>>, vector<1x18x4xf32>,
      %cst_13 = arith.constant 0.000000e+00 : f32
      %14 = vector.broadcast %cst_13 : f32 to vector<1x18x4xf32>
      %c17 = arith.constant 17 : index
      %c0_14 = arith.constant 0 : index
      %c0_15 = arith.constant 0 : index
      %15 = vector.load %arg8[%c17, %c0_14, %c0_15] : memref<18x18x4xf32, #tpu.memory_space<vmem>>, vector<1x18x4xf32>
      tpu.vector_store %arg8[%c17, %c0_14, %c0_15], %14 {strides = array<i32>} : memref<18x18x4xf32, #tpu.memory_space<vmem>>, vector<1x18x4xf32>,
      %cst_16 = arith.constant 0.000000e+00 : f32
      %16 = vector.broadcast %cst_16 : f32 to vector<18x1x4xf32>
      %c0_17 = arith.constant 0 : index
      %c0_18 = arith.constant 0 : index
      %c0_19 = arith.constant 0 : index
      %17 = vector.load %arg8[%c0_17, %c0_18, %c0_19] : memref<18x18x4xf32, #tpu.memory_space<vmem>>, vector<18x1x4xf32>
      tpu.vector_store %arg8[%c0_17, %c0_18, %c0_19], %16 {strides = array<i32>} : memref<18x18x4xf32, #tpu.memory_space<vmem>>, vector<18x1x4xf32>,
      %cst_20 = arith.constant 0.000000e+00 : f32
      %18 = vector.broadcast %cst_20 : f32 to vector<18x1x4xf32>
      %c0_21 = arith.constant 0 : index
      %c17_22 = arith.constant 17 : index
      %c0_23 = arith.constant 0 : index
      %19 = vector.load %arg8[%c0_21, %c17_22, %c0_23] : memref<18x18x4xf32, #tpu.memory_space<vmem>>, vector<18x1x4xf32>
      tpu.vector_store %arg8[%c0_21, %c17_22, %c0_23], %18 {strides = array<i32>} : memref<18x18x4xf32, #tpu.memory_space<vmem>>, vector<18x1x4xf32>,
      %c0_24 = arith.constant 0 : index
      %c0_25 = arith.constant 0 : index
      %c0_26 = arith.constant 0 : index
      %c0_27 = arith.constant 0 : index
      %20 = vector.load %arg2[%c0_24, %c0_25, %c0_26, %c0_27] : memref<1x16x16x4xf32, #tpu.memory_space<vmem>>, vector<1x16x16x4xf32>
      %21 = vector.shape_cast %20 : vector<1x16x16x4xf32> to vector<16x16x4xf32>
      %c0_28 = arith.constant 0 : index
      %c0_29 = arith.constant 0 : index
      %22 = vector.load %arg3[%c0_28, %c0_29] : memref<1x4xf32, #tpu.memory_space<vmem>>, vector<1x4xf32>
      %23 = vector.shape_cast %22 : vector<1x4xf32> to vector<1x1x4xf32>
      %24 = vector.broadcast %23 : vector<1x1x4xf32> to vector<16x16x4xf32>
      %25 = arith.mulf %21, %24 : vector<16x16x4xf32>
      %c0_30 = arith.constant 0 : index
      %c0_31 = arith.constant 0 : index
      %26 = vector.load %arg4[%c0_30, %c0_31] : memref<1x4xf32, #tpu.memory_space<vmem>>, vector<1x4xf32>
      %27 = vector.shape_cast %26 : vector<1x4xf32> to vector<1x1x4xf32>
      %28 = vector.broadcast %27 : vector<1x1x4xf32> to vector<16x16x4xf32>
      %29 = arith.addf %25, %28 : vector<16x16x4xf32>
      %30 = arith.negf %29 : vector<16x16x4xf32>
      %31 = math.exp %30 : vector<16x16x4xf32>
      %cst_32 = arith.constant 1.000000e+00 : f32
      %32 = vector.broadcast %cst_32 : f32 to vector<16x16x4xf32>
      %33 = arith.addf %32, %31 : vector<16x16x4xf32>
      %34 = arith.divf %32, %33 : vector<16x16x4xf32>
      %35 = arith.mulf %29, %34 : vector<16x16x4xf32>
      %c1 = arith.constant 1 : index
      %c1_33 = arith.constant 1 : index
      %c0_34 = arith.constant 0 : index
      %36 = vector.load %arg8[%c1, %c1_33, %c0_34] : memref<18x18x4xf32, #tpu.memory_space<vmem>>, vector<16x16x4xf32>
      tpu.vector_store %arg8[%c1, %c1_33, %c0_34], %35 {strides = array<i32>} : memref<18x18x4xf32, #tpu.memory_space<vmem>>, vector<16x16x4xf32>,
      %c0_35 = arith.constant 0 : index
      %c0_36 = arith.constant 0 : index
      %c0_37 = arith.constant 0 : index
      %37 = vector.load %arg8[%c0_35, %c0_36, %c0_37] : memref<18x18x4xf32, #tpu.memory_space<vmem>>, vector<16x16x4xf32>
      %38 = vector.shape_cast %37 : vector<16x16x4xf32> to vector<256x4xf32>
      %39 = arith.truncf %38 : vector<256x4xf32> to vector<256x4xbf16>
      %c0_38 = arith.constant 0 : index
      %c0_39 = arith.constant 0 : index
      %40 = vector.load %arg9[%c0_38, %c0_39] : memref<256x36xbf16, #tpu.memory_space<vmem>>, vector<256x4xbf16>
      tpu.vector_store %arg9[%c0_38, %c0_39], %39 {strides = array<i32>} : memref<256x36xbf16, #tpu.memory_space<vmem>>, vector<256x4xbf16>,
      %c0_40 = arith.constant 0 : index
      %c1_41 = arith.constant 1 : index
      %c0_42 = arith.constant 0 : index
      %41 = vector.load %arg8[%c0_40, %c1_41, %c0_42] : memref<18x18x4xf32, #tpu.memory_space<vmem>>, vector<16x16x4xf32>
      %42 = vector.shape_cast %41 : vector<16x16x4xf32> to vector<256x4xf32>
      %43 = arith.truncf %42 : vector<256x4xf32> to vector<256x4xbf16>
      %c0_43 = arith.constant 0 : index
      %c4 = arith.constant 4 : index
      %44 = vector.load %arg9[%c0_43, %c4] : memref<256x36xbf16, #tpu.memory_space<vmem>>, vector<256x4xbf16>
      tpu.vector_store %arg9[%c0_43, %c4], %43 {strides = array<i32>} : memref<256x36xbf16, #tpu.memory_space<vmem>>, vector<256x4xbf16>,
      %c0_44 = arith.constant 0 : index
      %c2 = arith.constant 2 : index
      %c0_45 = arith.constant 0 : index
      %45 = vector.load %arg8[%c0_44, %c2, %c0_45] : memref<18x18x4xf32, #tpu.memory_space<vmem>>, vector<16x16x4xf32>
      %46 = vector.shape_cast %45 : vector<16x16x4xf32> to vector<256x4xf32>
      %47 = arith.truncf %46 : vector<256x4xf32> to vector<256x4xbf16>
      %c0_46 = arith.constant 0 : index
      %c8 = arith.constant 8 : index
      %48 = vector.load %arg9[%c0_46, %c8] : memref<256x36xbf16, #tpu.memory_space<vmem>>, vector<256x4xbf16>
      tpu.vector_store %arg9[%c0_46, %c8], %47 {strides = array<i32>} : memref<256x36xbf16, #tpu.memory_space<vmem>>, vector<256x4xbf16>,
      %c1_47 = arith.constant 1 : index
      %c0_48 = arith.constant 0 : index
      %c0_49 = arith.constant 0 : index
      %49 = vector.load %arg8[%c1_47, %c0_48, %c0_49] : memref<18x18x4xf32, #tpu.memory_space<vmem>>, vector<16x16x4xf32>
      %50 = vector.shape_cast %49 : vector<16x16x4xf32> to vector<256x4xf32>
      %51 = arith.truncf %50 : vector<256x4xf32> to vector<256x4xbf16>
      %c0_50 = arith.constant 0 : index
      %c12 = arith.constant 12 : index
      %52 = vector.load %arg9[%c0_50, %c12] : memref<256x36xbf16, #tpu.memory_space<vmem>>, vector<256x4xbf16>
      tpu.vector_store %arg9[%c0_50, %c12], %51 {strides = array<i32>} : memref<256x36xbf16, #tpu.memory_space<vmem>>, vector<256x4xbf16>,
      %c1_51 = arith.constant 1 : index
      %c1_52 = arith.constant 1 : index
      %c0_53 = arith.constant 0 : index
      %53 = vector.load %arg8[%c1_51, %c1_52, %c0_53] : memref<18x18x4xf32, #tpu.memory_space<vmem>>, vector<16x16x4xf32>
      %54 = vector.shape_cast %53 : vector<16x16x4xf32> to vector<256x4xf32>
      %55 = arith.truncf %54 : vector<256x4xf32> to vector<256x4xbf16>
      %c0_54 = arith.constant 0 : index
      %c16 = arith.constant 16 : index
      %56 = vector.load %arg9[%c0_54, %c16] : memref<256x36xbf16, #tpu.memory_space<vmem>>, vector<256x4xbf16>
      tpu.vector_store %arg9[%c0_54, %c16], %55 {strides = array<i32>} : memref<256x36xbf16, #tpu.memory_space<vmem>>, vector<256x4xbf16>,
      %c1_55 = arith.constant 1 : index
      %c2_56 = arith.constant 2 : index
      %c0_57 = arith.constant 0 : index
      %57 = vector.load %arg8[%c1_55, %c2_56, %c0_57] : memref<18x18x4xf32, #tpu.memory_space<vmem>>, vector<16x16x4xf32>
      %58 = vector.shape_cast %57 : vector<16x16x4xf32> to vector<256x4xf32>
      %59 = arith.truncf %58 : vector<256x4xf32> to vector<256x4xbf16>
      %c0_58 = arith.constant 0 : index
      %c20 = arith.constant 20 : index
      %60 = vector.load %arg9[%c0_58, %c20] : memref<256x36xbf16, #tpu.memory_space<vmem>>, vector<256x4xbf16>
      tpu.vector_store %arg9[%c0_58, %c20], %59 {strides = array<i32>} : memref<256x36xbf16, #tpu.memory_space<vmem>>, vector<256x4xbf16>,
      %c2_59 = arith.constant 2 : index
      %c0_60 = arith.constant 0 : index
      %c0_61 = arith.constant 0 : index
      %61 = vector.load %arg8[%c2_59, %c0_60, %c0_61] : memref<18x18x4xf32, #tpu.memory_space<vmem>>, vector<16x16x4xf32>
      %62 = vector.shape_cast %61 : vector<16x16x4xf32> to vector<256x4xf32>
      %63 = arith.truncf %62 : vector<256x4xf32> to vector<256x4xbf16>
      %c0_62 = arith.constant 0 : index
      %c24 = arith.constant 24 : index
      %64 = vector.load %arg9[%c0_62, %c24] : memref<256x36xbf16, #tpu.memory_space<vmem>>, vector<256x4xbf16>
      tpu.vector_store %arg9[%c0_62, %c24], %63 {strides = array<i32>} : memref<256x36xbf16, #tpu.memory_space<vmem>>, vector<256x4xbf16>,
      %c2_63 = arith.constant 2 : index
      %c1_64 = arith.constant 1 : index
      %c0_65 = arith.constant 0 : index
      %65 = vector.load %arg8[%c2_63, %c1_64, %c0_65] : memref<18x18x4xf32, #tpu.memory_space<vmem>>, vector<16x16x4xf32>
      %66 = vector.shape_cast %65 : vector<16x16x4xf32> to vector<256x4xf32>
      %67 = arith.truncf %66 : vector<256x4xf32> to vector<256x4xbf16>
      %c0_66 = arith.constant 0 : index
      %c28 = arith.constant 28 : index
      %68 = vector.load %arg9[%c0_66, %c28] : memref<256x36xbf16, #tpu.memory_space<vmem>>, vector<256x4xbf16>
      tpu.vector_store %arg9[%c0_66, %c28], %67 {strides = array<i32>} : memref<256x36xbf16, #tpu.memory_space<vmem>>, vector<256x4xbf16>,
      %c2_67 = arith.constant 2 : index
      %c2_68 = arith.constant 2 : index
      %c0_69 = arith.constant 0 : index
      %69 = vector.load %arg8[%c2_67, %c2_68, %c0_69] : memref<18x18x4xf32, #tpu.memory_space<vmem>>, vector<16x16x4xf32>
      %70 = vector.shape_cast %69 : vector<16x16x4xf32> to vector<256x4xf32>
      %71 = arith.truncf %70 : vector<256x4xf32> to vector<256x4xbf16>
      %c0_70 = arith.constant 0 : index
      %c32 = arith.constant 32 : index
      %72 = vector.load %arg9[%c0_70, %c32] : memref<256x36xbf16, #tpu.memory_space<vmem>>, vector<256x4xbf16>
      tpu.vector_store %arg9[%c0_70, %c32], %71 {strides = array<i32>} : memref<256x36xbf16, #tpu.memory_space<vmem>>, vector<256x4xbf16>,
    } else {
    }
    %c0 = arith.constant 0 : index
    %c0_1 = arith.constant 0 : index
    %3 = vector.load %arg9[%c0, %c0_1] : memref<256x36xbf16, #tpu.memory_space<vmem>>, vector<256x36xbf16>
    %c0_2 = arith.constant 0 : index
    %c0_3 = arith.constant 0 : index
    %4 = vector.load %arg5[%c0_2, %c0_3] : memref<36x128xbf16, #tpu.memory_space<vmem>>, vector<36x128xbf16>
    %cst = arith.constant dense<0.000000e+00> : vector<256x128xf32>
    %5 = tpu.matmul %3, %4, %cst {dimension_numbers = #tpu.dot_dimension_numbers<[1], [0], [0], [1], [0, 0, 1, 1], [], []>} : vector<256x36xbf16>, vector<36x128xbf16>, vector<256x128xf32> -> vector<256x128xf32>
    %c0_4 = arith.constant 0 : index
    %c0_5 = arith.constant 0 : index
    %6 = vector.load %arg6[%c0_4, %c0_5] : memref<1x128xf32, #tpu.memory_space<vmem>>, vector<1x128xf32>
    %7 = vector.broadcast %6 : vector<1x128xf32> to vector<256x128xf32>
    %8 = arith.addf %5, %7 : vector<256x128xf32>
    %c0_6 = arith.constant 0 : index
    %c0_7 = arith.constant 0 : index
    %c0_8 = arith.constant 0 : index
    %9 = vector.load %arg7[%c0_6, %c0_7, %c0_8] : memref<1x256x128xf32, #tpu.memory_space<vmem>>, vector<1x256x128xf32>
    %10 = vector.shape_cast %9 : vector<1x256x128xf32> to vector<256x128xf32>
    %11 = vector.shape_cast %8 : vector<256x128xf32> to vector<1x256x128xf32>
    tpu.vector_store %arg7[%c0_6, %c0_7, %c0_8], %11 {strides = array<i32>} : memref<1x256x128xf32, #tpu.memory_space<vmem>>, vector<1x256x128xf32>,
    return
  }
  func.func @transform_0(%arg0: i32, %arg1: i32) -> (i32, i32, i32, i32) {
    %c0_i32 = arith.constant 0 : i32
    %c0_i32_0 = arith.constant 0 : i32
    %c0_i32_1 = arith.constant 0 : i32
    %c0_i32_2 = arith.constant 0 : i32
    return %arg0, %c0_i32, %c0_i32_0, %c0_i32_1 : i32, i32, i32, i32
  }
  func.func @transform_1(%arg0: i32, %arg1: i32) -> (i32, i32) {
    %c0_i32 = arith.constant 0 : i32
    %c0_i32_0 = arith.constant 0 : i32
    %c0_i32_1 = arith.constant 0 : i32
    return %c0_i32, %c0_i32_0 : i32, i32
  }
  func.func @transform_2(%arg0: i32, %arg1: i32) -> (i32, i32) {
    %c0_i32 = arith.constant 0 : i32
    %c0_i32_0 = arith.constant 0 : i32
    %c0_i32_1 = arith.constant 0 : i32
    return %c0_i32, %c0_i32_0 : i32, i32
  }
  func.func @transform_3(%arg0: i32, %arg1: i32) -> (i32, i32) {
    %c0_i32 = arith.constant 0 : i32
    %c0_i32_0 = arith.constant 0 : i32
    return %c0_i32, %arg1 : i32, i32
  }
  func.func @transform_4(%arg0: i32, %arg1: i32) -> (i32, i32) {
    %c0_i32 = arith.constant 0 : i32
    %c0_i32_0 = arith.constant 0 : i32
    return %c0_i32, %arg1 : i32, i32
  }
  func.func @transform_5(%arg0: i32, %arg1: i32) -> (i32, i32, i32) {
    %c0_i32 = arith.constant 0 : i32
    %c0_i32_0 = arith.constant 0 : i32
    return %arg0, %c0_i32, %arg1 : i32, i32, i32
  }
}

</mosaic_0001>

<llo_original>
// kernel: tpu_custom_call.1
$region0: #{tpu_custom_call.1}
  #allocation0 [shape = 'u32[]', space=smem, size = 0x4, offset = 0x4, fixed_abs, tag = 'smem constant byte address 0x4 - core index']
  #allocation1 [shape = 'u32[72,128]{1,0:T(1,128)}', space=vmem, size = 0x9000, scoped, tag = 'internal scratch']
  #allocation2 [shape = 'f32[18,18,4]{2,1,0:T(8,128)}', space=vmem, size = 0x36000, scoped, tag = 'scratch operand']
  #allocation3 [shape = 'bf16[256,36]{1,0:T(8,128)(2,1)}', space=vmem, size = 0x10000, scoped, tag = 'scratch operand']
  %s0 = inlined_call_operand.vmem [shape: f32[2,16,16,4], index: 0, kind: input, shape index: {}]
  %s1 = inlined_call_operand.vmem [shape: f32[1,4], index: 1, kind: input, shape index: {}]
  %s2 = inlined_call_operand.vmem [shape: f32[1,4], index: 2, kind: input, shape index: {}]
  %s3 = inlined_call_operand.vmem [shape: bf16[36,128], index: 3, kind: input, shape index: {}]
  %s4 = inlined_call_operand.vmem [shape: f32[1,128], index: 4, kind: input, shape index: {}]
  %s5 = inlined_call_operand.hbm [shape: f32[2,256,128], index: 5, kind: output, shape index: {}]
  %s6 = sld [smem:[#allocation0]]
  $region57: #{tpu_custom_call.1} parent=0
    _
  %s8 = ssub.s32 1, %s6
  %s9 = scalar_select 0, %s8, %s6
  $region1: #{tpu_custom_call.1} parent=0
    #allocation4 [shape = 'u8[262144]{0}', space=vmem, size = 0x40000, scoped, tag = 'output window, operand 0']
    #allocation5 [shape = 's32[2]{0}', space=sflag, size = 0x8, scoped, tag = 'scoped memory for tpu_custom_call.1']
    %10 = vsyncpa [#allocation5], 0
    %s11 = scalar_lea.sflag [#allocation5], 1
    %12 = vsyncpa %s11, 0
    loop: start=0, step=1, limit=4
    $region2: #{tpu_custom_call.1} parent=1 // loop_pre_header
      _
    $region3: #{tpu_custom_call.1} parent=1 // loop_header
      %s14 = sphi 0, %s18
      %p15 = scmp.ge.s32.totalorder %s14, 4
      %s21 = sphi 0, %s33
      %s22 = sphi 0, %s29
      %s23 = sphi 0, %s21
      %s24 = sphi 0, %s22
      %s25 = sphi 0, %s23
      %s26 = sphi 0, %s24
      %s36 = sphi 0, %s38
      %s39 = sphi 0, %s36
      %s40 = sphi 0, %s39
      %s56 = sphi 0, %s40
      %s60 = sphi 0, %s60
      %s62 = sphi 0, %s60
      %s63 = sphi 0, %s62
      %s77 = sphi 0, %s63
      %s81 = sphi 0, %s81
      %s83 = sphi 0, %s81
      %s84 = sphi 0, %s83
      %s98 = sphi 0, %s84
      %s104 = sphi 0, %s106
      %s107 = sphi 0, %s104
      %s108 = sphi 0, %s107
      %s124 = sphi 0, %s108
      %s130 = sphi 0, %s132
      %s133 = sphi 0, %s130
      %s134 = sphi 0, %s133
      %s150 = sphi 0, %s134
      %s158 = sphi 0, %s160
      %s161 = sphi 0, %s158
      %s162 = sphi 0, %s161
      %s178 = sphi 0, %s162
    $region4: #{tpu_custom_call.1} parent=1 // loop_header_branch
      %17 = sbr.rel (%p15) target = $region8
    $region5: #{tpu_custom_call.1} parent=1 // loop_body
      %s19 = ssub.s32 %s14, 1
      %s20 = ssub.s32 %s14, 2
      %s27 = sadd.s32 1, %s22
      %p28 = scmp.ge.s32.totalorder %s27, 1
      %s29 = scalar_select %p28, 0, %s27
      %s30 = sadd.s32 1, %s21
      %s31 = scalar_select %p28, %s30, %s21
      %p32 = scmp.ge.s32.totalorder %s31, 2
      %s33 = scalar_select %p32, 0, %s31
      %s34 = ssub.s32 %s21, %s33
      %p35 = scmp.eq.s32.totalorder %s34, 0
      %s37 = sadd.s32 %s36, 1
      %s38 = scalar_select %p35, %s36, %s37
      %p41 = pneg %p35
      %p42 = scmp.eq.s32.totalorder %s14, 1
      %p43 = por %p41, %p42
      %p44 = scmp.ne.s32.totalorder %s36, %s39
      %p45 = scmp.eq.s32.totalorder %s14, 0
      %p46 = por %p44, %p45
      %p47 = scmp.ne.s32.totalorder %s36, %s39
      %p48 = scmp.eq.s32.totalorder %s19, 1
      %p49 = por %p47, %p48
      %p50 = scmp.ne.s32.totalorder %s39, %s40
      %p51 = scmp.eq.s32.totalorder %s19, 0
      %p52 = por %p50, %p51
      %p53 = scmp.ne.s32.totalorder %s39, %s40
      %p54 = scmp.eq.s32.totalorder %s20, 1
      %p55 = por %p53, %p54
      %p57 = scmp.ne.s32.totalorder %s40, %s56
      %p58 = scmp.eq.s32.totalorder %s20, 0
      %p59 = por %p57, %p58
      %s61 = sadd.s32 %s60, 1
      %p64 = scmp.eq.s32.totalorder %s14, 1
      %p65 = scmp.ne.s32.totalorder %s60, %s62
      %p66 = scmp.eq.s32.totalorder %s14, 0
      %p67 = por %p65, %p66
      %p68 = scmp.ne.s32.totalorder %s60, %s62
      %p69 = scmp.eq.s32.totalorder %s19, 1
      %p70 = por %p68, %p69
      %p71 = scmp.ne.s32.totalorder %s62, %s63
      %p72 = scmp.eq.s32.totalorder %s19, 0
      %p73 = por %p71, %p72
      %p74 = scmp.ne.s32.totalorder %s62, %s63
      %p75 = scmp.eq.s32.totalorder %s20, 1
      %p76 = por %p74, %p75
      %p78 = scmp.ne.s32.totalorder %s63, %s77
      %p79 = scmp.eq.s32.totalorder %s20, 0
      %p80 = por %p78, %p79
      %s82 = sadd.s32 %s81, 1
      %p85 = scmp.eq.s32.totalorder %s14, 1
      %p86 = scmp.ne.s32.totalorder %s81, %s83
      %p87 = scmp.eq.s32.totalorder %s14, 0
      %p88 = por %p86, %p87
      %p89 = scmp.ne.s32.totalorder %s81, %s83
      %p90 = scmp.eq.s32.totalorder %s19, 1
      %p91 = por %p89, %p90
      %p92 = scmp.ne.s32.totalorder %s83, %s84
      %p93 = scmp.eq.s32.totalorder %s19, 0
      %p94 = por %p92, %p93
      %p95 = scmp.ne.s32.totalorder %s83, %s84
      %p96 = scmp.eq.s32.totalorder %s20, 1
      %p97 = por %p95, %p96
      %p99 = scmp.ne.s32.totalorder %s84, %s98
      %p100 = scmp.eq.s32.totalorder %s20, 0
      %p101 = por %p99, %p100
      %s102 = ssub.s32 %s22, %s29
      %p103 = scmp.eq.s32.totalorder %s102, 0
      %s105 = sadd.s32 %s104, 1
      %s106 = scalar_select %p103, %s104, %s105
      %p109 = pneg %p103
      %p110 = scmp.eq.s32.totalorder %s14, 1
      %p111 = por %p109, %p110
      %p112 = scmp.ne.s32.totalorder %s104, %s107
      %p113 = scmp.eq.s32.totalorder %s14, 0
      %p114 = por %p112, %p113
      %p115 = scmp.ne.s32.totalorder %s104, %s107
      %p116 = scmp.eq.s32.totalorder %s19, 1
      %p117 = por %p115, %p116
      %p118 = scmp.ne.s32.totalorder %s107, %s108
      %p119 = scmp.eq.s32.totalorder %s19, 0
      %p120 = por %p118, %p119
      %p121 = scmp.ne.s32.totalorder %s107, %s108
      %p122 = scmp.eq.s32.totalorder %s20, 1
      %p123 = por %p121, %p122
      %p125 = scmp.ne.s32.totalorder %s108, %s124
      %p126 = scmp.eq.s32.totalorder %s20, 0
      %p127 = por %p125, %p126
      %s128 = ssub.s32 %s22, %s29
      %p129 = scmp.eq.s32.totalorder %s128, 0
      %s131 = sadd.s32 %s130, 1
      %s132 = scalar_select %p129, %s130, %s131
      %p135 = pneg %p129
      %p136 = scmp.eq.s32.totalorder %s14, 1
      %p137 = por %p135, %p136
      %p138 = scmp.ne.s32.totalorder %s130, %s133
      %p139 = scmp.eq.s32.totalorder %s14, 0
      %p140 = por %p138, %p139
      %p141 = scmp.ne.s32.totalorder %s130, %s133
      %p142 = scmp.eq.s32.totalorder %s19, 1
      %p143 = por %p141, %p142
      %p144 = scmp.ne.s32.totalorder %s133, %s134
      %p145 = scmp.eq.s32.totalorder %s19, 0
      %p146 = por %p144, %p145
      %p147 = scmp.ne.s32.totalorder %s133, %s134
      %p148 = scmp.eq.s32.totalorder %s20, 1
      %p149 = por %p147, %p148
      %p151 = scmp.ne.s32.totalorder %s134, %s150
      %p152 = scmp.eq.s32.totalorder %s20, 0
      %p153 = por %p151, %p152
      %s154 = ssub.s32 %s21, %s33
      %s155 = ssub.s32 %s22, %s29
      %s156 = sor.u32 %s154, %s155
      %p157 = scmp.eq.s32.totalorder %s156, 0
      %s159 = sadd.s32 %s158, 1
      %s160 = scalar_select %p157, %s158, %s159
      %p163 = pneg %p157
      %p164 = scmp.eq.s32.totalorder %s14, 1
      %p165 = por %p163, %p164
      %p166 = scmp.ne.s32.totalorder %s158, %s161
      %p167 = scmp.eq.s32.totalorder %s14, 0
      %p168 = por %p166, %p167
      %p169 = scmp.ne.s32.totalorder %s158, %s161
      %p170 = scmp.eq.s32.totalorder %s19, 1
      %p171 = por %p169, %p170
      %p172 = scmp.ne.s32.totalorder %s161, %s162
      %p173 = scmp.eq.s32.totalorder %s19, 0
      %p174 = por %p172, %p173
      %p175 = scmp.ne.s32.totalorder %s161, %s162
      %p176 = scmp.eq.s32.totalorder %s20, 1
      %p177 = por %p175, %p176
      %p179 = scmp.ne.s32.totalorder %s162, %s178
      %p180 = scmp.eq.s32.totalorder %s20, 0
      %p181 = por %p179, %p180
      %p182 = scmp.le.s32.totalorder 1, %s14
      %p183 = scmp.lt.s32.totalorder %s14, 3
      %p184 = pnand %p182, %p183
      %p185 = pneg %p184
      // Predicated region
      $region9: #{tpu_custom_call.1} parent=5 // pred_check
        _
      $region10: #{tpu_custom_call.1} parent=5 // pred_check_branch
        %187 = sbr.rel (%p184) target = $region12
      $region11: #{tpu_custom_call.1} parent=5 // pred_region
        %s188 = ssub.s32 %s14, 1
        // Predicated region
        $region13: #{tpu_custom_call.1} parent=11 // pred_check
          %p189 = pneg %p73
        $region14: #{tpu_custom_call.1} parent=11 // pred_check_branch
          %191 = sbr.rel (%p189) target = $region16
        $region15: #{tpu_custom_call.1} parent=11 // pred_region
          _
        $region16: #{tpu_custom_call.1} parent=11 // pred_fallthru
          _
        // Predicated region
        $region17: #{tpu_custom_call.1} parent=11 // pred_check
          %p192 = pneg %p94
        $region18: #{tpu_custom_call.1} parent=11 // pred_check_branch
          %194 = sbr.rel (%p192) target = $region20
        $region19: #{tpu_custom_call.1} parent=11 // pred_region
          _
        $region20: #{tpu_custom_call.1} parent=11 // pred_fallthru
          _
        // Predicated region
        $region21: #{tpu_custom_call.1} parent=11 // pred_check
          %p195 = pneg %p120
        $region22: #{tpu_custom_call.1} parent=11 // pred_check_branch
          %197 = sbr.rel (%p195) target = $region24
        $region23: #{tpu_custom_call.1} parent=11 // pred_region
          %p198 = scmp.lt.s32.totalorder %s24, 0
          %s199 = scalar_select %p198, %s24, 0
          %s200 = smul.addr %s199, 4
          %s201 = scalar_lea.vmem %s3, %s200
        $region24: #{tpu_custom_call.1} parent=11 // pred_fallthru
          _
        // Predicated region
        $region25: #{tpu_custom_call.1} parent=11 // pred_check
          %p202 = pneg %p146
        $region26: #{tpu_custom_call.1} parent=11 // pred_check_branch
          %204 = sbr.rel (%p202) target = $region28
        $region27: #{tpu_custom_call.1} parent=11 // pred_region
          %p205 = scmp.lt.s32.totalorder %s24, 0
          %s206 = scalar_select %p205, %s24, 0
          %s207 = scalar_lea.vmem %s4, %s206
        $region28: #{tpu_custom_call.1} parent=11 // pred_fallthru
          _
      $region12: #{tpu_custom_call.1} parent=5 // pred_fallthru
        _
      %p208 = scmp.lt.s32.totalorder %s14, 2
      // Predicated region
      $region29: #{tpu_custom_call.1} parent=5 // pred_check
        %p209 = pneg %p208
      $region30: #{tpu_custom_call.1} parent=5 // pred_check_branch
        %211 = sbr.rel (%p209) target = $region32
      $region31: #{tpu_custom_call.1} parent=5 // pred_region
        // Predicated region
        $region33: #{tpu_custom_call.1} parent=31 // pred_check
          %p212 = pneg %p46
        $region34: #{tpu_custom_call.1} parent=31 // pred_check_branch
          %214 = sbr.rel (%p212) target = $region36
        $region35: #{tpu_custom_call.1} parent=31 // pred_region
          %p215 = scmp.lt.s32.totalorder %s21, 1
          %s216 = scalar_select %p215, %s21, 1
          %s217 = smul.addr %s216, 32
          %s218 = smul.addr %s217, 8
          %s219 = scalar_lea.vmem %s0, %s218
        $region36: #{tpu_custom_call.1} parent=31 // pred_fallthru
          _
      $region32: #{tpu_custom_call.1} parent=5 // pred_fallthru
        _
      %p220 = scmp.le.s32.totalorder 1, %s14
      %p221 = scmp.lt.s32.totalorder %s14, 3
      %p222 = pnand %p220, %p221
      %p223 = pneg %p222
      // Predicated region
      $region37: #{tpu_custom_call.1} parent=5 // pred_check
        _
      $region38: #{tpu_custom_call.1} parent=5 // pred_check_branch
        %225 = sbr.rel (%p222) target = $region40
      $region39: #{tpu_custom_call.1} parent=5 // pred_region
        %s226 = ssub.s32 %s14, 1
        %p227 = scmp.lt.s32.totalorder %s23, 1
        %s228 = scalar_select %p227, %s23, 1
        %s229 = smul.addr %s228, 32
        %s230 = smul.addr %s229, 8
        %s231 = scalar_lea.vmem %s0, %s230
        %p232 = pneg %p52
        %p233 = pneg %p49
        %p234 = pneg %p73
        %p235 = pneg %p70
        %p236 = pneg %p94
        %p237 = pneg %p91
        %p238 = scmp.lt.s32.totalorder %s24, 0
        %s239 = scalar_select %p238, %s24, 0
        %s240 = smul.addr %s239, 4
        %s241 = scalar_lea.vmem %s3, %s240
        %p242 = pneg %p120
        %p243 = pneg %p117
        %p244 = scmp.lt.s32.totalorder %s24, 0
        %s245 = scalar_select %p244, %s24, 0
        %s246 = scalar_lea.vmem %s4, %s245
        %p247 = pneg %p146
        %p248 = pneg %p143
        %p249 = pneg %p174
        %p250 = pneg %p171
        %s251 = sand.u32 %s161, 1
        %s252 = scalar_lea.sflag [#allocation5], %s251
        %s253 = sand.u32 %s161, 1
        %s254 = smul.addr %s253, 256
        %s255 = scalar_lea.vmem [#allocation4], %s254
        %p256 = scmp.lt.s32.totalorder %s23, 1
        %s257 = scalar_select %p256, %s23, 1
        %s258 = smul.addr %s257, 32
        %s259 = smul.addr %s258, 8
        %s260 = scalar_lea.vmem %s0, %s259
        %p261 = scmp.lt.s32.totalorder %s24, 0
        %s262 = scalar_select %p261, %s24, 0
        %s263 = smul.addr %s262, 4
        %s264 = scalar_lea.vmem %s3, %s263
        %p265 = scmp.lt.s32.totalorder %s24, 0
        %s266 = scalar_select %p265, %s24, 0
        %s267 = scalar_lea.vmem %s4, %s266
        %p269 = scmp.eq.s32.totalorder %s24, 0
        // Predicated region
        $region41: #{tpu_custom_call.1} parent=39 // pred_check
          %p270 = pneg %p269
        $region42: #{tpu_custom_call.1} parent=39 // pred_check_branch
          %272 = sbr.rel (%p270) target = $region44
        $region43: #{tpu_custom_call.1} parent=39 // pred_region
          %vm273 = vcmask 31744
          %274 = vst.msk [vmem:[#allocation2] sm:$0xff] %vm273, 0.0
          %275 = vst.msk [vmem:[#allocation2 + $0x8] sm:$0xff] %vm273, 0.0
          %vm276 = vcmask 25600
          %277 = vst.msk [vmem:[#allocation2 + $0x10] sm:$0x3] %vm276, 0.0
          %s278 = scalar_lea.vmem [#allocation2], 408
          %279 = vst.msk [vmem:[%s278] sm:$0xff] %vm273, 0.0
          %280 = vst.msk [vmem:[%s278 + $0x8] sm:$0xff] %vm273, 0.0
          %281 = vst.msk [vmem:[%s278 + $0x10] sm:$0x3] %vm276, 0.0
          %vm282 = vcmask 24576
          %283 = vst.msk [vmem:[#allocation2] sm:$0x1] %vm282, 0.0
          %284 = vst.msk [vmem:[#allocation2 + $0x18] sm:$0x1] %vm282, 0.0
          %285 = vst.msk [vmem:[#allocation2 + $0x30] sm:$0x1] %vm282, 0.0
          %286 = vst.msk [vmem:[#allocation2 + $0x48] sm:$0x1] %vm282, 0.0
          %287 = vst.msk [vmem:[#allocation2 + $0x60] sm:$0x1] %vm282, 0.0
          %288 = vst.msk [vmem:[#allocation2 + $0x78] sm:$0x1] %vm282, 0.0
          %289 = vst.msk [vmem:[#allocation2 + $0x90] sm:$0x1] %vm282, 0.0
          %290 = vst.msk [vmem:[#allocation2 + $0xa8] sm:$0x1] %vm282, 0.0
          %291 = vst.msk [vmem:[#allocation2 + $0xc0] sm:$0x1] %vm282, 0.0
          %292 = vst.msk [vmem:[#allocation2 + $0xd8] sm:$0x1] %vm282, 0.0
          %293 = vst.msk [vmem:[#allocation2 + $0xf0] sm:$0x1] %vm282, 0.0
          %294 = vst.msk [vmem:[#allocation2 + $0x108] sm:$0x1] %vm282, 0.0
          %295 = vst.msk [vmem:[#allocation2 + $0x120] sm:$0x1] %vm282, 0.0
          %296 = vst.msk [vmem:[#allocation2 + $0x138] sm:$0x1] %vm282, 0.0
          %297 = vst.msk [vmem:[#allocation2 + $0x150] sm:$0x1] %vm282, 0.0
          %298 = vst.msk [vmem:[#allocation2 + $0x168] sm:$0x1] %vm282, 0.0
          %299 = vst.msk [vmem:[#allocation2 + $0x180] sm:$0x1] %vm282, 0.0
          %300 = vst.msk [vmem:[#allocation2 + $0x198] sm:$0x1] %vm282, 0.0
          %301 = vst.msk [vmem:[#allocation2 + $0x11] sm:$0x1] %vm282, 0.0
          %302 = vst.msk [vmem:[#allocation2 + $0x29] sm:$0x1] %vm282, 0.0
          %303 = vst.msk [vmem:[#allocation2 + $0x41] sm:$0x1] %vm282, 0.0
          %304 = vst.msk [vmem:[#allocation2 + $0x59] sm:$0x1] %vm282, 0.0
          %305 = vst.msk [vmem:[#allocation2 + $0x71] sm:$0x1] %vm282, 0.0
          %306 = vst.msk [vmem:[#allocation2 + $0x89] sm:$0x1] %vm282, 0.0
          %307 = vst.msk [vmem:[#allocation2 + $0xa1] sm:$0x1] %vm282, 0.0
          %308 = vst.msk [vmem:[#allocation2 + $0xb9] sm:$0x1] %vm282, 0.0
          %309 = vst.msk [vmem:[#allocation2 + $0xd1] sm:$0x1] %vm282, 0.0
          %310 = vst.msk [vmem:[#allocation2 + $0xe9] sm:$0x1] %vm282, 0.0
          %311 = vst.msk [vmem:[#allocation2 + $0x101] sm:$0x1] %vm282, 0.0
          %312 = vst.msk [vmem:[#allocation2 + $0x119] sm:$0x1] %vm282, 0.0
          %313 = vst.msk [vmem:[#allocation2 + $0x131] sm:$0x1] %vm282, 0.0
          %314 = vst.msk [vmem:[#allocation2 + $0x149] sm:$0x1] %vm282, 0.0
          %315 = vst.msk [vmem:[#allocation2 + $0x161] sm:$0x1] %vm282, 0.0
          %316 = vst.msk [vmem:[#allocation2 + $0x179] sm:$0x1] %vm282, 0.0
          %317 = vst.msk [vmem:[#allocation2 + $0x191] sm:$0x1] %vm282, 0.0
          %318 = vst.msk [vmem:[#allocation2 + $0x1a9] sm:$0x1] %vm282, 0.0
          %v319 = vld [vmem:[%s260] sm:$0xff]
          %v320 = vld [vmem:[%s260 + $0x8] sm:$0xff]
          %v321 = vld [vmem:[%s260 + $0x10] sm:$0xff]
          %v322 = vld [vmem:[%s260 + $0x18] sm:$0xff]
          %v323 = vld [vmem:[%s260 + $0x20] sm:$0xff]
          %v324 = vld [vmem:[%s260 + $0x28] sm:$0xff]
          %v325 = vld [vmem:[%s260 + $0x30] sm:$0xff]
          %v326 = vld [vmem:[%s260 + $0x38] sm:$0xff]
          %v327 = vld [vmem:[%s260 + $0x40] sm:$0xff]
          %v328 = vld [vmem:[%s260 + $0x48] sm:$0xff]
          %v329 = vld [vmem:[%s260 + $0x50] sm:$0xff]
          %v330 = vld [vmem:[%s260 + $0x58] sm:$0xff]
          %v331 = vld [vmem:[%s260 + $0x60] sm:$0xff]
          %v332 = vld [vmem:[%s260 + $0x68] sm:$0xff]
          %v333 = vld [vmem:[%s260 + $0x70] sm:$0xff]
          %v334 = vld [vmem:[%s260 + $0x78] sm:$0xff]
          %v335 = vld [vmem:[%s260 + $0x80] sm:$0xff]
          %v336 = vld [vmem:[%s260 + $0x88] sm:$0xff]
          %v337 = vld [vmem:[%s260 + $0x90] sm:$0xff]
          %v338 = vld [vmem:[%s260 + $0x98] sm:$0xff]
          %v339 = vld [vmem:[%s260 + $0xa0] sm:$0xff]
          %v340 = vld [vmem:[%s260 + $0xa8] sm:$0xff]
          %v341 = vld [vmem:[%s260 + $0xb0] sm:$0xff]
          %v342 = vld [vmem:[%s260 + $0xb8] sm:$0xff]
          %v343 = vld [vmem:[%s260 + $0xc0] sm:$0xff]
          %v344 = vld [vmem:[%s260 + $0xc8] sm:$0xff]
          %v345 = vld [vmem:[%s260 + $0xd0] sm:$0xff]
          %v346 = vld [vmem:[%s260 + $0xd8] sm:$0xff]
          %v347 = vld [vmem:[%s260 + $0xe0] sm:$0xff]
          %v348 = vld [vmem:[%s260 + $0xe8] sm:$0xff]
          %v349 = vld [vmem:[%s260 + $0xf0] sm:$0xff]
          %v350 = vld [vmem:[%s260 + $0xf8] sm:$0xff]
          %v351 = vld [vmem:[%s1] sm:$0x1]
          %v353 = vperm.slane %v351, 0
          %v355 = vmul.f32 %v319, %v353
          %v356 = vmul.f32 %v320, %v353
          %v357 = vmul.f32 %v321, %v353
          %v358 = vmul.f32 %v322, %v353
          %v359 = vmul.f32 %v323, %v353
          %v360 = vmul.f32 %v324, %v353
          %v361 = vmul.f32 %v325, %v353
          %v362 = vmul.f32 %v326, %v353
          %v363 = vmul.f32 %v327, %v353
          %v364 = vmul.f32 %v328, %v353
          %v365 = vmul.f32 %v329, %v353
          %v366 = vmul.f32 %v330, %v353
          %v367 = vmul.f32 %v331, %v353
          %v368 = vmul.f32 %v332, %v353
          %v369 = vmul.f32 %v333, %v353
          %v370 = vmul.f32 %v334, %v353
          %v371 = vmul.f32 %v335, %v353
          %v372 = vmul.f32 %v336, %v353
          %v373 = vmul.f32 %v337, %v353
          %v374 = vmul.f32 %v338, %v353
          %v375 = vmul.f32 %v339, %v353
          %v376 = vmul.f32 %v340, %v353
          %v377 = vmul.f32 %v341, %v353
          %v378 = vmul.f32 %v342, %v353
          %v379 = vmul.f32 %v343, %v353
          %v380 = vmul.f32 %v344, %v353
          %v381 = vmul.f32 %v345, %v353
          %v382 = vmul.f32 %v346, %v353
          %v383 = vmul.f32 %v347, %v353
          %v384 = vmul.f32 %v348, %v353
          %v385 = vmul.f32 %v349, %v353
          %v386 = vmul.f32 %v350, %v353
          %v387 = vld [vmem:[%s2] sm:$0x1]
          %v389 = vperm.slane %v387, 0
          %v391 = vadd.f32 %v355, %v389
          %v392 = vadd.f32 %v356, %v389
          %v393 = vadd.f32 %v357, %v389
          %v394 = vadd.f32 %v358, %v389
          %v395 = vadd.f32 %v359, %v389
          %v396 = vadd.f32 %v360, %v389
          %v397 = vadd.f32 %v361, %v389
          %v398 = vadd.f32 %v362, %v389
          %v399 = vadd.f32 %v363, %v389
          %v400 = vadd.f32 %v364, %v389
          %v401 = vadd.f32 %v365, %v389
          %v402 = vadd.f32 %v366, %v389
          %v403 = vadd.f32 %v367, %v389
          %v404 = vadd.f32 %v368, %v389
          %v405 = vadd.f32 %v369, %v389
          %v406 = vadd.f32 %v370, %v389
          %v407 = vadd.f32 %v371, %v389
          %v408 = vadd.f32 %v372, %v389
          %v409 = vadd.f32 %v373, %v389
          %v410 = vadd.f32 %v374, %v389
          %v411 = vadd.f32 %v375, %v389
          %v412 = vadd.f32 %v376, %v389
          %v413 = vadd.f32 %v377, %v389
          %v414 = vadd.f32 %v378, %v389
          %v415 = vadd.f32 %v379, %v389
          %v416 = vadd.f32 %v380, %v389
          %v417 = vadd.f32 %v381, %v389
          %v418 = vadd.f32 %v382, %v389
          %v419 = vadd.f32 %v383, %v389
          %v420 = vadd.f32 %v384, %v389
          %v421 = vadd.f32 %v385, %v389
          %v422 = vadd.f32 %v386, %v389
          %v423 = vxor.u32 %v391, 2147483648
          %v424 = vxor.u32 %v392, 2147483648
          %v425 = vxor.u32 %v393, 2147483648
          %v426 = vxor.u32 %v394, 2147483648
          %v427 = vxor.u32 %v395, 2147483648
          %v428 = vxor.u32 %v396, 2147483648
          %v429 = vxor.u32 %v397, 2147483648
          %v430 = vxor.u32 %v398, 2147483648
          %v431 = vxor.u32 %v399, 2147483648
          %v432 = vxor.u32 %v400, 2147483648
          %v433 = vxor.u32 %v401, 2147483648
          %v434 = vxor.u32 %v402, 2147483648
          %v435 = vxor.u32 %v403, 2147483648
          %v436 = vxor.u32 %v404, 2147483648
          %v437 = vxor.u32 %v405, 2147483648
          %v438 = vxor.u32 %v406, 2147483648
          %v439 = vxor.u32 %v407, 2147483648
          %v440 = vxor.u32 %v408, 2147483648
          %v441 = vxor.u32 %v409, 2147483648
          %v442 = vxor.u32 %v410, 2147483648
          %v443 = vxor.u32 %v411, 2147483648
          %v444 = vxor.u32 %v412, 2147483648
          %v445 = vxor.u32 %v413, 2147483648
          %v446 = vxor.u32 %v414, 2147483648
          %v447 = vxor.u32 %v415, 2147483648
          %v448 = vxor.u32 %v416, 2147483648
          %v449 = vxor.u32 %v417, 2147483648
          %v450 = vxor.u32 %v418, 2147483648
          %v451 = vxor.u32 %v419, 2147483648
          %v452 = vxor.u32 %v420, 2147483648
          %v453 = vxor.u32 %v421, 2147483648
          %v454 = vxor.u32 %v422, 2147483648
          %v455 = vmul.f32 %v423, 1.442695
          %v456 = vpow.pop %v455
          %v457 = vmul.f32 %v424, 1.442695
          %v458 = vpow.pop %v457
          %v459 = vmul.f32 %v425, 1.442695
          %v460 = vpow.pop %v459
          %v461 = vmul.f32 %v426, 1.442695
          %v462 = vpow.pop %v461
          %v463 = vmul.f32 %v427, 1.442695
          %v464 = vpow.pop %v463
          %v465 = vmul.f32 %v428, 1.442695
          %v466 = vpow.pop %v465
          %v467 = vmul.f32 %v429, 1.442695
          %v468 = vpow.pop %v467
          %v469 = vmul.f32 %v430, 1.442695
          %v470 = vpow.pop %v469
          %v471 = vmul.f32 %v431, 1.442695
          %v472 = vpow.pop %v471
          %v473 = vmul.f32 %v432, 1.442695
          %v474 = vpow.pop %v473
          %v475 = vmul.f32 %v433, 1.442695
          %v476 = vpow.pop %v475
          %v477 = vmul.f32 %v434, 1.442695
          %v478 = vpow.pop %v477
          %v479 = vmul.f32 %v435, 1.442695
          %v480 = vpow.pop %v479
          %v481 = vmul.f32 %v436, 1.442695
          %v482 = vpow.pop %v481
          %v483 = vmul.f32 %v437, 1.442695
          %v484 = vpow.pop %v483
          %v485 = vmul.f32 %v438, 1.442695
          %v486 = vpow.pop %v485
          %v487 = vmul.f32 %v439, 1.442695
          %v488 = vpow.pop %v487
          %v489 = vmul.f32 %v440, 1.442695
          %v490 = vpow.pop %v489
          %v491 = vmul.f32 %v441, 1.442695
          %v492 = vpow.pop %v491
          %v493 = vmul.f32 %v442, 1.442695
          %v494 = vpow.pop %v493
          %v495 = vmul.f32 %v443, 1.442695
          %v496 = vpow.pop %v495
          %v497 = vmul.f32 %v444, 1.442695
          %v498 = vpow.pop %v497
          %v499 = vmul.f32 %v445, 1.442695
          %v500 = vpow.pop %v499
          %v501 = vmul.f32 %v446, 1.442695
          %v502 = vpow.pop %v501
          %v503 = vmul.f32 %v447, 1.442695
          %v504 = vpow.pop %v503
          %v505 = vmul.f32 %v448, 1.442695
          %v506 = vpow.pop %v505
          %v507 = vmul.f32 %v449, 1.442695
          %v508 = vpow.pop %v507
          %v509 = vmul.f32 %v450, 1.442695
          %v510 = vpow.pop %v509
          %v511 = vmul.f32 %v451, 1.442695
          %v512 = vpow.pop %v511
          %v513 = vmul.f32 %v452, 1.442695
          %v514 = vpow.pop %v513
          %v515 = vmul.f32 %v453, 1.442695
          %v516 = vpow.pop %v515
          %v517 = vmul.f32 %v454, 1.442695
          %v518 = vpow.pop %v517
          %v519 = vadd.f32 %v456, 1.0
          %v520 = vadd.f32 %v458, 1.0
          %v521 = vadd.f32 %v460, 1.0
          %v522 = vadd.f32 %v462, 1.0
          %v523 = vadd.f32 %v464, 1.0
          %v524 = vadd.f32 %v466, 1.0
          %v525 = vadd.f32 %v468, 1.0
          %v526 = vadd.f32 %v470, 1.0
          %v527 = vadd.f32 %v472, 1.0
          %v528 = vadd.f32 %v474, 1.0
          %v529 = vadd.f32 %v476, 1.0
          %v530 = vadd.f32 %v478, 1.0
          %v531 = vadd.f32 %v480, 1.0
          %v532 = vadd.f32 %v482, 1.0
          %v533 = vadd.f32 %v484, 1.0
          %v534 = vadd.f32 %v486, 1.0
          %v535 = vadd.f32 %v488, 1.0
          %v536 = vadd.f32 %v490, 1.0
          %v537 = vadd.f32 %v492, 1.0
          %v538 = vadd.f32 %v494, 1.0
          %v539 = vadd.f32 %v496, 1.0
          %v540 = vadd.f32 %v498, 1.0
          %v541 = vadd.f32 %v500, 1.0
          %v542 = vadd.f32 %v502, 1.0
          %v543 = vadd.f32 %v504, 1.0
          %v544 = vadd.f32 %v506, 1.0
          %v545 = vadd.f32 %v508, 1.0
          %v546 = vadd.f32 %v510, 1.0
          %v547 = vadd.f32 %v512, 1.0
          %v548 = vadd.f32 %v514, 1.0
          %v549 = vadd.f32 %v516, 1.0
          %v550 = vadd.f32 %v518, 1.0
          %v551 = vrcp.pop %v519
          %v552 = vmul.f32 %v519, %v551
          %v553 = vsub.f32 1.0, %v552
          %v554 = vmul.f32 %v551, %v553
          %v555 = vadd.f32 %v551, %v554
          %vm556 = vweird.f32 %v519
          %vm557 = vweird.f32 %v551
          %vm558 = vmor %vm556, %vm557
          %v559 = vsel %vm558, %v551, %v555
          %v560 = vand.u32 2147483647, %v519
          %vm561 = vcmp.eq.f32.partialorder %v560, 8.507059e+37
          %v562 = vand.u32 %v519, 2147483648
          %v563 = vor.u32 1.1754944e-38, %v562
          %v564 = vsel %vm561, %v563, %v559
          %v565 = vmul.f32 1.0, %v564
          %v566 = vrcp.pop %v520
          %v567 = vmul.f32 %v520, %v566
          %v568 = vsub.f32 1.0, %v567
          %v569 = vmul.f32 %v566, %v568
          %v570 = vadd.f32 %v566, %v569
          %vm571 = vweird.f32 %v520
          %vm572 = vweird.f32 %v566
          %vm573 = vmor %vm571, %vm572
          %v574 = vsel %vm573, %v566, %v570
          %v575 = vand.u32 2147483647, %v520
          %vm576 = vcmp.eq.f32.partialorder %v575, 8.507059e+37
          %v577 = vand.u32 %v520, 2147483648
          %v578 = vor.u32 1.1754944e-38, %v577
          %v579 = vsel %vm576, %v578, %v574
          %v580 = vmul.f32 1.0, %v579
          %v581 = vrcp.pop %v521
          %v582 = vmul.f32 %v521, %v581
          %v583 = vsub.f32 1.0, %v582
          %v584 = vmul.f32 %v581, %v583
          %v585 = vadd.f32 %v581, %v584
          %vm586 = vweird.f32 %v521
          %vm587 = vweird.f32 %v581
          %vm588 = vmor %vm586, %vm587
          %v589 = vsel %vm588, %v581, %v585
          %v590 = vand.u32 2147483647, %v521
          %vm591 = vcmp.eq.f32.partialorder %v590, 8.507059e+37
          %v592 = vand.u32 %v521, 2147483648
          %v593 = vor.u32 1.1754944e-38, %v592
          %v594 = vsel %vm591, %v593, %v589
          %v595 = vmul.f32 1.0, %v594
          %v596 = vrcp.pop %v522
          %v597 = vmul.f32 %v522, %v596
          %v598 = vsub.f32 1.0, %v597
          %v599 = vmul.f32 %v596, %v598
          %v600 = vadd.f32 %v596, %v599
          %vm601 = vweird.f32 %v522
          %vm602 = vweird.f32 %v596
          %vm603 = vmor %vm601, %vm602
          %v604 = vsel %vm603, %v596, %v600
          %v605 = vand.u32 2147483647, %v522
          %vm606 = vcmp.eq.f32.partialorder %v605, 8.507059e+37
          %v607 = vand.u32 %v522, 2147483648
          %v608 = vor.u32 1.1754944e-38, %v607
          %v609 = vsel %vm606, %v608, %v604
          %v610 = vmul.f32 1.0, %v609
          %v611 = vrcp.pop %v523
          %v612 = vmul.f32 %v523, %v611
          %v613 = vsub.f32 1.0, %v612
          %v614 = vmul.f32 %v611, %v613
          %v615 = vadd.f32 %v611, %v614
          %vm616 = vweird.f32 %v523
          %vm617 = vweird.f32 %v611
          %vm618 = vmor %vm616, %vm617
          %v619 = vsel %vm618, %v611, %v615
          %v620 = vand.u32 2147483647, %v523
          %vm621 = vcmp.eq.f32.partialorder %v620, 8.507059e+37
          %v622 = vand.u32 %v523, 2147483648
          %v623 = vor.u32 1.1754944e-38, %v622
          %v624 = vsel %vm621, %v623, %v619
          %v625 = vmul.f32 1.0, %v624
          %v626 = vrcp.pop %v524
          %v627 = vmul.f32 %v524, %v626
          %v628 = vsub.f32 1.0, %v627
          %v629 = vmul.f32 %v626, %v628
          %v630 = vadd.f32 %v626, %v629
          %vm631 = vweird.f32 %v524
          %vm632 = vweird.f32 %v626
          %vm633 = vmor %vm631, %vm632
          %v634 = vsel %vm633, %v626, %v630
          %v635 = vand.u32 2147483647, %v524
          %vm636 = vcmp.eq.f32.partialorder %v635, 8.507059e+37
          %v637 = vand.u32 %v524, 2147483648
          %v638 = vor.u32 1.1754944e-38, %v637
          %v639 = vsel %vm636, %v638, %v634
          %v640 = vmul.f32 1.0, %v639
          %v641 = vrcp.pop %v525
          %v642 = vmul.f32 %v525, %v641
          %v643 = vsub.f32 1.0, %v642
          %v644 = vmul.f32 %v641, %v643
          %v645 = vadd.f32 %v641, %v644
          %vm646 = vweird.f32 %v525
          %vm647 = vweird.f32 %v641
          %vm648 = vmor %vm646, %vm647
          %v649 = vsel %vm648, %v641, %v645
          %v650 = vand.u32 2147483647, %v525
          %vm651 = vcmp.eq.f32.partialorder %v650, 8.507059e+37
          %v652 = vand.u32 %v525, 2147483648
          %v653 = vor.u32 1.1754944e-38, %v652
          %v654 = vsel %vm651, %v653, %v649
          %v655 = vmul.f32 1.0, %v654
          %v656 = vrcp.pop %v526
          %v657 = vmul.f32 %v526, %v656
          %v658 = vsub.f32 1.0, %v657
          %v659 = vmul.f32 %v656, %v658
          %v660 = vadd.f32 %v656, %v659
          %vm661 = vweird.f32 %v526
          %vm662 = vweird.f32 %v656
          %vm663 = vmor %vm661, %vm662
          %v664 = vsel %vm663, %v656, %v660
          %v665 = vand.u32 2147483647, %v526
          %vm666 = vcmp.eq.f32.partialorder %v665, 8.507059e+37
          %v667 = vand.u32 %v526, 2147483648
          %v668 = vor.u32 1.1754944e-38, %v667
          %v669 = vsel %vm666, %v668, %v664
          %v670 = vmul.f32 1.0, %v669
          %v671 = vrcp.pop %v527
          %v672 = vmul.f32 %v527, %v671
          %v673 = vsub.f32 1.0, %v672
          %v674 = vmul.f32 %v671, %v673
          %v675 = vadd.f32 %v671, %v674
          %vm676 = vweird.f32 %v527
          %vm677 = vweird.f32 %v671
          %vm678 = vmor %vm676, %vm677
          %v679 = vsel %vm678, %v671, %v675
          %v680 = vand.u32 2147483647, %v527
          %vm681 = vcmp.eq.f32.partialorder %v680, 8.507059e+37
          %v682 = vand.u32 %v527, 2147483648
          %v683 = vor.u32 1.1754944e-38, %v682
          %v684 = vsel %vm681, %v683, %v679
          %v685 = vmul.f32 1.0, %v684
          %v686 = vrcp.pop %v528
          %v687 = vmul.f32 %v528, %v686
          %v688 = vsub.f32 1.0, %v687
          %v689 = vmul.f32 %v686, %v688
          %v690 = vadd.f32 %v686, %v689
          %vm691 = vweird.f32 %v528
          %vm692 = vweird.f32 %v686
          %vm693 = vmor %vm691, %vm692
          %v694 = vsel %vm693, %v686, %v690
          %v695 = vand.u32 2147483647, %v528
          %vm696 = vcmp.eq.f32.partialorder %v695, 8.507059e+37
          %v697 = vand.u32 %v528, 2147483648
          %v698 = vor.u32 1.1754944e-38, %v697
          %v699 = vsel %vm696, %v698, %v694
          %v700 = vmul.f32 1.0, %v699
          %v701 = vrcp.pop %v529
          %v702 = vmul.f32 %v529, %v701
          %v703 = vsub.f32 1.0, %v702
          %v704 = vmul.f32 %v701, %v703
          %v705 = vadd.f32 %v701, %v704
          %vm706 = vweird.f32 %v529
          %vm707 = vweird.f32 %v701
          %vm708 = vmor %vm706, %vm707
          %v709 = vsel %vm708, %v701, %v705
          %v710 = vand.u32 2147483647, %v529
          %vm711 = vcmp.eq.f32.partialorder %v710, 8.507059e+37
          %v712 = vand.u32 %v529, 2147483648
          %v713 = vor.u32 1.1754944e-38, %v712
          %v714 = vsel %vm711, %v713, %v709
          %v715 = vmul.f32 1.0, %v714
          %v716 = vrcp.pop %v530
          %v717 = vmul.f32 %v530, %v716
          %v718 = vsub.f32 1.0, %v717
          %v719 = vmul.f32 %v716, %v718
          %v720 = vadd.f32 %v716, %v719
          %vm721 = vweird.f32 %v530
          %vm722 = vweird.f32 %v716
          %vm723 = vmor %vm721, %vm722
          %v724 = vsel %vm723, %v716, %v720
          %v725 = vand.u32 2147483647, %v530
          %vm726 = vcmp.eq.f32.partialorder %v725, 8.507059e+37
          %v727 = vand.u32 %v530, 2147483648
          %v728 = vor.u32 1.1754944e-38, %v727
          %v729 = vsel %vm726, %v728, %v724
          %v730 = vmul.f32 1.0, %v729
          %v731 = vrcp.pop %v531
          %v732 = vmul.f32 %v531, %v731
          %v733 = vsub.f32 1.0, %v732
          %v734 = vmul.f32 %v731, %v733
          %v735 = vadd.f32 %v731, %v734
          %vm736 = vweird.f32 %v531
          %vm737 = vweird.f32 %v731
          %vm738 = vmor %vm736, %vm737
          %v739 = vsel %vm738, %v731, %v735
          %v740 = vand.u32 2147483647, %v531
          %vm741 = vcmp.eq.f32.partialorder %v740, 8.507059e+37
          %v742 = vand.u32 %v531, 2147483648
          %v743 = vor.u32 1.1754944e-38, %v742
          %v744 = vsel %vm741, %v743, %v739
          %v745 = vmul.f32 1.0, %v744
          %v746 = vrcp.pop %v532
          %v747 = vmul.f32 %v532, %v746
          %v748 = vsub.f32 1.0, %v747
          %v749 = vmul.f32 %v746, %v748
          %v750 = vadd.f32 %v746, %v749
          %vm751 = vweird.f32 %v532
          %vm752 = vweird.f32 %v746
          %vm753 = vmor %vm751, %vm752
          %v754 = vsel %vm753, %v746, %v750
          %v755 = vand.u32 2147483647, %v532
          %vm756 = vcmp.eq.f32.partialorder %v755, 8.507059e+37
          %v757 = vand.u32 %v532, 2147483648
          %v758 = vor.u32 1.1754944e-38, %v757
          %v759 = vsel %vm756, %v758, %v754
          %v760 = vmul.f32 1.0, %v759
          %v761 = vrcp.pop %v533
          %v762 = vmul.f32 %v533, %v761
          %v763 = vsub.f32 1.0, %v762
          %v764 = vmul.f32 %v761, %v763
          %v765 = vadd.f32 %v761, %v764
          %vm766 = vweird.f32 %v533
          %vm767 = vweird.f32 %v761
          %vm768 = vmor %vm766, %vm767
          %v769 = vsel %vm768, %v761, %v765
          %v770 = vand.u32 2147483647, %v533
          %vm771 = vcmp.eq.f32.partialorder %v770, 8.507059e+37
          %v772 = vand.u32 %v533, 2147483648
          %v773 = vor.u32 1.1754944e-38, %v772
          %v774 = vsel %vm771, %v773, %v769
          %v775 = vmul.f32 1.0, %v774
          %v776 = vrcp.pop %v534
          %v777 = vmul.f32 %v534, %v776
          %v778 = vsub.f32 1.0, %v777
          %v779 = vmul.f32 %v776, %v778
          %v780 = vadd.f32 %v776, %v779
          %vm781 = vweird.f32 %v534
          %vm782 = vweird.f32 %v776
          %vm783 = vmor %vm781, %vm782
          %v784 = vsel %vm783, %v776, %v780
          %v785 = vand.u32 2147483647, %v534
          %vm786 = vcmp.eq.f32.partialorder %v785, 8.507059e+37
          %v787 = vand.u32 %v534, 2147483648
          %v788 = vor.u32 1.1754944e-38, %v787
          %v789 = vsel %vm786, %v788, %v784
          %v790 = vmul.f32 1.0, %v789
          %v791 = vrcp.pop %v535
          %v792 = vmul.f32 %v535, %v791
          %v793 = vsub.f32 1.0, %v792
          %v794 = vmul.f32 %v791, %v793
          %v795 = vadd.f32 %v791, %v794
          %vm796 = vweird.f32 %v535
          %vm797 = vweird.f32 %v791
          %vm798 = vmor %vm796, %vm797
          %v799 = vsel %vm798, %v791, %v795
          %v800 = vand.u32 2147483647, %v535
          %vm801 = vcmp.eq.f32.partialorder %v800, 8.507059e+37
          %v802 = vand.u32 %v535, 2147483648
          %v803 = vor.u32 1.1754944e-38, %v802
          %v804 = vsel %vm801, %v803, %v799
          %v805 = vmul.f32 1.0, %v804
          %v806 = vrcp.pop %v536
          %v807 = vmul.f32 %v536, %v806
          %v808 = vsub.f32 1.0, %v807
          %v809 = vmul.f32 %v806, %v808
          %v810 = vadd.f32 %v806, %v809
          %vm811 = vweird.f32 %v536
          %vm812 = vweird.f32 %v806
          %vm813 = vmor %vm811, %vm812
          %v814 = vsel %vm813, %v806, %v810
          %v815 = vand.u32 2147483647, %v536
          %vm816 = vcmp.eq.f32.partialorder %v815, 8.507059e+37
          %v817 = vand.u32 %v536, 2147483648
          %v818 = vor.u32 1.1754944e-38, %v817
          %v819 = vsel %vm816, %v818, %v814
          %v820 = vmul.f32 1.0, %v819
          %v821 = vrcp.pop %v537
          %v822 = vmul.f32 %v537, %v821
          %v823 = vsub.f32 1.0, %v822
          %v824 = vmul.f32 %v821, %v823
          %v825 = vadd.f32 %v821, %v824
          %vm826 = vweird.f32 %v537
          %vm827 = vweird.f32 %v821
          %vm828 = vmor %vm826, %vm827
          %v829 = vsel %vm828, %v821, %v825
          %v830 = vand.u32 2147483647, %v537
          %vm831 = vcmp.eq.f32.partialorder %v830, 8.507059e+37
          %v832 = vand.u32 %v537, 2147483648
          %v833 = vor.u32 1.1754944e-38, %v832
          %v834 = vsel %vm831, %v833, %v829
          %v835 = vmul.f32 1.0, %v834
          %v836 = vrcp.pop %v538
          %v837 = vmul.f32 %v538, %v836
          %v838 = vsub.f32 1.0, %v837
          %v839 = vmul.f32 %v836, %v838
          %v840 = vadd.f32 %v836, %v839
          %vm841 = vweird.f32 %v538
          %vm842 = vweird.f32 %v836
          %vm843 = vmor %vm841, %vm842
          %v844 = vsel %vm843, %v836, %v840
          %v845 = vand.u32 2147483647, %v538
          %vm846 = vcmp.eq.f32.partialorder %v845, 8.507059e+37
          %v847 = vand.u32 %v538, 2147483648
          %v848 = vor.u32 1.1754944e-38, %v847
          %v849 = vsel %vm846, %v848, %v844
          %v850 = vmul.f32 1.0, %v849
          %v851 = vrcp.pop %v539
          %v852 = vmul.f32 %v539, %v851
          %v853 = vsub.f32 1.0, %v852
          %v854 = vmul.f32 %v851, %v853
          %v855 = vadd.f32 %v851, %v854
          %vm856 = vweird.f32 %v539
          %vm857 = vweird.f32 %v851
          %vm858 = vmor %vm856, %vm857
          %v859 = vsel %vm858, %v851, %v855
          %v860 = vand.u32 2147483647, %v539
          %vm861 = vcmp.eq.f32.partialorder %v860, 8.507059e+37
          %v862 = vand.u32 %v539, 2147483648
          %v863 = vor.u32 1.1754944e-38, %v862
          %v864 = vsel %vm861, %v863, %v859
          %v865 = vmul.f32 1.0, %v864
          %v866 = vrcp.pop %v540
          %v867 = vmul.f32 %v540, %v866
          %v868 = vsub.f32 1.0, %v867
          %v869 = vmul.f32 %v866, %v868
          %v870 = vadd.f32 %v866, %v869
          %vm871 = vweird.f32 %v540
          %vm872 = vweird.f32 %v866
          %vm873 = vmor %vm871, %vm872
          %v874 = vsel %vm873, %v866, %v870
          %v875 = vand.u32 2147483647, %v540
          %vm876 = vcmp.eq.f32.partialorder %v875, 8.507059e+37
          %v877 = vand.u32 %v540, 2147483648
          %v878 = vor.u32 1.1754944e-38, %v877
          %v879 = vsel %vm876, %v878, %v874
          %v880 = vmul.f32 1.0, %v879
          %v881 = vrcp.pop %v541
          %v882 = vmul.f32 %v541, %v881
          %v883 = vsub.f32 1.0, %v882
          %v884 = vmul.f32 %v881, %v883
          %v885 = vadd.f32 %v881, %v884
          %vm886 = vweird.f32 %v541
          %vm887 = vweird.f32 %v881
          %vm888 = vmor %vm886, %vm887
          %v889 = vsel %vm888, %v881, %v885
          %v890 = vand.u32 2147483647, %v541
          %vm891 = vcmp.eq.f32.partialorder %v890, 8.507059e+37
          %v892 = vand.u32 %v541, 2147483648
          %v893 = vor.u32 1.1754944e-38, %v892
          %v894 = vsel %vm891, %v893, %v889
          %v895 = vmul.f32 1.0, %v894
          %v896 = vrcp.pop %v542
          %v897 = vmul.f32 %v542, %v896
          %v898 = vsub.f32 1.0, %v897
          %v899 = vmul.f32 %v896, %v898
          %v900 = vadd.f32 %v896, %v899
          %vm901 = vweird.f32 %v542
          %vm902 = vweird.f32 %v896
          %vm903 = vmor %vm901, %vm902
          %v904 = vsel %vm903, %v896, %v900
          %v905 = vand.u32 2147483647, %v542
          %vm906 = vcmp.eq.f32.partialorder %v905, 8.507059e+37
          %v907 = vand.u32 %v542, 2147483648
          %v908 = vor.u32 1.1754944e-38, %v907
          %v909 = vsel %vm906, %v908, %v904
          %v910 = vmul.f32 1.0, %v909
          %v911 = vrcp.pop %v543
          %v912 = vmul.f32 %v543, %v911
          %v913 = vsub.f32 1.0, %v912
          %v914 = vmul.f32 %v911, %v913
          %v915 = vadd.f32 %v911, %v914
          %vm916 = vweird.f32 %v543
          %vm917 = vweird.f32 %v911
          %vm918 = vmor %vm916, %vm917
          %v919 = vsel %vm918, %v911, %v915
          %v920 = vand.u32 2147483647, %v543
          %vm921 = vcmp.eq.f32.partialorder %v920, 8.507059e+37
          %v922 = vand.u32 %v543, 2147483648
          %v923 = vor.u32 1.1754944e-38, %v922
          %v924 = vsel %vm921, %v923, %v919
          %v925 = vmul.f32 1.0, %v924
          %v926 = vrcp.pop %v544
          %v927 = vmul.f32 %v544, %v926
          %v928 = vsub.f32 1.0, %v927
          %v929 = vmul.f32 %v926, %v928
          %v930 = vadd.f32 %v926, %v929
          %vm931 = vweird.f32 %v544
          %vm932 = vweird.f32 %v926
          %vm933 = vmor %vm931, %vm932
          %v934 = vsel %vm933, %v926, %v930
          %v935 = vand.u32 2147483647, %v544
          %vm936 = vcmp.eq.f32.partialorder %v935, 8.507059e+37
          %v937 = vand.u32 %v544, 2147483648
          %v938 = vor.u32 1.1754944e-38, %v937
          %v939 = vsel %vm936, %v938, %v934
          %v940 = vmul.f32 1.0, %v939
          %v941 = vrcp.pop %v545
          %v942 = vmul.f32 %v545, %v941
          %v943 = vsub.f32 1.0, %v942
          %v944 = vmul.f32 %v941, %v943
          %v945 = vadd.f32 %v941, %v944
          %vm946 = vweird.f32 %v545
          %vm947 = vweird.f32 %v941
          %vm948 = vmor %vm946, %vm947
          %v949 = vsel %vm948, %v941, %v945
          %v950 = vand.u32 2147483647, %v545
          %vm951 = vcmp.eq.f32.partialorder %v950, 8.507059e+37
          %v952 = vand.u32 %v545, 2147483648
          %v953 = vor.u32 1.1754944e-38, %v952
          %v954 = vsel %vm951, %v953, %v949
          %v955 = vmul.f32 1.0, %v954
          %v956 = vrcp.pop %v546
          %v957 = vmul.f32 %v546, %v956
          %v958 = vsub.f32 1.0, %v957
          %v959 = vmul.f32 %v956, %v958
          %v960 = vadd.f32 %v956, %v959
          %vm961 = vweird.f32 %v546
          %vm962 = vweird.f32 %v956
          %vm963 = vmor %vm961, %vm962
          %v964 = vsel %vm963, %v956, %v960
          %v965 = vand.u32 2147483647, %v546
          %vm966 = vcmp.eq.f32.partialorder %v965, 8.507059e+37
          %v967 = vand.u32 %v546, 2147483648
          %v968 = vor.u32 1.1754944e-38, %v967
          %v969 = vsel %vm966, %v968, %v964
          %v970 = vmul.f32 1.0, %v969
          %v971 = vrcp.pop %v547
          %v972 = vmul.f32 %v547, %v971
          %v973 = vsub.f32 1.0, %v972
          %v974 = vmul.f32 %v971, %v973
          %v975 = vadd.f32 %v971, %v974
          %vm976 = vweird.f32 %v547
          %vm977 = vweird.f32 %v971
          %vm978 = vmor %vm976, %vm977
          %v979 = vsel %vm978, %v971, %v975
          %v980 = vand.u32 2147483647, %v547
          %vm981 = vcmp.eq.f32.partialorder %v980, 8.507059e+37
          %v982 = vand.u32 %v547, 2147483648
          %v983 = vor.u32 1.1754944e-38, %v982
          %v984 = vsel %vm981, %v983, %v979
          %v985 = vmul.f32 1.0, %v984
          %v986 = vrcp.pop %v548
          %v987 = vmul.f32 %v548, %v986
          %v988 = vsub.f32 1.0, %v987
          %v989 = vmul.f32 %v986, %v988
          %v990 = vadd.f32 %v986, %v989
          %vm991 = vweird.f32 %v548
          %vm992 = vweird.f32 %v986
          %vm993 = vmor %vm991, %vm992
          %v994 = vsel %vm993, %v986, %v990
          %v995 = vand.u32 2147483647, %v548
          %vm996 = vcmp.eq.f32.partialorder %v995, 8.507059e+37
          %v997 = vand.u32 %v548, 2147483648
          %v998 = vor.u32 1.1754944e-38, %v997
          %v999 = vsel %vm996, %v998, %v994
          %v1000 = vmul.f32 1.0, %v999
          %v1001 = vrcp.pop %v549
          %v1002 = vmul.f32 %v549, %v1001
          %v1003 = vsub.f32 1.0, %v1002
          %v1004 = vmul.f32 %v1001, %v1003
          %v1005 = vadd.f32 %v1001, %v1004
          %vm1006 = vweird.f32 %v549
          %vm1007 = vweird.f32 %v1001
          %vm1008 = vmor %vm1006, %vm1007
          %v1009 = vsel %vm1008, %v1001, %v1005
          %v1010 = vand.u32 2147483647, %v549
          %vm1011 = vcmp.eq.f32.partialorder %v1010, 8.507059e+37
          %v1012 = vand.u32 %v549, 2147483648
          %v1013 = vor.u32 1.1754944e-38, %v1012
          %v1014 = vsel %vm1011, %v1013, %v1009
          %v1015 = vmul.f32 1.0, %v1014
          %v1016 = vrcp.pop %v550
          %v1017 = vmul.f32 %v550, %v1016
          %v1018 = vsub.f32 1.0, %v1017
          %v1019 = vmul.f32 %v1016, %v1018
          %v1020 = vadd.f32 %v1016, %v1019
          %vm1021 = vweird.f32 %v550
          %vm1022 = vweird.f32 %v1016
          %vm1023 = vmor %vm1021, %vm1022
          %v1024 = vsel %vm1023, %v1016, %v1020
          %v1025 = vand.u32 2147483647, %v550
          %vm1026 = vcmp.eq.f32.partialorder %v1025, 8.507059e+37
          %v1027 = vand.u32 %v550, 2147483648
          %v1028 = vor.u32 1.1754944e-38, %v1027
          %v1029 = vsel %vm1026, %v1028, %v1024
          %v1030 = vmul.f32 1.0, %v1029
          %v1031 = vmul.f32 %v391, %v565
          %v1032 = vmul.f32 %v392, %v580
          %v1033 = vmul.f32 %v393, %v595
          %v1034 = vmul.f32 %v394, %v610
          %v1035 = vmul.f32 %v395, %v625
          %v1036 = vmul.f32 %v396, %v640
          %v1037 = vmul.f32 %v397, %v655
          %v1038 = vmul.f32 %v398, %v670
          %v1039 = vmul.f32 %v399, %v685
          %v1040 = vmul.f32 %v400, %v700
          %v1041 = vmul.f32 %v401, %v715
          %v1042 = vmul.f32 %v402, %v730
          %v1043 = vmul.f32 %v403, %v745
          %v1044 = vmul.f32 %v404, %v760
          %v1045 = vmul.f32 %v405, %v775
          %v1046 = vmul.f32 %v406, %v790
          %v1047 = vmul.f32 %v407, %v805
          %v1048 = vmul.f32 %v408, %v820
          %v1049 = vmul.f32 %v409, %v835
          %v1050 = vmul.f32 %v410, %v850
          %v1051 = vmul.f32 %v411, %v865
          %v1052 = vmul.f32 %v412, %v880
          %v1053 = vmul.f32 %v413, %v895
          %v1054 = vmul.f32 %v414, %v910
          %v1055 = vmul.f32 %v415, %v925
          %v1056 = vmul.f32 %v416, %v940
          %v1057 = vmul.f32 %v417, %v955
          %v1058 = vmul.f32 %v418, %v970
          %v1059 = vmul.f32 %v419, %v985
          %v1060 = vmul.f32 %v420, %v1000
          %v1061 = vmul.f32 %v421, %v1015
          %v1062 = vmul.f32 %v422, %v1030
          %s1063 = scalar_lea.vmem [#allocation2], 24
          %1064 = vst.msk [vmem:[%s1063 + $0x1] sm:$0xff] %vm273, %v1031
          %1065 = vst.msk [vmem:[%s1063 + $0x9] sm:$0xff] %vm273, %v1032
          %1066 = vst.msk [vmem:[%s1063 + $0x19] sm:$0xff] %vm273, %v1033
          %1067 = vst.msk [vmem:[%s1063 + $0x21] sm:$0xff] %vm273, %v1034
          %1068 = vst.msk [vmem:[%s1063 + $0x31] sm:$0xff] %vm273, %v1035
          %1069 = vst.msk [vmem:[%s1063 + $0x39] sm:$0xff] %vm273, %v1036
          %1070 = vst.msk [vmem:[%s1063 + $0x49] sm:$0xff] %vm273, %v1037
          %1071 = vst.msk [vmem:[%s1063 + $0x51] sm:$0xff] %vm273, %v1038
          %1072 = vst.msk [vmem:[%s1063 + $0x61] sm:$0xff] %vm273, %v1039
          %1073 = vst.msk [vmem:[%s1063 + $0x69] sm:$0xff] %vm273, %v1040
          %1074 = vst.msk [vmem:[%s1063 + $0x79] sm:$0xff] %vm273, %v1041
          %1075 = vst.msk [vmem:[%s1063 + $0x81] sm:$0xff] %vm273, %v1042
          %1076 = vst.msk [vmem:[%s1063 + $0x91] sm:$0xff] %vm273, %v1043
          %1077 = vst.msk [vmem:[%s1063 + $0x99] sm:$0xff] %vm273, %v1044
          %1078 = vst.msk [vmem:[%s1063 + $0xa9] sm:$0xff] %vm273, %v1045
          %1079 = vst.msk [vmem:[%s1063 + $0xb1] sm:$0xff] %vm273, %v1046
          %1080 = vst.msk [vmem:[%s1063 + $0xc1] sm:$0xff] %vm273, %v1047
          %1081 = vst.msk [vmem:[%s1063 + $0xc9] sm:$0xff] %vm273, %v1048
          %1082 = vst.msk [vmem:[%s1063 + $0xd9] sm:$0xff] %vm273, %v1049
          %1083 = vst.msk [vmem:[%s1063 + $0xe1] sm:$0xff] %vm273, %v1050
          %1084 = vst.msk [vmem:[%s1063 + $0xf1] sm:$0xff] %vm273, %v1051
          %1085 = vst.msk [vmem:[%s1063 + $0xf9] sm:$0xff] %vm273, %v1052
          %1086 = vst.msk [vmem:[%s1063 + $0x109] sm:$0xff] %vm273, %v1053
          %1087 = vst.msk [vmem:[%s1063 + $0x111] sm:$0xff] %vm273, %v1054
          %1088 = vst.msk [vmem:[%s1063 + $0x121] sm:$0xff] %vm273, %v1055
          %1089 = vst.msk [vmem:[%s1063 + $0x129] sm:$0xff] %vm273, %v1056
          %1090 = vst.msk [vmem:[%s1063 + $0x139] sm:$0xff] %vm273, %v1057
          %1091 = vst.msk [vmem:[%s1063 + $0x141] sm:$0xff] %vm273, %v1058
          %1092 = vst.msk [vmem:[%s1063 + $0x151] sm:$0xff] %vm273, %v1059
          %1093 = vst.msk [vmem:[%s1063 + $0x159] sm:$0xff] %vm273, %v1060
          %1094 = vst.msk [vmem:[%s1063 + $0x169] sm:$0xff] %vm273, %v1061
          %1095 = vst.msk [vmem:[%s1063 + $0x171] sm:$0xff] %vm273, %v1062
          %v1096 = vld [vmem:[#allocation2] sm:$0xff]
          %v1097 = vld [vmem:[#allocation2 + $0x8] sm:$0xff]
          %v1098 = vld [vmem:[#allocation2 + $0x18] sm:$0xff]
          %v1099 = vld [vmem:[#allocation2 + $0x20] sm:$0xff]
          %v1100 = vld [vmem:[#allocation2 + $0x30] sm:$0xff]
          %v1101 = vld [vmem:[#allocation2 + $0x38] sm:$0xff]
          %v1102 = vld [vmem:[#allocation2 + $0x48] sm:$0xff]
          %v1103 = vld [vmem:[#allocation2 + $0x50] sm:$0xff]
          %v1104 = vld [vmem:[#allocation2 + $0x60] sm:$0xff]
          %v1105 = vld [vmem:[#allocation2 + $0x68] sm:$0xff]
          %v1106 = vld [vmem:[#allocation2 + $0x78] sm:$0xff]
          %v1107 = vld [vmem:[#allocation2 + $0x80] sm:$0xff]
          %v1108 = vld [vmem:[#allocation2 + $0x90] sm:$0xff]
          %v1109 = vld [vmem:[#allocation2 + $0x98] sm:$0xff]
          %v1110 = vld [vmem:[#allocation2 + $0xa8] sm:$0xff]
          %v1111 = vld [vmem:[#allocation2 + $0xb0] sm:$0xff]
          %v1112 = vld [vmem:[#allocation2 + $0xc0] sm:$0xff]
          %v1113 = vld [vmem:[#allocation2 + $0xc8] sm:$0xff]
          %v1114 = vld [vmem:[#allocation2 + $0xd8] sm:$0xff]
          %v1115 = vld [vmem:[#allocation2 + $0xe0] sm:$0xff]
          %v1116 = vld [vmem:[#allocation2 + $0xf0] sm:$0xff]
          %v1117 = vld [vmem:[#allocation2 + $0xf8] sm:$0xff]
          %v1118 = vld [vmem:[#allocation2 + $0x108] sm:$0xff]
          %v1119 = vld [vmem:[#allocation2 + $0x110] sm:$0xff]
          %v1120 = vld [vmem:[#allocation2 + $0x120] sm:$0xff]
          %v1121 = vld [vmem:[#allocation2 + $0x128] sm:$0xff]
          %v1122 = vld [vmem:[#allocation2 + $0x138] sm:$0xff]
          %v1123 = vld [vmem:[#allocation2 + $0x140] sm:$0xff]
          %v1124 = vld [vmem:[#allocation2 + $0x150] sm:$0xff]
          %v1125 = vld [vmem:[#allocation2 + $0x158] sm:$0xff]
          %v1126 = vld [vmem:[#allocation2 + $0x168] sm:$0xff]
          %v1127 = vld [vmem:[#allocation2 + $0x170] sm:$0xff]
          %v1128 = vpack.c.bf16 %v1096, %v1096
          %v1129 = vpack.c.bf16 %v1097, %v1097
          %v1130 = vpack.c.bf16 %v1098, %v1098
          %v1131 = vpack.c.bf16 %v1099, %v1099
          %v1132 = vpack.c.bf16 %v1100, %v1100
          %v1133 = vpack.c.bf16 %v1101, %v1101
          %v1134 = vpack.c.bf16 %v1102, %v1102
          %v1135 = vpack.c.bf16 %v1103, %v1103
          %v1136 = vpack.c.bf16 %v1104, %v1104
          %v1137 = vpack.c.bf16 %v1105, %v1105
          %v1138 = vpack.c.bf16 %v1106, %v1106
          %v1139 = vpack.c.bf16 %v1107, %v1107
          %v1140 = vpack.c.bf16 %v1108, %v1108
          %v1141 = vpack.c.bf16 %v1109, %v1109
          %v1142 = vpack.c.bf16 %v1110, %v1110
          %v1143 = vpack.c.bf16 %v1111, %v1111
          %v1144 = vpack.c.bf16 %v1112, %v1112
          %v1145 = vpack.c.bf16 %v1113, %v1113
          %v1146 = vpack.c.bf16 %v1114, %v1114
          %v1147 = vpack.c.bf16 %v1115, %v1115
          %v1148 = vpack.c.bf16 %v1116, %v1116
          %v1149 = vpack.c.bf16 %v1117, %v1117
          %v1150 = vpack.c.bf16 %v1118, %v1118
          %v1151 = vpack.c.bf16 %v1119, %v1119
          %v1152 = vpack.c.bf16 %v1120, %v1120
          %v1153 = vpack.c.bf16 %v1121, %v1121
          %v1154 = vpack.c.bf16 %v1122, %v1122
          %v1155 = vpack.c.bf16 %v1123, %v1123
          %v1156 = vpack.c.bf16 %v1124, %v1124
          %v1157 = vpack.c.bf16 %v1125, %v1125
          %v1158 = vpack.c.bf16 %v1126, %v1126
          %v1159 = vpack.c.bf16 %v1127, %v1127
          %vm1160 = vcmask 27648
          %1161 = vst.msk [vmem:[#allocation3] sm:$0xf] %vm1160, %v1128
          %1162 = vst.msk [vmem:[#allocation3 + $0x4] sm:$0xf] %vm1160, %v1129
          %1163 = vst.msk [vmem:[#allocation3 + $0x8] sm:$0xf] %vm1160, %v1130
          %1164 = vst.msk [vmem:[#allocation3 + $0xc] sm:$0xf] %vm1160, %v1131
          %1165 = vst.msk [vmem:[#allocation3 + $0x10] sm:$0xf] %vm1160, %v1132
          %1166 = vst.msk [vmem:[#allocation3 + $0x14] sm:$0xf] %vm1160, %v1133
          %1167 = vst.msk [vmem:[#allocation3 + $0x18] sm:$0xf] %vm1160, %v1134
          %1168 = vst.msk [vmem:[#allocation3 + $0x1c] sm:$0xf] %vm1160, %v1135
          %1169 = vst.msk [vmem:[#allocation3 + $0x20] sm:$0xf] %vm1160, %v1136
          %1170 = vst.msk [vmem:[#allocation3 + $0x24] sm:$0xf] %vm1160, %v1137
          %1171 = vst.msk [vmem:[#allocation3 + $0x28] sm:$0xf] %vm1160, %v1138
          %1172 = vst.msk [vmem:[#allocation3 + $0x2c] sm:$0xf] %vm1160, %v1139
          %1173 = vst.msk [vmem:[#allocation3 + $0x30] sm:$0xf] %vm1160, %v1140
          %1174 = vst.msk [vmem:[#allocation3 + $0x34] sm:$0xf] %vm1160, %v1141
          %1175 = vst.msk [vmem:[#allocation3 + $0x38] sm:$0xf] %vm1160, %v1142
          %1176 = vst.msk [vmem:[#allocation3 + $0x3c] sm:$0xf] %vm1160, %v1143
          %1177 = vst.msk [vmem:[#allocation3 + $0x40] sm:$0xf] %vm1160, %v1144
          %1178 = vst.msk [vmem:[#allocation3 + $0x44] sm:$0xf] %vm1160, %v1145
          %1179 = vst.msk [vmem:[#allocation3 + $0x48] sm:$0xf] %vm1160, %v1146
          %1180 = vst.msk [vmem:[#allocation3 + $0x4c] sm:$0xf] %vm1160, %v1147
          %1181 = vst.msk [vmem:[#allocation3 + $0x50] sm:$0xf] %vm1160, %v1148
          %1182 = vst.msk [vmem:[#allocation3 + $0x54] sm:$0xf] %vm1160, %v1149
          %1183 = vst.msk [vmem:[#allocation3 + $0x58] sm:$0xf] %vm1160, %v1150
          %1184 = vst.msk [vmem:[#allocation3 + $0x5c] sm:$0xf] %vm1160, %v1151
          %1185 = vst.msk [vmem:[#allocation3 + $0x60] sm:$0xf] %vm1160, %v1152
          %1186 = vst.msk [vmem:[#allocation3 + $0x64] sm:$0xf] %vm1160, %v1153
          %1187 = vst.msk [vmem:[#allocation3 + $0x68] sm:$0xf] %vm1160, %v1154
          %1188 = vst.msk [vmem:[#allocation3 + $0x6c] sm:$0xf] %vm1160, %v1155
          %1189 = vst.msk [vmem:[#allocation3 + $0x70] sm:$0xf] %vm1160, %v1156
          %1190 = vst.msk [vmem:[#allocation3 + $0x74] sm:$0xf] %vm1160, %v1157
          %1191 = vst.msk [vmem:[#allocation3 + $0x78] sm:$0xf] %vm1160, %v1158
          %1192 = vst.msk [vmem:[#allocation3 + $0x7c] sm:$0xf] %vm1160, %v1159
          %v1193 = vld [vmem:[#allocation2 + $0x1] sm:$0xff]
          %v1194 = vld [vmem:[#allocation2 + $0x9] sm:$0xff]
          %v1195 = vld [vmem:[#allocation2 + $0x19] sm:$0xff]
          %v1196 = vld [vmem:[#allocation2 + $0x21] sm:$0xff]
          %v1197 = vld [vmem:[#allocation2 + $0x31] sm:$0xff]
          %v1198 = vld [vmem:[#allocation2 + $0x39] sm:$0xff]
          %v1199 = vld [vmem:[#allocation2 + $0x49] sm:$0xff]
          %v1200 = vld [vmem:[#allocation2 + $0x51] sm:$0xff]
          %v1201 = vld [vmem:[#allocation2 + $0x61] sm:$0xff]
          %v1202 = vld [vmem:[#allocation2 + $0x69] sm:$0xff]
          %v1203 = vld [vmem:[#allocation2 + $0x79] sm:$0xff]
          %v1204 = vld [vmem:[#allocation2 + $0x81] sm:$0xff]
          %v1205 = vld [vmem:[#allocation2 + $0x91] sm:$0xff]
          %v1206 = vld [vmem:[#allocation2 + $0x99] sm:$0xff]
          %v1207 = vld [vmem:[#allocation2 + $0xa9] sm:$0xff]
          %v1208 = vld [vmem:[#allocation2 + $0xb1] sm:$0xff]
          %v1209 = vld [vmem:[#allocation2 + $0xc1] sm:$0xff]
          %v1210 = vld [vmem:[#allocation2 + $0xc9] sm:$0xff]
          %v1211 = vld [vmem:[#allocation2 + $0xd9] sm:$0xff]
          %v1212 = vld [vmem:[#allocation2 + $0xe1] sm:$0xff]
          %v1213 = vld [vmem:[#allocation2 + $0xf1] sm:$0xff]
          %v1214 = vld [vmem:[#allocation2 + $0xf9] sm:$0xff]
          %v1215 = vld [vmem:[#allocation2 + $0x109] sm:$0xff]
          %v1216 = vld [vmem:[#allocation2 + $0x111] sm:$0xff]
          %v1217 = vld [vmem:[#allocation2 + $0x121] sm:$0xff]
          %v1218 = vld [vmem:[#allocation2 + $0x129] sm:$0xff]
          %v1219 = vld [vmem:[#allocation2 + $0x139] sm:$0xff]
          %v1220 = vld [vmem:[#allocation2 + $0x141] sm:$0xff]
          %v1221 = vld [vmem:[#allocation2 + $0x151] sm:$0xff]
          %v1222 = vld [vmem:[#allocation2 + $0x159] sm:$0xff]
          %v1223 = vld [vmem:[#allocation2 + $0x169] sm:$0xff]
          %v1224 = vld [vmem:[#allocation2 + $0x171] sm:$0xff]
          %v1225 = vpack.c.bf16 %v1193, %v1193
          %v1226 = vpack.c.bf16 %v1194, %v1194
          %v1227 = vpack.c.bf16 %v1195, %v1195
          %v1228 = vpack.c.bf16 %v1196, %v1196
          %v1229 = vpack.c.bf16 %v1197, %v1197
          %v1230 = vpack.c.bf16 %v1198, %v1198
          %v1231 = vpack.c.bf16 %v1199, %v1199
          %v1232 = vpack.c.bf16 %v1200, %v1200
          %v1233 = vpack.c.bf16 %v1201, %v1201
          %v1234 = vpack.c.bf16 %v1202, %v1202
          %v1235 = vpack.c.bf16 %v1203, %v1203
          %v1236 = vpack.c.bf16 %v1204, %v1204
          %v1237 = vpack.c.bf16 %v1205, %v1205
          %v1238 = vpack.c.bf16 %v1206, %v1206
          %v1239 = vpack.c.bf16 %v1207, %v1207
          %v1240 = vpack.c.bf16 %v1208, %v1208
          %v1241 = vpack.c.bf16 %v1209, %v1209
          %v1242 = vpack.c.bf16 %v1210, %v1210
          %v1243 = vpack.c.bf16 %v1211, %v1211
          %v1244 = vpack.c.bf16 %v1212, %v1212
          %v1245 = vpack.c.bf16 %v1213, %v1213
          %v1246 = vpack.c.bf16 %v1214, %v1214
          %v1247 = vpack.c.bf16 %v1215, %v1215
          %v1248 = vpack.c.bf16 %v1216, %v1216
          %v1249 = vpack.c.bf16 %v1217, %v1217
          %v1250 = vpack.c.bf16 %v1218, %v1218
          %v1251 = vpack.c.bf16 %v1219, %v1219
          %v1252 = vpack.c.bf16 %v1220, %v1220
          %v1253 = vpack.c.bf16 %v1221, %v1221
          %v1254 = vpack.c.bf16 %v1222, %v1222
          %v1255 = vpack.c.bf16 %v1223, %v1223
          %v1256 = vpack.c.bf16 %v1224, %v1224
          %1289 = vrot.lane.b32.xlu0 %v1225, 4
          %v1290 = vpop.permute.xlu0 %1289
          %1291 = vrot.lane.b32.xlu0 %v1226, 4
          %v1292 = vpop.permute.xlu0 %1291
          %1293 = vrot.lane.b32.xlu0 %v1227, 4
          %v1294 = vpop.permute.xlu0 %1293
          %1295 = vrot.lane.b32.xlu0 %v1228, 4
          %v1296 = vpop.permute.xlu0 %1295
          %1297 = vrot.lane.b32.xlu0 %v1229, 4
          %v1298 = vpop.permute.xlu0 %1297
          %1299 = vrot.lane.b32.xlu0 %v1230, 4
          %v1300 = vpop.permute.xlu0 %1299
          %1301 = vrot.lane.b32.xlu0 %v1231, 4
          %v1302 = vpop.permute.xlu0 %1301
          %1303 = vrot.lane.b32.xlu0 %v1232, 4
          %v1304 = vpop.permute.xlu0 %1303
          %1305 = vrot.lane.b32.xlu0 %v1233, 4
          %v1306 = vpop.permute.xlu0 %1305
          %1307 = vrot.lane.b32.xlu0 %v1234, 4
          %v1308 = vpop.permute.xlu0 %1307
          %1309 = vrot.lane.b32.xlu0 %v1235, 4
          %v1310 = vpop.permute.xlu0 %1309
          %1311 = vrot.lane.b32.xlu0 %v1236, 4
          %v1312 = vpop.permute.xlu0 %1311
          %1313 = vrot.lane.b32.xlu0 %v1237, 4
          %v1314 = vpop.permute.xlu0 %1313
          %1315 = vrot.lane.b32.xlu0 %v1238, 4
          %v1316 = vpop.permute.xlu0 %1315
          %1317 = vrot.lane.b32.xlu0 %v1239, 4
          %v1318 = vpop.permute.xlu0 %1317
          %1319 = vrot.lane.b32.xlu0 %v1240, 4
          %v1320 = vpop.permute.xlu0 %1319
          %1321 = vrot.lane.b32.xlu0 %v1241, 4
          %v1322 = vpop.permute.xlu0 %1321
          %1323 = vrot.lane.b32.xlu0 %v1242, 4
          %v1324 = vpop.permute.xlu0 %1323
          %1325 = vrot.lane.b32.xlu0 %v1243, 4
          %v1326 = vpop.permute.xlu0 %1325
          %1327 = vrot.lane.b32.xlu0 %v1244, 4
          %v1328 = vpop.permute.xlu0 %1327
          %1329 = vrot.lane.b32.xlu0 %v1245, 4
          %v1330 = vpop.permute.xlu0 %1329
          %1331 = vrot.lane.b32.xlu0 %v1246, 4
          %v1332 = vpop.permute.xlu0 %1331
          %1333 = vrot.lane.b32.xlu0 %v1247, 4
          %v1334 = vpop.permute.xlu0 %1333
          %1335 = vrot.lane.b32.xlu0 %v1248, 4
          %v1336 = vpop.permute.xlu0 %1335
          %1337 = vrot.lane.b32.xlu0 %v1249, 4
          %v1338 = vpop.permute.xlu0 %1337
          %1339 = vrot.lane.b32.xlu0 %v1250, 4
          %v1340 = vpop.permute.xlu0 %1339
          %1341 = vrot.lane.b32.xlu0 %v1251, 4
          %v1342 = vpop.permute.xlu0 %1341
          %1343 = vrot.lane.b32.xlu0 %v1252, 4
          %v1344 = vpop.permute.xlu0 %1343
          %1345 = vrot.lane.b32.xlu0 %v1253, 4
          %v1346 = vpop.permute.xlu0 %1345
          %1347 = vrot.lane.b32.xlu0 %v1254, 4
          %v1348 = vpop.permute.xlu0 %1347
          %1349 = vrot.lane.b32.xlu0 %v1255, 4
          %v1350 = vpop.permute.xlu0 %1349
          %1351 = vrot.lane.b32.xlu0 %v1256, 4
          %v1352 = vpop.permute.xlu0 %1351
          %vm1385 = vcmask 60448
          %1386 = vst.msk [vmem:[#allocation3] sm:$0xf] %vm1385, %v1290
          %1387 = vst.msk [vmem:[#allocation3 + $0x4] sm:$0xf] %vm1385, %v1292
          %1388 = vst.msk [vmem:[#allocation3 + $0x8] sm:$0xf] %vm1385, %v1294
          %1389 = vst.msk [vmem:[#allocation3 + $0xc] sm:$0xf] %vm1385, %v1296
          %1390 = vst.msk [vmem:[#allocation3 + $0x10] sm:$0xf] %vm1385, %v1298
          %1391 = vst.msk [vmem:[#allocation3 + $0x14] sm:$0xf] %vm1385, %v1300
          %1392 = vst.msk [vmem:[#allocation3 + $0x18] sm:$0xf] %vm1385, %v1302
          %1393 = vst.msk [vmem:[#allocation3 + $0x1c] sm:$0xf] %vm1385, %v1304
          %1394 = vst.msk [vmem:[#allocation3 + $0x20] sm:$0xf] %vm1385, %v1306
          %1395 = vst.msk [vmem:[#allocation3 + $0x24] sm:$0xf] %vm1385, %v1308
          %1396 = vst.msk [vmem:[#allocation3 + $0x28] sm:$0xf] %vm1385, %v1310
          %1397 = vst.msk [vmem:[#allocation3 + $0x2c] sm:$0xf] %vm1385, %v1312
          %1398 = vst.msk [vmem:[#allocation3 + $0x30] sm:$0xf] %vm1385, %v1314
          %1399 = vst.msk [vmem:[#allocation3 + $0x34] sm:$0xf] %vm1385, %v1316
          %1400 = vst.msk [vmem:[#allocation3 + $0x38] sm:$0xf] %vm1385, %v1318
          %1401 = vst.msk [vmem:[#allocation3 + $0x3c] sm:$0xf] %vm1385, %v1320
          %1402 = vst.msk [vmem:[#allocation3 + $0x40] sm:$0xf] %vm1385, %v1322
          %1403 = vst.msk [vmem:[#allocation3 + $0x44] sm:$0xf] %vm1385, %v1324
          %1404 = vst.msk [vmem:[#allocation3 + $0x48] sm:$0xf] %vm1385, %v1326
          %1405 = vst.msk [vmem:[#allocation3 + $0x4c] sm:$0xf] %vm1385, %v1328
          %1406 = vst.msk [vmem:[#allocation3 + $0x50] sm:$0xf] %vm1385, %v1330
          %1407 = vst.msk [vmem:[#allocation3 + $0x54] sm:$0xf] %vm1385, %v1332
          %1408 = vst.msk [vmem:[#allocation3 + $0x58] sm:$0xf] %vm1385, %v1334
          %1409 = vst.msk [vmem:[#allocation3 + $0x5c] sm:$0xf] %vm1385, %v1336
          %1410 = vst.msk [vmem:[#allocation3 + $0x60] sm:$0xf] %vm1385, %v1338
          %1411 = vst.msk [vmem:[#allocation3 + $0x64] sm:$0xf] %vm1385, %v1340
          %1412 = vst.msk [vmem:[#allocation3 + $0x68] sm:$0xf] %vm1385, %v1342
          %1413 = vst.msk [vmem:[#allocation3 + $0x6c] sm:$0xf] %vm1385, %v1344
          %1414 = vst.msk [vmem:[#allocation3 + $0x70] sm:$0xf] %vm1385, %v1346
          %1415 = vst.msk [vmem:[#allocation3 + $0x74] sm:$0xf] %vm1385, %v1348
          %1416 = vst.msk [vmem:[#allocation3 + $0x78] sm:$0xf] %vm1385, %v1350
          %1417 = vst.msk [vmem:[#allocation3 + $0x7c] sm:$0xf] %vm1385, %v1352
          %v1418 = vld [vmem:[#allocation2 + $0x2] sm:$0xff]
          %v1419 = vld [vmem:[#allocation2 + $0xa] sm:$0xff]
          %v1420 = vld [vmem:[#allocation2 + $0x1a] sm:$0xff]
          %v1421 = vld [vmem:[#allocation2 + $0x22] sm:$0xff]
          %v1422 = vld [vmem:[#allocation2 + $0x32] sm:$0xff]
          %v1423 = vld [vmem:[#allocation2 + $0x3a] sm:$0xff]
          %v1424 = vld [vmem:[#allocation2 + $0x4a] sm:$0xff]
          %v1425 = vld [vmem:[#allocation2 + $0x52] sm:$0xff]
          %v1426 = vld [vmem:[#allocation2 + $0x62] sm:$0xff]
          %v1427 = vld [vmem:[#allocation2 + $0x6a] sm:$0xff]
          %v1428 = vld [vmem:[#allocation2 + $0x7a] sm:$0xff]
          %v1429 = vld [vmem:[#allocation2 + $0x82] sm:$0xff]
          %v1430 = vld [vmem:[#allocation2 + $0x92] sm:$0xff]
          %v1431 = vld [vmem:[#allocation2 + $0x9a] sm:$0xff]
          %v1432 = vld [vmem:[#allocation2 + $0xaa] sm:$0xff]
          %v1433 = vld [vmem:[#allocation2 + $0xb2] sm:$0xff]
          %v1434 = vld [vmem:[#allocation2 + $0xc2] sm:$0xff]
          %v1435 = vld [vmem:[#allocation2 + $0xca] sm:$0xff]
          %v1436 = vld [vmem:[#allocation2 + $0xda] sm:$0xff]
          %v1437 = vld [vmem:[#allocation2 + $0xe2] sm:$0xff]
          %v1438 = vld [vmem:[#allocation2 + $0xf2] sm:$0xff]
          %v1439 = vld [vmem:[#allocation2 + $0xfa] sm:$0xff]
          %v1440 = vld [vmem:[#allocation2 + $0x10a] sm:$0xff]
          %v1441 = vld [vmem:[#allocation2 + $0x112] sm:$0xff]
          %v1442 = vld [vmem:[#allocation2 + $0x122] sm:$0xff]
          %v1443 = vld [vmem:[#allocation2 + $0x12a] sm:$0xff]
          %v1444 = vld [vmem:[#allocation2 + $0x13a] sm:$0xff]
          %v1445 = vld [vmem:[#allocation2 + $0x142] sm:$0xff]
          %v1446 = vld [vmem:[#allocation2 + $0x152] sm:$0xff]
          %v1447 = vld [vmem:[#allocation2 + $0x15a] sm:$0xff]
          %v1448 = vld [vmem:[#allocation2 + $0x16a] sm:$0xff]
          %v1449 = vld [vmem:[#allocation2 + $0x172] sm:$0xff]
          %v1450 = vpack.c.bf16 %v1418, %v1418
          %v1451 = vpack.c.bf16 %v1419, %v1419
          %v1452 = vpack.c.bf16 %v1420, %v1420
          %v1453 = vpack.c.bf16 %v1421, %v1421
          %v1454 = vpack.c.bf16 %v1422, %v1422
          %v1455 = vpack.c.bf16 %v1423, %v1423
          %v1456 = vpack.c.bf16 %v1424, %v1424
          %v1457 = vpack.c.bf16 %v1425, %v1425
          %v1458 = vpack.c.bf16 %v1426, %v1426
          %v1459 = vpack.c.bf16 %v1427, %v1427
          %v1460 = vpack.c.bf16 %v1428, %v1428
          %v1461 = vpack.c.bf16 %v1429, %v1429
          %v1462 = vpack.c.bf16 %v1430, %v1430
          %v1463 = vpack.c.bf16 %v1431, %v1431
          %v1464 = vpack.c.bf16 %v1432, %v1432
          %v1465 = vpack.c.bf16 %v1433, %v1433
          %v1466 = vpack.c.bf16 %v1434, %v1434
          %v1467 = vpack.c.bf16 %v1435, %v1435
          %v1468 = vpack.c.bf16 %v1436, %v1436
          %v1469 = vpack.c.bf16 %v1437, %v1437
          %v1470 = vpack.c.bf16 %v1438, %v1438
          %v1471 = vpack.c.bf16 %v1439, %v1439
          %v1472 = vpack.c.bf16 %v1440, %v1440
          %v1473 = vpack.c.bf16 %v1441, %v1441
          %v1474 = vpack.c.bf16 %v1442, %v1442
          %v1475 = vpack.c.bf16 %v1443, %v1443
          %v1476 = vpack.c.bf16 %v1444, %v1444
          %v1477 = vpack.c.bf16 %v1445, %v1445
          %v1478 = vpack.c.bf16 %v1446, %v1446
          %v1479 = vpack.c.bf16 %v1447, %v1447
          %v1480 = vpack.c.bf16 %v1448, %v1448
          %v1481 = vpack.c.bf16 %v1449, %v1449
          %1514 = vrot.lane.b32.xlu0 %v1450, 8
          %v1515 = vpop.permute.xlu0 %1514
          %1516 = vrot.lane.b32.xlu0 %v1451, 8
          %v1517 = vpop.permute.xlu0 %1516
          %1518 = vrot.lane.b32.xlu0 %v1452, 8
          %v1519 = vpop.permute.xlu0 %1518
          %1520 = vrot.lane.b32.xlu0 %v1453, 8
          %v1521 = vpop.permute.xlu0 %1520
          %1522 = vrot.lane.b32.xlu0 %v1454, 8
          %v1523 = vpop.permute.xlu0 %1522
          %1524 = vrot.lane.b32.xlu0 %v1455, 8
          %v1525 = vpop.permute.xlu0 %1524
          %1526 = vrot.lane.b32.xlu0 %v1456, 8
          %v1527 = vpop.permute.xlu0 %1526
          %1528 = vrot.lane.b32.xlu0 %v1457, 8
          %v1529 = vpop.permute.xlu0 %1528
          %1530 = vrot.lane.b32.xlu0 %v1458, 8
          %v1531 = vpop.permute.xlu0 %1530
          %1532 = vrot.lane.b32.xlu0 %v1459, 8
          %v1533 = vpop.permute.xlu0 %1532
          %1534 = vrot.lane.b32.xlu0 %v1460, 8
          %v1535 = vpop.permute.xlu0 %1534
          %1536 = vrot.lane.b32.xlu0 %v1461, 8
          %v1537 = vpop.permute.xlu0 %1536
          %1538 = vrot.lane.b32.xlu0 %v1462, 8
          %v1539 = vpop.permute.xlu0 %1538
          %1540 = vrot.lane.b32.xlu0 %v1463, 8
          %v1541 = vpop.permute.xlu0 %1540
          %1542 = vrot.lane.b32.xlu0 %v1464, 8
          %v1543 = vpop.permute.xlu0 %1542
          %1544 = vrot.lane.b32.xlu0 %v1465, 8
          %v1545 = vpop.permute.xlu0 %1544
          %1546 = vrot.lane.b32.xlu0 %v1466, 8
          %v1547 = vpop.permute.xlu0 %1546
          %1548 = vrot.lane.b32.xlu0 %v1467, 8
          %v1549 = vpop.permute.xlu0 %1548
          %1550 = vrot.lane.b32.xlu0 %v1468, 8
          %v1551 = vpop.permute.xlu0 %1550
          %1552 = vrot.lane.b32.xlu0 %v1469, 8
          %v1553 = vpop.permute.xlu0 %1552
          %1554 = vrot.lane.b32.xlu0 %v1470, 8
          %v1555 = vpop.permute.xlu0 %1554
          %1556 = vrot.lane.b32.xlu0 %v1471, 8
          %v1557 = vpop.permute.xlu0 %1556
          %1558 = vrot.lane.b32.xlu0 %v1472, 8
          %v1559 = vpop.permute.xlu0 %1558
          %1560 = vrot.lane.b32.xlu0 %v1473, 8
          %v1561 = vpop.permute.xlu0 %1560
          %1562 = vrot.lane.b32.xlu0 %v1474, 8
          %v1563 = vpop.permute.xlu0 %1562
          %1564 = vrot.lane.b32.xlu0 %v1475, 8
          %v1565 = vpop.permute.xlu0 %1564
          %1566 = vrot.lane.b32.xlu0 %v1476, 8
          %v1567 = vpop.permute.xlu0 %1566
          %1568 = vrot.lane.b32.xlu0 %v1477, 8
          %v1569 = vpop.permute.xlu0 %1568
          %1570 = vrot.lane.b32.xlu0 %v1478, 8
          %v1571 = vpop.permute.xlu0 %1570
          %1572 = vrot.lane.b32.xlu0 %v1479, 8
          %v1573 = vpop.permute.xlu0 %1572
          %1574 = vrot.lane.b32.xlu0 %v1480, 8
          %v1575 = vpop.permute.xlu0 %1574
          %1576 = vrot.lane.b32.xlu0 %v1481, 8
          %v1577 = vpop.permute.xlu0 %1576
          %vm1610 = vcmask 93248
          %1611 = vst.msk [vmem:[#allocation3] sm:$0xf] %vm1610, %v1515
          %1612 = vst.msk [vmem:[#allocation3 + $0x4] sm:$0xf] %vm1610, %v1517
          %1613 = vst.msk [vmem:[#allocation3 + $0x8] sm:$0xf] %vm1610, %v1519
          %1614 = vst.msk [vmem:[#allocation3 + $0xc] sm:$0xf] %vm1610, %v1521
          %1615 = vst.msk [vmem:[#allocation3 + $0x10] sm:$0xf] %vm1610, %v1523
          %1616 = vst.msk [vmem:[#allocation3 + $0x14] sm:$0xf] %vm1610, %v1525
          %1617 = vst.msk [vmem:[#allocation3 + $0x18] sm:$0xf] %vm1610, %v1527
          %1618 = vst.msk [vmem:[#allocation3 + $0x1c] sm:$0xf] %vm1610, %v1529
          %1619 = vst.msk [vmem:[#allocation3 + $0x20] sm:$0xf] %vm1610, %v1531
          %1620 = vst.msk [vmem:[#allocation3 + $0x24] sm:$0xf] %vm1610, %v1533
          %1621 = vst.msk [vmem:[#allocation3 + $0x28] sm:$0xf] %vm1610, %v1535
          %1622 = vst.msk [vmem:[#allocation3 + $0x2c] sm:$0xf] %vm1610, %v1537
          %1623 = vst.msk [vmem:[#allocation3 + $0x30] sm:$0xf] %vm1610, %v1539
          %1624 = vst.msk [vmem:[#allocation3 + $0x34] sm:$0xf] %vm1610, %v1541
          %1625 = vst.msk [vmem:[#allocation3 + $0x38] sm:$0xf] %vm1610, %v1543
          %1626 = vst.msk [vmem:[#allocation3 + $0x3c] sm:$0xf] %vm1610, %v1545
          %1627 = vst.msk [vmem:[#allocation3 + $0x40] sm:$0xf] %vm1610, %v1547
          %1628 = vst.msk [vmem:[#allocation3 + $0x44] sm:$0xf] %vm1610, %v1549
          %1629 = vst.msk [vmem:[#allocation3 + $0x48] sm:$0xf] %vm1610, %v1551
          %1630 = vst.msk [vmem:[#allocation3 + $0x4c] sm:$0xf] %vm1610, %v1553
          %1631 = vst.msk [vmem:[#allocation3 + $0x50] sm:$0xf] %vm1610, %v1555
          %1632 = vst.msk [vmem:[#allocation3 + $0x54] sm:$0xf] %vm1610, %v1557
          %1633 = vst.msk [vmem:[#allocation3 + $0x58] sm:$0xf] %vm1610, %v1559
          %1634 = vst.msk [vmem:[#allocation3 + $0x5c] sm:$0xf] %vm1610, %v1561
          %1635 = vst.msk [vmem:[#allocation3 + $0x60] sm:$0xf] %vm1610, %v1563
          %1636 = vst.msk [vmem:[#allocation3 + $0x64] sm:$0xf] %vm1610, %v1565
          %1637 = vst.msk [vmem:[#allocation3 + $0x68] sm:$0xf] %vm1610, %v1567
          %1638 = vst.msk [vmem:[#allocation3 + $0x6c] sm:$0xf] %vm1610, %v1569
          %1639 = vst.msk [vmem:[#allocation3 + $0x70] sm:$0xf] %vm1610, %v1571
          %1640 = vst.msk [vmem:[#allocation3 + $0x74] sm:$0xf] %vm1610, %v1573
          %1641 = vst.msk [vmem:[#allocation3 + $0x78] sm:$0xf] %vm1610, %v1575
          %1642 = vst.msk [vmem:[#allocation3 + $0x7c] sm:$0xf] %vm1610, %v1577
          %v1643 = vld [vmem:[%s1063] sm:$0xff]
          %v1644 = vld [vmem:[%s1063 + $0x8] sm:$0xff]
          %v1645 = vld [vmem:[%s1063 + $0x18] sm:$0xff]
          %v1646 = vld [vmem:[%s1063 + $0x20] sm:$0xff]
          %v1647 = vld [vmem:[%s1063 + $0x30] sm:$0xff]
          %v1648 = vld [vmem:[%s1063 + $0x38] sm:$0xff]
          %v1649 = vld [vmem:[%s1063 + $0x48] sm:$0xff]
          %v1650 = vld [vmem:[%s1063 + $0x50] sm:$0xff]
          %v1651 = vld [vmem:[%s1063 + $0x60] sm:$0xff]
          %v1652 = vld [vmem:[%s1063 + $0x68] sm:$0xff]
          %v1653 = vld [vmem:[%s1063 + $0x78] sm:$0xff]
          %v1654 = vld [vmem:[%s1063 + $0x80] sm:$0xff]
          %v1655 = vld [vmem:[%s1063 + $0x90] sm:$0xff]
          %v1656 = vld [vmem:[%s1063 + $0x98] sm:$0xff]
          %v1657 = vld [vmem:[%s1063 + $0xa8] sm:$0xff]
          %v1658 = vld [vmem:[%s1063 + $0xb0] sm:$0xff]
          %v1659 = vld [vmem:[%s1063 + $0xc0] sm:$0xff]
          %v1660 = vld [vmem:[%s1063 + $0xc8] sm:$0xff]
          %v1661 = vld [vmem:[%s1063 + $0xd8] sm:$0xff]
          %v1662 = vld [vmem:[%s1063 + $0xe0] sm:$0xff]
          %v1663 = vld [vmem:[%s1063 + $0xf0] sm:$0xff]
          %v1664 = vld [vmem:[%s1063 + $0xf8] sm:$0xff]
          %v1665 = vld [vmem:[%s1063 + $0x108] sm:$0xff]
          %v1666 = vld [vmem:[%s1063 + $0x110] sm:$0xff]
          %v1667 = vld [vmem:[%s1063 + $0x120] sm:$0xff]
          %v1668 = vld [vmem:[%s1063 + $0x128] sm:$0xff]
          %v1669 = vld [vmem:[%s1063 + $0x138] sm:$0xff]
          %v1670 = vld [vmem:[%s1063 + $0x140] sm:$0xff]
          %v1671 = vld [vmem:[%s1063 + $0x150] sm:$0xff]
          %v1672 = vld [vmem:[%s1063 + $0x158] sm:$0xff]
          %v1673 = vld [vmem:[%s1063 + $0x168] sm:$0xff]
          %v1674 = vld [vmem:[%s1063 + $0x170] sm:$0xff]
          %v1675 = vpack.c.bf16 %v1643, %v1643
          %v1676 = vpack.c.bf16 %v1644, %v1644
          %v1677 = vpack.c.bf16 %v1645, %v1645
          %v1678 = vpack.c.bf16 %v1646, %v1646
          %v1679 = vpack.c.bf16 %v1647, %v1647
          %v1680 = vpack.c.bf16 %v1648, %v1648
          %v1681 = vpack.c.bf16 %v1649, %v1649
          %v1682 = vpack.c.bf16 %v1650, %v1650
          %v1683 = vpack.c.bf16 %v1651, %v1651
          %v1684 = vpack.c.bf16 %v1652, %v1652
          %v1685 = vpack.c.bf16 %v1653, %v1653
          %v1686 = vpack.c.bf16 %v1654, %v1654
          %v1687 = vpack.c.bf16 %v1655, %v1655
          %v1688 = vpack.c.bf16 %v1656, %v1656
          %v1689 = vpack.c.bf16 %v1657, %v1657
          %v1690 = vpack.c.bf16 %v1658, %v1658
          %v1691 = vpack.c.bf16 %v1659, %v1659
          %v1692 = vpack.c.bf16 %v1660, %v1660
          %v1693 = vpack.c.bf16 %v1661, %v1661
          %v1694 = vpack.c.bf16 %v1662, %v1662
          %v1695 = vpack.c.bf16 %v1663, %v1663
          %v1696 = vpack.c.bf16 %v1664, %v1664
          %v1697 = vpack.c.bf16 %v1665, %v1665
          %v1698 = vpack.c.bf16 %v1666, %v1666
          %v1699 = vpack.c.bf16 %v1667, %v1667
          %v1700 = vpack.c.bf16 %v1668, %v1668
          %v1701 = vpack.c.bf16 %v1669, %v1669
          %v1702 = vpack.c.bf16 %v1670, %v1670
          %v1703 = vpack.c.bf16 %v1671, %v1671
          %v1704 = vpack.c.bf16 %v1672, %v1672
          %v1705 = vpack.c.bf16 %v1673, %v1673
          %v1706 = vpack.c.bf16 %v1674, %v1674
          %1739 = vrot.lane.b32.xlu0 %v1675, 12
          %v1740 = vpop.permute.xlu0 %1739
          %1741 = vrot.lane.b32.xlu0 %v1676, 12
          %v1742 = vpop.permute.xlu0 %1741
          %1743 = vrot.lane.b32.xlu0 %v1677, 12
          %v1744 = vpop.permute.xlu0 %1743
          %1745 = vrot.lane.b32.xlu0 %v1678, 12
          %v1746 = vpop.permute.xlu0 %1745
          %1747 = vrot.lane.b32.xlu0 %v1679, 12
          %v1748 = vpop.permute.xlu0 %1747
          %1749 = vrot.lane.b32.xlu0 %v1680, 12
          %v1750 = vpop.permute.xlu0 %1749
          %1751 = vrot.lane.b32.xlu0 %v1681, 12
          %v1752 = vpop.permute.xlu0 %1751
          %1753 = vrot.lane.b32.xlu0 %v1682, 12
          %v1754 = vpop.permute.xlu0 %1753
          %1755 = vrot.lane.b32.xlu0 %v1683, 12
          %v1756 = vpop.permute.xlu0 %1755
          %1757 = vrot.lane.b32.xlu0 %v1684, 12
          %v1758 = vpop.permute.xlu0 %1757
          %1759 = vrot.lane.b32.xlu0 %v1685, 12
          %v1760 = vpop.permute.xlu0 %1759
          %1761 = vrot.lane.b32.xlu0 %v1686, 12
          %v1762 = vpop.permute.xlu0 %1761
          %1763 = vrot.lane.b32.xlu0 %v1687, 12
          %v1764 = vpop.permute.xlu0 %1763
          %1765 = vrot.lane.b32.xlu0 %v1688, 12
          %v1766 = vpop.permute.xlu0 %1765
          %1767 = vrot.lane.b32.xlu0 %v1689, 12
          %v1768 = vpop.permute.xlu0 %1767
          %1769 = vrot.lane.b32.xlu0 %v1690, 12
          %v1770 = vpop.permute.xlu0 %1769
          %1771 = vrot.lane.b32.xlu0 %v1691, 12
          %v1772 = vpop.permute.xlu0 %1771
          %1773 = vrot.lane.b32.xlu0 %v1692, 12
          %v1774 = vpop.permute.xlu0 %1773
          %1775 = vrot.lane.b32.xlu0 %v1693, 12
          %v1776 = vpop.permute.xlu0 %1775
          %1777 = vrot.lane.b32.xlu0 %v1694, 12
          %v1778 = vpop.permute.xlu0 %1777
          %1779 = vrot.lane.b32.xlu0 %v1695, 12
          %v1780 = vpop.permute.xlu0 %1779
          %1781 = vrot.lane.b32.xlu0 %v1696, 12
          %v1782 = vpop.permute.xlu0 %1781
          %1783 = vrot.lane.b32.xlu0 %v1697, 12
          %v1784 = vpop.permute.xlu0 %1783
          %1785 = vrot.lane.b32.xlu0 %v1698, 12
          %v1786 = vpop.permute.xlu0 %1785
          %1787 = vrot.lane.b32.xlu0 %v1699, 12
          %v1788 = vpop.permute.xlu0 %1787
          %1789 = vrot.lane.b32.xlu0 %v1700, 12
          %v1790 = vpop.permute.xlu0 %1789
          %1791 = vrot.lane.b32.xlu0 %v1701, 12
          %v1792 = vpop.permute.xlu0 %1791
          %1793 = vrot.lane.b32.xlu0 %v1702, 12
          %v1794 = vpop.permute.xlu0 %1793
          %1795 = vrot.lane.b32.xlu0 %v1703, 12
          %v1796 = vpop.permute.xlu0 %1795
          %1797 = vrot.lane.b32.xlu0 %v1704, 12
          %v1798 = vpop.permute.xlu0 %1797
          %1799 = vrot.lane.b32.xlu0 %v1705, 12
          %v1800 = vpop.permute.xlu0 %1799
          %1801 = vrot.lane.b32.xlu0 %v1706, 12
          %v1802 = vpop.permute.xlu0 %1801
          %vm1835 = vcmask 126048
          %1836 = vst.msk [vmem:[#allocation3] sm:$0xf] %vm1835, %v1740
          %1837 = vst.msk [vmem:[#allocation3 + $0x4] sm:$0xf] %vm1835, %v1742
          %1838 = vst.msk [vmem:[#allocation3 + $0x8] sm:$0xf] %vm1835, %v1744
          %1839 = vst.msk [vmem:[#allocation3 + $0xc] sm:$0xf] %vm1835, %v1746
          %1840 = vst.msk [vmem:[#allocation3 + $0x10] sm:$0xf] %vm1835, %v1748
          %1841 = vst.msk [vmem:[#allocation3 + $0x14] sm:$0xf] %vm1835, %v1750
          %1842 = vst.msk [vmem:[#allocation3 + $0x18] sm:$0xf] %vm1835, %v1752
          %1843 = vst.msk [vmem:[#allocation3 + $0x1c] sm:$0xf] %vm1835, %v1754
          %1844 = vst.msk [vmem:[#allocation3 + $0x20] sm:$0xf] %vm1835, %v1756
          %1845 = vst.msk [vmem:[#allocation3 + $0x24] sm:$0xf] %vm1835, %v1758
          %1846 = vst.msk [vmem:[#allocation3 + $0x28] sm:$0xf] %vm1835, %v1760
          %1847 = vst.msk [vmem:[#allocation3 + $0x2c] sm:$0xf] %vm1835, %v1762
          %1848 = vst.msk [vmem:[#allocation3 + $0x30] sm:$0xf] %vm1835, %v1764
          %1849 = vst.msk [vmem:[#allocation3 + $0x34] sm:$0xf] %vm1835, %v1766
          %1850 = vst.msk [vmem:[#allocation3 + $0x38] sm:$0xf] %vm1835, %v1768
          %1851 = vst.msk [vmem:[#allocation3 + $0x3c] sm:$0xf] %vm1835, %v1770
          %1852 = vst.msk [vmem:[#allocation3 + $0x40] sm:$0xf] %vm1835, %v1772
          %1853 = vst.msk [vmem:[#allocation3 + $0x44] sm:$0xf] %vm1835, %v1774
          %1854 = vst.msk [vmem:[#allocation3 + $0x48] sm:$0xf] %vm1835, %v1776
          %1855 = vst.msk [vmem:[#allocation3 + $0x4c] sm:$0xf] %vm1835, %v1778
          %1856 = vst.msk [vmem:[#allocation3 + $0x50] sm:$0xf] %vm1835, %v1780
          %1857 = vst.msk [vmem:[#allocation3 + $0x54] sm:$0xf] %vm1835, %v1782
          %1858 = vst.msk [vmem:[#allocation3 + $0x58] sm:$0xf] %vm1835, %v1784
          %1859 = vst.msk [vmem:[#allocation3 + $0x5c] sm:$0xf] %vm1835, %v1786
          %1860 = vst.msk [vmem:[#allocation3 + $0x60] sm:$0xf] %vm1835, %v1788
          %1861 = vst.msk [vmem:[#allocation3 + $0x64] sm:$0xf] %vm1835, %v1790
          %1862 = vst.msk [vmem:[#allocation3 + $0x68] sm:$0xf] %vm1835, %v1792
          %1863 = vst.msk [vmem:[#allocation3 + $0x6c] sm:$0xf] %vm1835, %v1794
          %1864 = vst.msk [vmem:[#allocation3 + $0x70] sm:$0xf] %vm1835, %v1796
          %1865 = vst.msk [vmem:[#allocation3 + $0x74] sm:$0xf] %vm1835, %v1798
          %1866 = vst.msk [vmem:[#allocation3 + $0x78] sm:$0xf] %vm1835, %v1800
          %1867 = vst.msk [vmem:[#allocation3 + $0x7c] sm:$0xf] %vm1835, %v1802
          %v1868 = vld [vmem:[%s1063 + $0x1] sm:$0xff]
          %v1869 = vld [vmem:[%s1063 + $0x9] sm:$0xff]
          %v1870 = vld [vmem:[%s1063 + $0x19] sm:$0xff]
          %v1871 = vld [vmem:[%s1063 + $0x21] sm:$0xff]
          %v1872 = vld [vmem:[%s1063 + $0x31] sm:$0xff]
          %v1873 = vld [vmem:[%s1063 + $0x39] sm:$0xff]
          %v1874 = vld [vmem:[%s1063 + $0x49] sm:$0xff]
          %v1875 = vld [vmem:[%s1063 + $0x51] sm:$0xff]
          %v1876 = vld [vmem:[%s1063 + $0x61] sm:$0xff]
          %v1877 = vld [vmem:[%s1063 + $0x69] sm:$0xff]
          %v1878 = vld [vmem:[%s1063 + $0x79] sm:$0xff]
          %v1879 = vld [vmem:[%s1063 + $0x81] sm:$0xff]
          %v1880 = vld [vmem:[%s1063 + $0x91] sm:$0xff]
          %v1881 = vld [vmem:[%s1063 + $0x99] sm:$0xff]
          %v1882 = vld [vmem:[%s1063 + $0xa9] sm:$0xff]
          %v1883 = vld [vmem:[%s1063 + $0xb1] sm:$0xff]
          %v1884 = vld [vmem:[%s1063 + $0xc1] sm:$0xff]
          %v1885 = vld [vmem:[%s1063 + $0xc9] sm:$0xff]
          %v1886 = vld [vmem:[%s1063 + $0xd9] sm:$0xff]
          %v1887 = vld [vmem:[%s1063 + $0xe1] sm:$0xff]
          %v1888 = vld [vmem:[%s1063 + $0xf1] sm:$0xff]
          %v1889 = vld [vmem:[%s1063 + $0xf9] sm:$0xff]
          %v1890 = vld [vmem:[%s1063 + $0x109] sm:$0xff]
          %v1891 = vld [vmem:[%s1063 + $0x111] sm:$0xff]
          %v1892 = vld [vmem:[%s1063 + $0x121] sm:$0xff]
          %v1893 = vld [vmem:[%s1063 + $0x129] sm:$0xff]
          %v1894 = vld [vmem:[%s1063 + $0x139] sm:$0xff]
          %v1895 = vld [vmem:[%s1063 + $0x141] sm:$0xff]
          %v1896 = vld [vmem:[%s1063 + $0x151] sm:$0xff]
          %v1897 = vld [vmem:[%s1063 + $0x159] sm:$0xff]
          %v1898 = vld [vmem:[%s1063 + $0x169] sm:$0xff]
          %v1899 = vld [vmem:[%s1063 + $0x171] sm:$0xff]
          %v1900 = vpack.c.bf16 %v1868, %v1868
          %v1901 = vpack.c.bf16 %v1869, %v1869
          %v1902 = vpack.c.bf16 %v1870, %v1870
          %v1903 = vpack.c.bf16 %v1871, %v1871
          %v1904 = vpack.c.bf16 %v1872, %v1872
          %v1905 = vpack.c.bf16 %v1873, %v1873
          %v1906 = vpack.c.bf16 %v1874, %v1874
          %v1907 = vpack.c.bf16 %v1875, %v1875
          %v1908 = vpack.c.bf16 %v1876, %v1876
          %v1909 = vpack.c.bf16 %v1877, %v1877
          %v1910 = vpack.c.bf16 %v1878, %v1878
          %v1911 = vpack.c.bf16 %v1879, %v1879
          %v1912 = vpack.c.bf16 %v1880, %v1880
          %v1913 = vpack.c.bf16 %v1881, %v1881
          %v1914 = vpack.c.bf16 %v1882, %v1882
          %v1915 = vpack.c.bf16 %v1883, %v1883
          %v1916 = vpack.c.bf16 %v1884, %v1884
          %v1917 = vpack.c.bf16 %v1885, %v1885
          %v1918 = vpack.c.bf16 %v1886, %v1886
          %v1919 = vpack.c.bf16 %v1887, %v1887
          %v1920 = vpack.c.bf16 %v1888, %v1888
          %v1921 = vpack.c.bf16 %v1889, %v1889
          %v1922 = vpack.c.bf16 %v1890, %v1890
          %v1923 = vpack.c.bf16 %v1891, %v1891
          %v1924 = vpack.c.bf16 %v1892, %v1892
          %v1925 = vpack.c.bf16 %v1893, %v1893
          %v1926 = vpack.c.bf16 %v1894, %v1894
          %v1927 = vpack.c.bf16 %v1895, %v1895
          %v1928 = vpack.c.bf16 %v1896, %v1896
          %v1929 = vpack.c.bf16 %v1897, %v1897
          %v1930 = vpack.c.bf16 %v1898, %v1898
          %v1931 = vpack.c.bf16 %v1899, %v1899
          %1964 = vrot.lane.b32.xlu0 %v1900, 16
          %v1965 = vpop.permute.xlu0 %1964
          %1966 = vrot.lane.b32.xlu0 %v1901, 16
          %v1967 = vpop.permute.xlu0 %1966
          %1968 = vrot.lane.b32.xlu0 %v1902, 16
          %v1969 = vpop.permute.xlu0 %1968
          %1970 = vrot.lane.b32.xlu0 %v1903, 16
          %v1971 = vpop.permute.xlu0 %1970
          %1972 = vrot.lane.b32.xlu0 %v1904, 16
          %v1973 = vpop.permute.xlu0 %1972
          %1974 = vrot.lane.b32.xlu0 %v1905, 16
          %v1975 = vpop.permute.xlu0 %1974
          %1976 = vrot.lane.b32.xlu0 %v1906, 16
          %v1977 = vpop.permute.xlu0 %1976
          %1978 = vrot.lane.b32.xlu0 %v1907, 16
          %v1979 = vpop.permute.xlu0 %1978
          %1980 = vrot.lane.b32.xlu0 %v1908, 16
          %v1981 = vpop.permute.xlu0 %1980
          %1982 = vrot.lane.b32.xlu0 %v1909, 16
          %v1983 = vpop.permute.xlu0 %1982
          %1984 = vrot.lane.b32.xlu0 %v1910, 16
          %v1985 = vpop.permute.xlu0 %1984
          %1986 = vrot.lane.b32.xlu0 %v1911, 16
          %v1987 = vpop.permute.xlu0 %1986
          %1988 = vrot.lane.b32.xlu0 %v1912, 16
          %v1989 = vpop.permute.xlu0 %1988
          %1990 = vrot.lane.b32.xlu0 %v1913, 16
          %v1991 = vpop.permute.xlu0 %1990
          %1992 = vrot.lane.b32.xlu0 %v1914, 16
          %v1993 = vpop.permute.xlu0 %1992
          %1994 = vrot.lane.b32.xlu0 %v1915, 16
          %v1995 = vpop.permute.xlu0 %1994
          %1996 = vrot.lane.b32.xlu0 %v1916, 16
          %v1997 = vpop.permute.xlu0 %1996
          %1998 = vrot.lane.b32.xlu0 %v1917, 16
          %v1999 = vpop.permute.xlu0 %1998
          %2000 = vrot.lane.b32.xlu0 %v1918, 16
          %v2001 = vpop.permute.xlu0 %2000
          %2002 = vrot.lane.b32.xlu0 %v1919, 16
          %v2003 = vpop.permute.xlu0 %2002
          %2004 = vrot.lane.b32.xlu0 %v1920, 16
          %v2005 = vpop.permute.xlu0 %2004
          %2006 = vrot.lane.b32.xlu0 %v1921, 16
          %v2007 = vpop.permute.xlu0 %2006
          %2008 = vrot.lane.b32.xlu0 %v1922, 16
          %v2009 = vpop.permute.xlu0 %2008
          %2010 = vrot.lane.b32.xlu0 %v1923, 16
          %v2011 = vpop.permute.xlu0 %2010
          %2012 = vrot.lane.b32.xlu0 %v1924, 16
          %v2013 = vpop.permute.xlu0 %2012
          %2014 = vrot.lane.b32.xlu0 %v1925, 16
          %v2015 = vpop.permute.xlu0 %2014
          %2016 = vrot.lane.b32.xlu0 %v1926, 16
          %v2017 = vpop.permute.xlu0 %2016
          %2018 = vrot.lane.b32.xlu0 %v1927, 16
          %v2019 = vpop.permute.xlu0 %2018
          %2020 = vrot.lane.b32.xlu0 %v1928, 16
          %v2021 = vpop.permute.xlu0 %2020
          %2022 = vrot.lane.b32.xlu0 %v1929, 16
          %v2023 = vpop.permute.xlu0 %2022
          %2024 = vrot.lane.b32.xlu0 %v1930, 16
          %v2025 = vpop.permute.xlu0 %2024
          %2026 = vrot.lane.b32.xlu0 %v1931, 16
          %v2027 = vpop.permute.xlu0 %2026
          %vm2060 = vcmask 158848
          %2061 = vst.msk [vmem:[#allocation3] sm:$0xf] %vm2060, %v1965
          %2062 = vst.msk [vmem:[#allocation3 + $0x4] sm:$0xf] %vm2060, %v1967
          %2063 = vst.msk [vmem:[#allocation3 + $0x8] sm:$0xf] %vm2060, %v1969
          %2064 = vst.msk [vmem:[#allocation3 + $0xc] sm:$0xf] %vm2060, %v1971
          %2065 = vst.msk [vmem:[#allocation3 + $0x10] sm:$0xf] %vm2060, %v1973
          %2066 = vst.msk [vmem:[#allocation3 + $0x14] sm:$0xf] %vm2060, %v1975
          %2067 = vst.msk [vmem:[#allocation3 + $0x18] sm:$0xf] %vm2060, %v1977
          %2068 = vst.msk [vmem:[#allocation3 + $0x1c] sm:$0xf] %vm2060, %v1979
          %2069 = vst.msk [vmem:[#allocation3 + $0x20] sm:$0xf] %vm2060, %v1981
          %2070 = vst.msk [vmem:[#allocation3 + $0x24] sm:$0xf] %vm2060, %v1983
          %2071 = vst.msk [vmem:[#allocation3 + $0x28] sm:$0xf] %vm2060, %v1985
          %2072 = vst.msk [vmem:[#allocation3 + $0x2c] sm:$0xf] %vm2060, %v1987
          %2073 = vst.msk [vmem:[#allocation3 + $0x30] sm:$0xf] %vm2060, %v1989
          %2074 = vst.msk [vmem:[#allocation3 + $0x34] sm:$0xf] %vm2060, %v1991
          %2075 = vst.msk [vmem:[#allocation3 + $0x38] sm:$0xf] %vm2060, %v1993
          %2076 = vst.msk [vmem:[#allocation3 + $0x3c] sm:$0xf] %vm2060, %v1995
          %2077 = vst.msk [vmem:[#allocation3 + $0x40] sm:$0xf] %vm2060, %v1997
          %2078 = vst.msk [vmem:[#allocation3 + $0x44] sm:$0xf] %vm2060, %v1999
          %2079 = vst.msk [vmem:[#allocation3 + $0x48] sm:$0xf] %vm2060, %v2001
          %2080 = vst.msk [vmem:[#allocation3 + $0x4c] sm:$0xf] %vm2060, %v2003
          %2081 = vst.msk [vmem:[#allocation3 + $0x50] sm:$0xf] %vm2060, %v2005
          %2082 = vst.msk [vmem:[#allocation3 + $0x54] sm:$0xf] %vm2060, %v2007
          %2083 = vst.msk [vmem:[#allocation3 + $0x58] sm:$0xf] %vm2060, %v2009
          %2084 = vst.msk [vmem:[#allocation3 + $0x5c] sm:$0xf] %vm2060, %v2011
          %2085 = vst.msk [vmem:[#allocation3 + $0x60] sm:$0xf] %vm2060, %v2013
          %2086 = vst.msk [vmem:[#allocation3 + $0x64] sm:$0xf] %vm2060, %v2015
          %2087 = vst.msk [vmem:[#allocation3 + $0x68] sm:$0xf] %vm2060, %v2017
          %2088 = vst.msk [vmem:[#allocation3 + $0x6c] sm:$0xf] %vm2060, %v2019
          %2089 = vst.msk [vmem:[#allocation3 + $0x70] sm:$0xf] %vm2060, %v2021
          %2090 = vst.msk [vmem:[#allocation3 + $0x74] sm:$0xf] %vm2060, %v2023
          %2091 = vst.msk [vmem:[#allocation3 + $0x78] sm:$0xf] %vm2060, %v2025
          %2092 = vst.msk [vmem:[#allocation3 + $0x7c] sm:$0xf] %vm2060, %v2027
          %v2093 = vld [vmem:[%s1063 + $0x2] sm:$0xff]
          %v2094 = vld [vmem:[%s1063 + $0xa] sm:$0xff]
          %v2095 = vld [vmem:[%s1063 + $0x1a] sm:$0xff]
          %v2096 = vld [vmem:[%s1063 + $0x22] sm:$0xff]
          %v2097 = vld [vmem:[%s1063 + $0x32] sm:$0xff]
          %v2098 = vld [vmem:[%s1063 + $0x3a] sm:$0xff]
          %v2099 = vld [vmem:[%s1063 + $0x4a] sm:$0xff]
          %v2100 = vld [vmem:[%s1063 + $0x52] sm:$0xff]
          %v2101 = vld [vmem:[%s1063 + $0x62] sm:$0xff]
          %v2102 = vld [vmem:[%s1063 + $0x6a] sm:$0xff]
          %v2103 = vld [vmem:[%s1063 + $0x7a] sm:$0xff]
          %v2104 = vld [vmem:[%s1063 + $0x82] sm:$0xff]
          %v2105 = vld [vmem:[%s1063 + $0x92] sm:$0xff]
          %v2106 = vld [vmem:[%s1063 + $0x9a] sm:$0xff]
          %v2107 = vld [vmem:[%s1063 + $0xaa] sm:$0xff]
          %v2108 = vld [vmem:[%s1063 + $0xb2] sm:$0xff]
          %v2109 = vld [vmem:[%s1063 + $0xc2] sm:$0xff]
          %v2110 = vld [vmem:[%s1063 + $0xca] sm:$0xff]
          %v2111 = vld [vmem:[%s1063 + $0xda] sm:$0xff]
          %v2112 = vld [vmem:[%s1063 + $0xe2] sm:$0xff]
          %v2113 = vld [vmem:[%s1063 + $0xf2] sm:$0xff]
          %v2114 = vld [vmem:[%s1063 + $0xfa] sm:$0xff]
          %v2115 = vld [vmem:[%s1063 + $0x10a] sm:$0xff]
          %v2116 = vld [vmem:[%s1063 + $0x112] sm:$0xff]
          %v2117 = vld [vmem:[%s1063 + $0x122] sm:$0xff]
          %v2118 = vld [vmem:[%s1063 + $0x12a] sm:$0xff]
          %v2119 = vld [vmem:[%s1063 + $0x13a] sm:$0xff]
          %v2120 = vld [vmem:[%s1063 + $0x142] sm:$0xff]
          %v2121 = vld [vmem:[%s1063 + $0x152] sm:$0xff]
          %v2122 = vld [vmem:[%s1063 + $0x15a] sm:$0xff]
          %v2123 = vld [vmem:[%s1063 + $0x16a] sm:$0xff]
          %v2124 = vld [vmem:[%s1063 + $0x172] sm:$0xff]
          %v2125 = vpack.c.bf16 %v2093, %v2093
          %v2126 = vpack.c.bf16 %v2094, %v2094
          %v2127 = vpack.c.bf16 %v2095, %v2095
          %v2128 = vpack.c.bf16 %v2096, %v2096
          %v2129 = vpack.c.bf16 %v2097, %v2097
          %v2130 = vpack.c.bf16 %v2098, %v2098
          %v2131 = vpack.c.bf16 %v2099, %v2099
          %v2132 = vpack.c.bf16 %v2100, %v2100
          %v2133 = vpack.c.bf16 %v2101, %v2101
          %v2134 = vpack.c.bf16 %v2102, %v2102
          %v2135 = vpack.c.bf16 %v2103, %v2103
          %v2136 = vpack.c.bf16 %v2104, %v2104
          %v2137 = vpack.c.bf16 %v2105, %v2105
          %v2138 = vpack.c.bf16 %v2106, %v2106
          %v2139 = vpack.c.bf16 %v2107, %v2107
          %v2140 = vpack.c.bf16 %v2108, %v2108
          %v2141 = vpack.c.bf16 %v2109, %v2109
          %v2142 = vpack.c.bf16 %v2110, %v2110
          %v2143 = vpack.c.bf16 %v2111, %v2111
          %v2144 = vpack.c.bf16 %v2112, %v2112
          %v2145 = vpack.c.bf16 %v2113, %v2113
          %v2146 = vpack.c.bf16 %v2114, %v2114
          %v2147 = vpack.c.bf16 %v2115, %v2115
          %v2148 = vpack.c.bf16 %v2116, %v2116
          %v2149 = vpack.c.bf16 %v2117, %v2117
          %v2150 = vpack.c.bf16 %v2118, %v2118
          %v2151 = vpack.c.bf16 %v2119, %v2119
          %v2152 = vpack.c.bf16 %v2120, %v2120
          %v2153 = vpack.c.bf16 %v2121, %v2121
          %v2154 = vpack.c.bf16 %v2122, %v2122
          %v2155 = vpack.c.bf16 %v2123, %v2123
          %v2156 = vpack.c.bf16 %v2124, %v2124
          %2189 = vrot.lane.b32.xlu0 %v2125, 20
          %v2190 = vpop.permute.xlu0 %2189
          %2191 = vrot.lane.b32.xlu0 %v2126, 20
          %v2192 = vpop.permute.xlu0 %2191
          %2193 = vrot.lane.b32.xlu0 %v2127, 20
          %v2194 = vpop.permute.xlu0 %2193
          %2195 = vrot.lane.b32.xlu0 %v2128, 20
          %v2196 = vpop.permute.xlu0 %2195
          %2197 = vrot.lane.b32.xlu0 %v2129, 20
          %v2198 = vpop.permute.xlu0 %2197
          %2199 = vrot.lane.b32.xlu0 %v2130, 20
          %v2200 = vpop.permute.xlu0 %2199
          %2201 = vrot.lane.b32.xlu0 %v2131, 20
          %v2202 = vpop.permute.xlu0 %2201
          %2203 = vrot.lane.b32.xlu0 %v2132, 20
          %v2204 = vpop.permute.xlu0 %2203
          %2205 = vrot.lane.b32.xlu0 %v2133, 20
          %v2206 = vpop.permute.xlu0 %2205
          %2207 = vrot.lane.b32.xlu0 %v2134, 20
          %v2208 = vpop.permute.xlu0 %2207
          %2209 = vrot.lane.b32.xlu0 %v2135, 20
          %v2210 = vpop.permute.xlu0 %2209
          %2211 = vrot.lane.b32.xlu0 %v2136, 20
          %v2212 = vpop.permute.xlu0 %2211
          %2213 = vrot.lane.b32.xlu0 %v2137, 20
          %v2214 = vpop.permute.xlu0 %2213
          %2215 = vrot.lane.b32.xlu0 %v2138, 20
          %v2216 = vpop.permute.xlu0 %2215
          %2217 = vrot.lane.b32.xlu0 %v2139, 20
          %v2218 = vpop.permute.xlu0 %2217
          %2219 = vrot.lane.b32.xlu0 %v2140, 20
          %v2220 = vpop.permute.xlu0 %2219
          %2221 = vrot.lane.b32.xlu0 %v2141, 20
          %v2222 = vpop.permute.xlu0 %2221
          %2223 = vrot.lane.b32.xlu0 %v2142, 20
          %v2224 = vpop.permute.xlu0 %2223
          %2225 = vrot.lane.b32.xlu0 %v2143, 20
          %v2226 = vpop.permute.xlu0 %2225
          %2227 = vrot.lane.b32.xlu0 %v2144, 20
          %v2228 = vpop.permute.xlu0 %2227
          %2229 = vrot.lane.b32.xlu0 %v2145, 20
          %v2230 = vpop.permute.xlu0 %2229
          %2231 = vrot.lane.b32.xlu0 %v2146, 20
          %v2232 = vpop.permute.xlu0 %2231
          %2233 = vrot.lane.b32.xlu0 %v2147, 20
          %v2234 = vpop.permute.xlu0 %2233
          %2235 = vrot.lane.b32.xlu0 %v2148, 20
          %v2236 = vpop.permute.xlu0 %2235
          %2237 = vrot.lane.b32.xlu0 %v2149, 20
          %v2238 = vpop.permute.xlu0 %2237
          %2239 = vrot.lane.b32.xlu0 %v2150, 20
          %v2240 = vpop.permute.xlu0 %2239
          %2241 = vrot.lane.b32.xlu0 %v2151, 20
          %v2242 = vpop.permute.xlu0 %2241
          %2243 = vrot.lane.b32.xlu0 %v2152, 20
          %v2244 = vpop.permute.xlu0 %2243
          %2245 = vrot.lane.b32.xlu0 %v2153, 20
          %v2246 = vpop.permute.xlu0 %2245
          %2247 = vrot.lane.b32.xlu0 %v2154, 20
          %v2248 = vpop.permute.xlu0 %2247
          %2249 = vrot.lane.b32.xlu0 %v2155, 20
          %v2250 = vpop.permute.xlu0 %2249
          %2251 = vrot.lane.b32.xlu0 %v2156, 20
          %v2252 = vpop.permute.xlu0 %2251
          %vm2285 = vcmask 191648
          %2286 = vst.msk [vmem:[#allocation3] sm:$0xf] %vm2285, %v2190
          %2287 = vst.msk [vmem:[#allocation3 + $0x4] sm:$0xf] %vm2285, %v2192
          %2288 = vst.msk [vmem:[#allocation3 + $0x8] sm:$0xf] %vm2285, %v2194
          %2289 = vst.msk [vmem:[#allocation3 + $0xc] sm:$0xf] %vm2285, %v2196
          %2290 = vst.msk [vmem:[#allocation3 + $0x10] sm:$0xf] %vm2285, %v2198
          %2291 = vst.msk [vmem:[#allocation3 + $0x14] sm:$0xf] %vm2285, %v2200
          %2292 = vst.msk [vmem:[#allocation3 + $0x18] sm:$0xf] %vm2285, %v2202
          %2293 = vst.msk [vmem:[#allocation3 + $0x1c] sm:$0xf] %vm2285, %v2204
          %2294 = vst.msk [vmem:[#allocation3 + $0x20] sm:$0xf] %vm2285, %v2206
          %2295 = vst.msk [vmem:[#allocation3 + $0x24] sm:$0xf] %vm2285, %v2208
          %2296 = vst.msk [vmem:[#allocation3 + $0x28] sm:$0xf] %vm2285, %v2210
          %2297 = vst.msk [vmem:[#allocation3 + $0x2c] sm:$0xf] %vm2285, %v2212
          %2298 = vst.msk [vmem:[#allocation3 + $0x30] sm:$0xf] %vm2285, %v2214
          %2299 = vst.msk [vmem:[#allocation3 + $0x34] sm:$0xf] %vm2285, %v2216
          %2300 = vst.msk [vmem:[#allocation3 + $0x38] sm:$0xf] %vm2285, %v2218
          %2301 = vst.msk [vmem:[#allocation3 + $0x3c] sm:$0xf] %vm2285, %v2220
          %2302 = vst.msk [vmem:[#allocation3 + $0x40] sm:$0xf] %vm2285, %v2222
          %2303 = vst.msk [vmem:[#allocation3 + $0x44] sm:$0xf] %vm2285, %v2224
          %2304 = vst.msk [vmem:[#allocation3 + $0x48] sm:$0xf] %vm2285, %v2226
          %2305 = vst.msk [vmem:[#allocation3 + $0x4c] sm:$0xf] %vm2285, %v2228
          %2306 = vst.msk [vmem:[#allocation3 + $0x50] sm:$0xf] %vm2285, %v2230
          %2307 = vst.msk [vmem:[#allocation3 + $0x54] sm:$0xf] %vm2285, %v2232
          %2308 = vst.msk [vmem:[#allocation3 + $0x58] sm:$0xf] %vm2285, %v2234
          %2309 = vst.msk [vmem:[#allocation3 + $0x5c] sm:$0xf] %vm2285, %v2236
          %2310 = vst.msk [vmem:[#allocation3 + $0x60] sm:$0xf] %vm2285, %v2238
          %2311 = vst.msk [vmem:[#allocation3 + $0x64] sm:$0xf] %vm2285, %v2240
          %2312 = vst.msk [vmem:[#allocation3 + $0x68] sm:$0xf] %vm2285, %v2242
          %2313 = vst.msk [vmem:[#allocation3 + $0x6c] sm:$0xf] %vm2285, %v2244
          %2314 = vst.msk [vmem:[#allocation3 + $0x70] sm:$0xf] %vm2285, %v2246
          %2315 = vst.msk [vmem:[#allocation3 + $0x74] sm:$0xf] %vm2285, %v2248
          %2316 = vst.msk [vmem:[#allocation3 + $0x78] sm:$0xf] %vm2285, %v2250
          %2317 = vst.msk [vmem:[#allocation3 + $0x7c] sm:$0xf] %vm2285, %v2252
          %s2318 = scalar_lea.vmem [#allocation2], 48
          %v2319 = vld [vmem:[%s2318] sm:$0xff]
          %v2320 = vld [vmem:[%s2318 + $0x8] sm:$0xff]
          %v2321 = vld [vmem:[%s2318 + $0x18] sm:$0xff]
          %v2322 = vld [vmem:[%s2318 + $0x20] sm:$0xff]
          %v2323 = vld [vmem:[%s2318 + $0x30] sm:$0xff]
          %v2324 = vld [vmem:[%s2318 + $0x38] sm:$0xff]
          %v2325 = vld [vmem:[%s2318 + $0x48] sm:$0xff]
          %v2326 = vld [vmem:[%s2318 + $0x50] sm:$0xff]
          %v2327 = vld [vmem:[%s2318 + $0x60] sm:$0xff]
          %v2328 = vld [vmem:[%s2318 + $0x68] sm:$0xff]
          %v2329 = vld [vmem:[%s2318 + $0x78] sm:$0xff]
          %v2330 = vld [vmem:[%s2318 + $0x80] sm:$0xff]
          %v2331 = vld [vmem:[%s2318 + $0x90] sm:$0xff]
          %v2332 = vld [vmem:[%s2318 + $0x98] sm:$0xff]
          %v2333 = vld [vmem:[%s2318 + $0xa8] sm:$0xff]
          %v2334 = vld [vmem:[%s2318 + $0xb0] sm:$0xff]
          %v2335 = vld [vmem:[%s2318 + $0xc0] sm:$0xff]
          %v2336 = vld [vmem:[%s2318 + $0xc8] sm:$0xff]
          %v2337 = vld [vmem:[%s2318 + $0xd8] sm:$0xff]
          %v2338 = vld [vmem:[%s2318 + $0xe0] sm:$0xff]
          %v2339 = vld [vmem:[%s2318 + $0xf0] sm:$0xff]
          %v2340 = vld [vmem:[%s2318 + $0xf8] sm:$0xff]
          %v2341 = vld [vmem:[%s2318 + $0x108] sm:$0xff]
          %v2342 = vld [vmem:[%s2318 + $0x110] sm:$0xff]
          %v2343 = vld [vmem:[%s2318 + $0x120] sm:$0xff]
          %v2344 = vld [vmem:[%s2318 + $0x128] sm:$0xff]
          %v2345 = vld [vmem:[%s2318 + $0x138] sm:$0xff]
          %v2346 = vld [vmem:[%s2318 + $0x140] sm:$0xff]
          %v2347 = vld [vmem:[%s2318 + $0x150] sm:$0xff]
          %v2348 = vld [vmem:[%s2318 + $0x158] sm:$0xff]
          %v2349 = vld [vmem:[%s2318 + $0x168] sm:$0xff]
          %v2350 = vld [vmem:[%s2318 + $0x170] sm:$0xff]
          %v2351 = vpack.c.bf16 %v2319, %v2319
          %v2352 = vpack.c.bf16 %v2320, %v2320
          %v2353 = vpack.c.bf16 %v2321, %v2321
          %v2354 = vpack.c.bf16 %v2322, %v2322
          %v2355 = vpack.c.bf16 %v2323, %v2323
          %v2356 = vpack.c.bf16 %v2324, %v2324
          %v2357 = vpack.c.bf16 %v2325, %v2325
          %v2358 = vpack.c.bf16 %v2326, %v2326
          %v2359 = vpack.c.bf16 %v2327, %v2327
          %v2360 = vpack.c.bf16 %v2328, %v2328
          %v2361 = vpack.c.bf16 %v2329, %v2329
          %v2362 = vpack.c.bf16 %v2330, %v2330
          %v2363 = vpack.c.bf16 %v2331, %v2331
          %v2364 = vpack.c.bf16 %v2332, %v2332
          %v2365 = vpack.c.bf16 %v2333, %v2333
          %v2366 = vpack.c.bf16 %v2334, %v2334
          %v2367 = vpack.c.bf16 %v2335, %v2335
          %v2368 = vpack.c.bf16 %v2336, %v2336
          %v2369 = vpack.c.bf16 %v2337, %v2337
          %v2370 = vpack.c.bf16 %v2338, %v2338
          %v2371 = vpack.c.bf16 %v2339, %v2339
          %v2372 = vpack.c.bf16 %v2340, %v2340
          %v2373 = vpack.c.bf16 %v2341, %v2341
          %v2374 = vpack.c.bf16 %v2342, %v2342
          %v2375 = vpack.c.bf16 %v2343, %v2343
          %v2376 = vpack.c.bf16 %v2344, %v2344
          %v2377 = vpack.c.bf16 %v2345, %v2345
          %v2378 = vpack.c.bf16 %v2346, %v2346
          %v2379 = vpack.c.bf16 %v2347, %v2347
          %v2380 = vpack.c.bf16 %v2348, %v2348
          %v2381 = vpack.c.bf16 %v2349, %v2349
          %v2382 = vpack.c.bf16 %v2350, %v2350
          %2415 = vrot.lane.b32.xlu0 %v2351, 24
          %v2416 = vpop.permute.xlu0 %2415
          %2417 = vrot.lane.b32.xlu0 %v2352, 24
          %v2418 = vpop.permute.xlu0 %2417
          %2419 = vrot.lane.b32.xlu0 %v2353, 24
          %v2420 = vpop.permute.xlu0 %2419
          %2421 = vrot.lane.b32.xlu0 %v2354, 24
          %v2422 = vpop.permute.xlu0 %2421
          %2423 = vrot.lane.b32.xlu0 %v2355, 24
          %v2424 = vpop.permute.xlu0 %2423
          %2425 = vrot.lane.b32.xlu0 %v2356, 24
          %v2426 = vpop.permute.xlu0 %2425
          %2427 = vrot.lane.b32.xlu0 %v2357, 24
          %v2428 = vpop.permute.xlu0 %2427
          %2429 = vrot.lane.b32.xlu0 %v2358, 24
          %v2430 = vpop.permute.xlu0 %2429
          %2431 = vrot.lane.b32.xlu0 %v2359, 24
          %v2432 = vpop.permute.xlu0 %2431
          %2433 = vrot.lane.b32.xlu0 %v2360, 24
          %v2434 = vpop.permute.xlu0 %2433
          %2435 = vrot.lane.b32.xlu0 %v2361, 24
          %v2436 = vpop.permute.xlu0 %2435
          %2437 = vrot.lane.b32.xlu0 %v2362, 24
          %v2438 = vpop.permute.xlu0 %2437
          %2439 = vrot.lane.b32.xlu0 %v2363, 24
          %v2440 = vpop.permute.xlu0 %2439
          %2441 = vrot.lane.b32.xlu0 %v2364, 24
          %v2442 = vpop.permute.xlu0 %2441
          %2443 = vrot.lane.b32.xlu0 %v2365, 24
          %v2444 = vpop.permute.xlu0 %2443
          %2445 = vrot.lane.b32.xlu0 %v2366, 24
          %v2446 = vpop.permute.xlu0 %2445
          %2447 = vrot.lane.b32.xlu0 %v2367, 24
          %v2448 = vpop.permute.xlu0 %2447
          %2449 = vrot.lane.b32.xlu0 %v2368, 24
          %v2450 = vpop.permute.xlu0 %2449
          %2451 = vrot.lane.b32.xlu0 %v2369, 24
          %v2452 = vpop.permute.xlu0 %2451
          %2453 = vrot.lane.b32.xlu0 %v2370, 24
          %v2454 = vpop.permute.xlu0 %2453
          %2455 = vrot.lane.b32.xlu0 %v2371, 24
          %v2456 = vpop.permute.xlu0 %2455
          %2457 = vrot.lane.b32.xlu0 %v2372, 24
          %v2458 = vpop.permute.xlu0 %2457
          %2459 = vrot.lane.b32.xlu0 %v2373, 24
          %v2460 = vpop.permute.xlu0 %2459
          %2461 = vrot.lane.b32.xlu0 %v2374, 24
          %v2462 = vpop.permute.xlu0 %2461
          %2463 = vrot.lane.b32.xlu0 %v2375, 24
          %v2464 = vpop.permute.xlu0 %2463
          %2465 = vrot.lane.b32.xlu0 %v2376, 24
          %v2466 = vpop.permute.xlu0 %2465
          %2467 = vrot.lane.b32.xlu0 %v2377, 24
          %v2468 = vpop.permute.xlu0 %2467
          %2469 = vrot.lane.b32.xlu0 %v2378, 24
          %v2470 = vpop.permute.xlu0 %2469
          %2471 = vrot.lane.b32.xlu0 %v2379, 24
          %v2472 = vpop.permute.xlu0 %2471
          %2473 = vrot.lane.b32.xlu0 %v2380, 24
          %v2474 = vpop.permute.xlu0 %2473
          %2475 = vrot.lane.b32.xlu0 %v2381, 24
          %v2476 = vpop.permute.xlu0 %2475
          %2477 = vrot.lane.b32.xlu0 %v2382, 24
          %v2478 = vpop.permute.xlu0 %2477
          %vm2511 = vcmask 224448
          %2512 = vst.msk [vmem:[#allocation3] sm:$0xf] %vm2511, %v2416
          %2513 = vst.msk [vmem:[#allocation3 + $0x4] sm:$0xf] %vm2511, %v2418
          %2514 = vst.msk [vmem:[#allocation3 + $0x8] sm:$0xf] %vm2511, %v2420
          %2515 = vst.msk [vmem:[#allocation3 + $0xc] sm:$0xf] %vm2511, %v2422
          %2516 = vst.msk [vmem:[#allocation3 + $0x10] sm:$0xf] %vm2511, %v2424
          %2517 = vst.msk [vmem:[#allocation3 + $0x14] sm:$0xf] %vm2511, %v2426
          %2518 = vst.msk [vmem:[#allocation3 + $0x18] sm:$0xf] %vm2511, %v2428
          %2519 = vst.msk [vmem:[#allocation3 + $0x1c] sm:$0xf] %vm2511, %v2430
          %2520 = vst.msk [vmem:[#allocation3 + $0x20] sm:$0xf] %vm2511, %v2432
          %2521 = vst.msk [vmem:[#allocation3 + $0x24] sm:$0xf] %vm2511, %v2434
          %2522 = vst.msk [vmem:[#allocation3 + $0x28] sm:$0xf] %vm2511, %v2436
          %2523 = vst.msk [vmem:[#allocation3 + $0x2c] sm:$0xf] %vm2511, %v2438
          %2524 = vst.msk [vmem:[#allocation3 + $0x30] sm:$0xf] %vm2511, %v2440
          %2525 = vst.msk [vmem:[#allocation3 + $0x34] sm:$0xf] %vm2511, %v2442
          %2526 = vst.msk [vmem:[#allocation3 + $0x38] sm:$0xf] %vm2511, %v2444
          %2527 = vst.msk [vmem:[#allocation3 + $0x3c] sm:$0xf] %vm2511, %v2446
          %2528 = vst.msk [vmem:[#allocation3 + $0x40] sm:$0xf] %vm2511, %v2448
          %2529 = vst.msk [vmem:[#allocation3 + $0x44] sm:$0xf] %vm2511, %v2450
          %2530 = vst.msk [vmem:[#allocation3 + $0x48] sm:$0xf] %vm2511, %v2452
          %2531 = vst.msk [vmem:[#allocation3 + $0x4c] sm:$0xf] %vm2511, %v2454
          %2532 = vst.msk [vmem:[#allocation3 + $0x50] sm:$0xf] %vm2511, %v2456
          %2533 = vst.msk [vmem:[#allocation3 + $0x54] sm:$0xf] %vm2511, %v2458
          %2534 = vst.msk [vmem:[#allocation3 + $0x58] sm:$0xf] %vm2511, %v2460
          %2535 = vst.msk [vmem:[#allocation3 + $0x5c] sm:$0xf] %vm2511, %v2462
          %2536 = vst.msk [vmem:[#allocation3 + $0x60] sm:$0xf] %vm2511, %v2464
          %2537 = vst.msk [vmem:[#allocation3 + $0x64] sm:$0xf] %vm2511, %v2466
          %2538 = vst.msk [vmem:[#allocation3 + $0x68] sm:$0xf] %vm2511, %v2468
          %2539 = vst.msk [vmem:[#allocation3 + $0x6c] sm:$0xf] %vm2511, %v2470
          %2540 = vst.msk [vmem:[#allocation3 + $0x70] sm:$0xf] %vm2511, %v2472
          %2541 = vst.msk [vmem:[#allocation3 + $0x74] sm:$0xf] %vm2511, %v2474
          %2542 = vst.msk [vmem:[#allocation3 + $0x78] sm:$0xf] %vm2511, %v2476
          %2543 = vst.msk [vmem:[#allocation3 + $0x7c] sm:$0xf] %vm2511, %v2478
          %v2544 = vld [vmem:[%s2318 + $0x1] sm:$0xff]
          %v2545 = vld [vmem:[%s2318 + $0x9] sm:$0xff]
          %v2546 = vld [vmem:[%s2318 + $0x19] sm:$0xff]
          %v2547 = vld [vmem:[%s2318 + $0x21] sm:$0xff]
          %v2548 = vld [vmem:[%s2318 + $0x31] sm:$0xff]
          %v2549 = vld [vmem:[%s2318 + $0x39] sm:$0xff]
          %v2550 = vld [vmem:[%s2318 + $0x49] sm:$0xff]
          %v2551 = vld [vmem:[%s2318 + $0x51] sm:$0xff]
          %v2552 = vld [vmem:[%s2318 + $0x61] sm:$0xff]
          %v2553 = vld [vmem:[%s2318 + $0x69] sm:$0xff]
          %v2554 = vld [vmem:[%s2318 + $0x79] sm:$0xff]
          %v2555 = vld [vmem:[%s2318 + $0x81] sm:$0xff]
          %v2556 = vld [vmem:[%s2318 + $0x91] sm:$0xff]
          %v2557 = vld [vmem:[%s2318 + $0x99] sm:$0xff]
          %v2558 = vld [vmem:[%s2318 + $0xa9] sm:$0xff]
          %v2559 = vld [vmem:[%s2318 + $0xb1] sm:$0xff]
          %v2560 = vld [vmem:[%s2318 + $0xc1] sm:$0xff]
          %v2561 = vld [vmem:[%s2318 + $0xc9] sm:$0xff]
          %v2562 = vld [vmem:[%s2318 + $0xd9] sm:$0xff]
          %v2563 = vld [vmem:[%s2318 + $0xe1] sm:$0xff]
          %v2564 = vld [vmem:[%s2318 + $0xf1] sm:$0xff]
          %v2565 = vld [vmem:[%s2318 + $0xf9] sm:$0xff]
          %v2566 = vld [vmem:[%s2318 + $0x109] sm:$0xff]
          %v2567 = vld [vmem:[%s2318 + $0x111] sm:$0xff]
          %v2568 = vld [vmem:[%s2318 + $0x121] sm:$0xff]
          %v2569 = vld [vmem:[%s2318 + $0x129] sm:$0xff]
          %v2570 = vld [vmem:[%s2318 + $0x139] sm:$0xff]
          %v2571 = vld [vmem:[%s2318 + $0x141] sm:$0xff]
          %v2572 = vld [vmem:[%s2318 + $0x151] sm:$0xff]
          %v2573 = vld [vmem:[%s2318 + $0x159] sm:$0xff]
          %v2574 = vld [vmem:[%s2318 + $0x169] sm:$0xff]
          %v2575 = vld [vmem:[%s2318 + $0x171] sm:$0xff]
          %v2576 = vpack.c.bf16 %v2544, %v2544
          %v2577 = vpack.c.bf16 %v2545, %v2545
          %v2578 = vpack.c.bf16 %v2546, %v2546
          %v2579 = vpack.c.bf16 %v2547, %v2547
          %v2580 = vpack.c.bf16 %v2548, %v2548
          %v2581 = vpack.c.bf16 %v2549, %v2549
          %v2582 = vpack.c.bf16 %v2550, %v2550
          %v2583 = vpack.c.bf16 %v2551, %v2551
          %v2584 = vpack.c.bf16 %v2552, %v2552
          %v2585 = vpack.c.bf16 %v2553, %v2553
          %v2586 = vpack.c.bf16 %v2554, %v2554
          %v2587 = vpack.c.bf16 %v2555, %v2555
          %v2588 = vpack.c.bf16 %v2556, %v2556
          %v2589 = vpack.c.bf16 %v2557, %v2557
          %v2590 = vpack.c.bf16 %v2558, %v2558
          %v2591 = vpack.c.bf16 %v2559, %v2559
          %v2592 = vpack.c.bf16 %v2560, %v2560
          %v2593 = vpack.c.bf16 %v2561, %v2561
          %v2594 = vpack.c.bf16 %v2562, %v2562
          %v2595 = vpack.c.bf16 %v2563, %v2563
          %v2596 = vpack.c.bf16 %v2564, %v2564
          %v2597 = vpack.c.bf16 %v2565, %v2565
          %v2598 = vpack.c.bf16 %v2566, %v2566
          %v2599 = vpack.c.bf16 %v2567, %v2567
          %v2600 = vpack.c.bf16 %v2568, %v2568
          %v2601 = vpack.c.bf16 %v2569, %v2569
          %v2602 = vpack.c.bf16 %v2570, %v2570
          %v2603 = vpack.c.bf16 %v2571, %v2571
          %v2604 = vpack.c.bf16 %v2572, %v2572
          %v2605 = vpack.c.bf16 %v2573, %v2573
          %v2606 = vpack.c.bf16 %v2574, %v2574
          %v2607 = vpack.c.bf16 %v2575, %v2575
          %2640 = vrot.lane.b32.xlu0 %v2576, 28
          %v2641 = vpop.permute.xlu0 %2640
          %2642 = vrot.lane.b32.xlu0 %v2577, 28
          %v2643 = vpop.permute.xlu0 %2642
          %2644 = vrot.lane.b32.xlu0 %v2578, 28
          %v2645 = vpop.permute.xlu0 %2644
          %2646 = vrot.lane.b32.xlu0 %v2579, 28
          %v2647 = vpop.permute.xlu0 %2646
          %2648 = vrot.lane.b32.xlu0 %v2580, 28
          %v2649 = vpop.permute.xlu0 %2648
          %2650 = vrot.lane.b32.xlu0 %v2581, 28
          %v2651 = vpop.permute.xlu0 %2650
          %2652 = vrot.lane.b32.xlu0 %v2582, 28
          %v2653 = vpop.permute.xlu0 %2652
          %2654 = vrot.lane.b32.xlu0 %v2583, 28
          %v2655 = vpop.permute.xlu0 %2654
          %2656 = vrot.lane.b32.xlu0 %v2584, 28
          %v2657 = vpop.permute.xlu0 %2656
          %2658 = vrot.lane.b32.xlu0 %v2585, 28
          %v2659 = vpop.permute.xlu0 %2658
          %2660 = vrot.lane.b32.xlu0 %v2586, 28
          %v2661 = vpop.permute.xlu0 %2660
          %2662 = vrot.lane.b32.xlu0 %v2587, 28
          %v2663 = vpop.permute.xlu0 %2662
          %2664 = vrot.lane.b32.xlu0 %v2588, 28
          %v2665 = vpop.permute.xlu0 %2664
          %2666 = vrot.lane.b32.xlu0 %v2589, 28
          %v2667 = vpop.permute.xlu0 %2666
          %2668 = vrot.lane.b32.xlu0 %v2590, 28
          %v2669 = vpop.permute.xlu0 %2668
          %2670 = vrot.lane.b32.xlu0 %v2591, 28
          %v2671 = vpop.permute.xlu0 %2670
          %2672 = vrot.lane.b32.xlu0 %v2592, 28
          %v2673 = vpop.permute.xlu0 %2672
          %2674 = vrot.lane.b32.xlu0 %v2593, 28
          %v2675 = vpop.permute.xlu0 %2674
          %2676 = vrot.lane.b32.xlu0 %v2594, 28
          %v2677 = vpop.permute.xlu0 %2676
          %2678 = vrot.lane.b32.xlu0 %v2595, 28
          %v2679 = vpop.permute.xlu0 %2678
          %2680 = vrot.lane.b32.xlu0 %v2596, 28
          %v2681 = vpop.permute.xlu0 %2680
          %2682 = vrot.lane.b32.xlu0 %v2597, 28
          %v2683 = vpop.permute.xlu0 %2682
          %2684 = vrot.lane.b32.xlu0 %v2598, 28
          %v2685 = vpop.permute.xlu0 %2684
          %2686 = vrot.lane.b32.xlu0 %v2599, 28
          %v2687 = vpop.permute.xlu0 %2686
          %2688 = vrot.lane.b32.xlu0 %v2600, 28
          %v2689 = vpop.permute.xlu0 %2688
          %2690 = vrot.lane.b32.xlu0 %v2601, 28
          %v2691 = vpop.permute.xlu0 %2690
          %2692 = vrot.lane.b32.xlu0 %v2602, 28
          %v2693 = vpop.permute.xlu0 %2692
          %2694 = vrot.lane.b32.xlu0 %v2603, 28
          %v2695 = vpop.permute.xlu0 %2694
          %2696 = vrot.lane.b32.xlu0 %v2604, 28
          %v2697 = vpop.permute.xlu0 %2696
          %2698 = vrot.lane.b32.xlu0 %v2605, 28
          %v2699 = vpop.permute.xlu0 %2698
          %2700 = vrot.lane.b32.xlu0 %v2606, 28
          %v2701 = vpop.permute.xlu0 %2700
          %2702 = vrot.lane.b32.xlu0 %v2607, 28
          %v2703 = vpop.permute.xlu0 %2702
          %vm2736 = vcmask 257248
          %2737 = vst.msk [vmem:[#allocation3] sm:$0xf] %vm2736, %v2641
          %2738 = vst.msk [vmem:[#allocation3 + $0x4] sm:$0xf] %vm2736, %v2643
          %2739 = vst.msk [vmem:[#allocation3 + $0x8] sm:$0xf] %vm2736, %v2645
          %2740 = vst.msk [vmem:[#allocation3 + $0xc] sm:$0xf] %vm2736, %v2647
          %2741 = vst.msk [vmem:[#allocation3 + $0x10] sm:$0xf] %vm2736, %v2649
          %2742 = vst.msk [vmem:[#allocation3 + $0x14] sm:$0xf] %vm2736, %v2651
          %2743 = vst.msk [vmem:[#allocation3 + $0x18] sm:$0xf] %vm2736, %v2653
          %2744 = vst.msk [vmem:[#allocation3 + $0x1c] sm:$0xf] %vm2736, %v2655
          %2745 = vst.msk [vmem:[#allocation3 + $0x20] sm:$0xf] %vm2736, %v2657
          %2746 = vst.msk [vmem:[#allocation3 + $0x24] sm:$0xf] %vm2736, %v2659
          %2747 = vst.msk [vmem:[#allocation3 + $0x28] sm:$0xf] %vm2736, %v2661
          %2748 = vst.msk [vmem:[#allocation3 + $0x2c] sm:$0xf] %vm2736, %v2663
          %2749 = vst.msk [vmem:[#allocation3 + $0x30] sm:$0xf] %vm2736, %v2665
          %2750 = vst.msk [vmem:[#allocation3 + $0x34] sm:$0xf] %vm2736, %v2667
          %2751 = vst.msk [vmem:[#allocation3 + $0x38] sm:$0xf] %vm2736, %v2669
          %2752 = vst.msk [vmem:[#allocation3 + $0x3c] sm:$0xf] %vm2736, %v2671
          %2753 = vst.msk [vmem:[#allocation3 + $0x40] sm:$0xf] %vm2736, %v2673
          %2754 = vst.msk [vmem:[#allocation3 + $0x44] sm:$0xf] %vm2736, %v2675
          %2755 = vst.msk [vmem:[#allocation3 + $0x48] sm:$0xf] %vm2736, %v2677
          %2756 = vst.msk [vmem:[#allocation3 + $0x4c] sm:$0xf] %vm2736, %v2679
          %2757 = vst.msk [vmem:[#allocation3 + $0x50] sm:$0xf] %vm2736, %v2681
          %2758 = vst.msk [vmem:[#allocation3 + $0x54] sm:$0xf] %vm2736, %v2683
          %2759 = vst.msk [vmem:[#allocation3 + $0x58] sm:$0xf] %vm2736, %v2685
          %2760 = vst.msk [vmem:[#allocation3 + $0x5c] sm:$0xf] %vm2736, %v2687
          %2761 = vst.msk [vmem:[#allocation3 + $0x60] sm:$0xf] %vm2736, %v2689
          %2762 = vst.msk [vmem:[#allocation3 + $0x64] sm:$0xf] %vm2736, %v2691
          %2763 = vst.msk [vmem:[#allocation3 + $0x68] sm:$0xf] %vm2736, %v2693
          %2764 = vst.msk [vmem:[#allocation3 + $0x6c] sm:$0xf] %vm2736, %v2695
          %2765 = vst.msk [vmem:[#allocation3 + $0x70] sm:$0xf] %vm2736, %v2697
          %2766 = vst.msk [vmem:[#allocation3 + $0x74] sm:$0xf] %vm2736, %v2699
          %2767 = vst.msk [vmem:[#allocation3 + $0x78] sm:$0xf] %vm2736, %v2701
          %2768 = vst.msk [vmem:[#allocation3 + $0x7c] sm:$0xf] %vm2736, %v2703
          %v2769 = vld [vmem:[%s2318 + $0x2] sm:$0xff]
          %v2770 = vld [vmem:[%s2318 + $0xa] sm:$0xff]
          %v2771 = vld [vmem:[%s2318 + $0x1a] sm:$0xff]
          %v2772 = vld [vmem:[%s2318 + $0x22] sm:$0xff]
          %v2773 = vld [vmem:[%s2318 + $0x32] sm:$0xff]
          %v2774 = vld [vmem:[%s2318 + $0x3a] sm:$0xff]
          %v2775 = vld [vmem:[%s2318 + $0x4a] sm:$0xff]
          %v2776 = vld [vmem:[%s2318 + $0x52] sm:$0xff]
          %v2777 = vld [vmem:[%s2318 + $0x62] sm:$0xff]
          %v2778 = vld [vmem:[%s2318 + $0x6a] sm:$0xff]
          %v2779 = vld [vmem:[%s2318 + $0x7a] sm:$0xff]
          %v2780 = vld [vmem:[%s2318 + $0x82] sm:$0xff]
          %v2781 = vld [vmem:[%s2318 + $0x92] sm:$0xff]
          %v2782 = vld [vmem:[%s2318 + $0x9a] sm:$0xff]
          %v2783 = vld [vmem:[%s2318 + $0xaa] sm:$0xff]
          %v2784 = vld [vmem:[%s2318 + $0xb2] sm:$0xff]
          %v2785 = vld [vmem:[%s2318 + $0xc2] sm:$0xff]
          %v2786 = vld [vmem:[%s2318 + $0xca] sm:$0xff]
          %v2787 = vld [vmem:[%s2318 + $0xda] sm:$0xff]
          %v2788 = vld [vmem:[%s2318 + $0xe2] sm:$0xff]
          %v2789 = vld [vmem:[%s2318 + $0xf2] sm:$0xff]
          %v2790 = vld [vmem:[%s2318 + $0xfa] sm:$0xff]
          %v2791 = vld [vmem:[%s2318 + $0x10a] sm:$0xff]
          %v2792 = vld [vmem:[%s2318 + $0x112] sm:$0xff]
          %v2793 = vld [vmem:[%s2318 + $0x122] sm:$0xff]
          %v2794 = vld [vmem:[%s2318 + $0x12a] sm:$0xff]
          %v2795 = vld [vmem:[%s2318 + $0x13a] sm:$0xff]
          %v2796 = vld [vmem:[%s2318 + $0x142] sm:$0xff]
          %v2797 = vld [vmem:[%s2318 + $0x152] sm:$0xff]
          %v2798 = vld [vmem:[%s2318 + $0x15a] sm:$0xff]
          %v2799 = vld [vmem:[%s2318 + $0x16a] sm:$0xff]
          %v2800 = vld [vmem:[%s2318 + $0x172] sm:$0xff]
          %v2801 = vpack.c.bf16 %v2769, %v2769
          %v2802 = vpack.c.bf16 %v2770, %v2770
          %v2803 = vpack.c.bf16 %v2771, %v2771
          %v2804 = vpack.c.bf16 %v2772, %v2772
          %v2805 = vpack.c.bf16 %v2773, %v2773
          %v2806 = vpack.c.bf16 %v2774, %v2774
          %v2807 = vpack.c.bf16 %v2775, %v2775
          %v2808 = vpack.c.bf16 %v2776, %v2776
          %v2809 = vpack.c.bf16 %v2777, %v2777
          %v2810 = vpack.c.bf16 %v2778, %v2778
          %v2811 = vpack.c.bf16 %v2779, %v2779
          %v2812 = vpack.c.bf16 %v2780, %v2780
          %v2813 = vpack.c.bf16 %v2781, %v2781
          %v2814 = vpack.c.bf16 %v2782, %v2782
          %v2815 = vpack.c.bf16 %v2783, %v2783
          %v2816 = vpack.c.bf16 %v2784, %v2784
          %v2817 = vpack.c.bf16 %v2785, %v2785
          %v2818 = vpack.c.bf16 %v2786, %v2786
          %v2819 = vpack.c.bf16 %v2787, %v2787
          %v2820 = vpack.c.bf16 %v2788, %v2788
          %v2821 = vpack.c.bf16 %v2789, %v2789
          %v2822 = vpack.c.bf16 %v2790, %v2790
          %v2823 = vpack.c.bf16 %v2791, %v2791
          %v2824 = vpack.c.bf16 %v2792, %v2792
          %v2825 = vpack.c.bf16 %v2793, %v2793
          %v2826 = vpack.c.bf16 %v2794, %v2794
          %v2827 = vpack.c.bf16 %v2795, %v2795
          %v2828 = vpack.c.bf16 %v2796, %v2796
          %v2829 = vpack.c.bf16 %v2797, %v2797
          %v2830 = vpack.c.bf16 %v2798, %v2798
          %v2831 = vpack.c.bf16 %v2799, %v2799
          %v2832 = vpack.c.bf16 %v2800, %v2800
          %2865 = vrot.lane.b32.xlu0 %v2801, 32
          %v2866 = vpop.permute.xlu0 %2865
          %2867 = vrot.lane.b32.xlu0 %v2802, 32
          %v2868 = vpop.permute.xlu0 %2867
          %2869 = vrot.lane.b32.xlu0 %v2803, 32
          %v2870 = vpop.permute.xlu0 %2869
          %2871 = vrot.lane.b32.xlu0 %v2804, 32
          %v2872 = vpop.permute.xlu0 %2871
          %2873 = vrot.lane.b32.xlu0 %v2805, 32
          %v2874 = vpop.permute.xlu0 %2873
          %2875 = vrot.lane.b32.xlu0 %v2806, 32
          %v2876 = vpop.permute.xlu0 %2875
          %2877 = vrot.lane.b32.xlu0 %v2807, 32
          %v2878 = vpop.permute.xlu0 %2877
          %2879 = vrot.lane.b32.xlu0 %v2808, 32
          %v2880 = vpop.permute.xlu0 %2879
          %2881 = vrot.lane.b32.xlu0 %v2809, 32
          %v2882 = vpop.permute.xlu0 %2881
          %2883 = vrot.lane.b32.xlu0 %v2810, 32
          %v2884 = vpop.permute.xlu0 %2883
          %2885 = vrot.lane.b32.xlu0 %v2811, 32
          %v2886 = vpop.permute.xlu0 %2885
          %2887 = vrot.lane.b32.xlu0 %v2812, 32
          %v2888 = vpop.permute.xlu0 %2887
          %2889 = vrot.lane.b32.xlu0 %v2813, 32
          %v2890 = vpop.permute.xlu0 %2889
          %2891 = vrot.lane.b32.xlu0 %v2814, 32
          %v2892 = vpop.permute.xlu0 %2891
          %2893 = vrot.lane.b32.xlu0 %v2815, 32
          %v2894 = vpop.permute.xlu0 %2893
          %2895 = vrot.lane.b32.xlu0 %v2816, 32
          %v2896 = vpop.permute.xlu0 %2895
          %2897 = vrot.lane.b32.xlu0 %v2817, 32
          %v2898 = vpop.permute.xlu0 %2897
          %2899 = vrot.lane.b32.xlu0 %v2818, 32
          %v2900 = vpop.permute.xlu0 %2899
          %2901 = vrot.lane.b32.xlu0 %v2819, 32
          %v2902 = vpop.permute.xlu0 %2901
          %2903 = vrot.lane.b32.xlu0 %v2820, 32
          %v2904 = vpop.permute.xlu0 %2903
          %2905 = vrot.lane.b32.xlu0 %v2821, 32
          %v2906 = vpop.permute.xlu0 %2905
          %2907 = vrot.lane.b32.xlu0 %v2822, 32
          %v2908 = vpop.permute.xlu0 %2907
          %2909 = vrot.lane.b32.xlu0 %v2823, 32
          %v2910 = vpop.permute.xlu0 %2909
          %2911 = vrot.lane.b32.xlu0 %v2824, 32
          %v2912 = vpop.permute.xlu0 %2911
          %2913 = vrot.lane.b32.xlu0 %v2825, 32
          %v2914 = vpop.permute.xlu0 %2913
          %2915 = vrot.lane.b32.xlu0 %v2826, 32
          %v2916 = vpop.permute.xlu0 %2915
          %2917 = vrot.lane.b32.xlu0 %v2827, 32
          %v2918 = vpop.permute.xlu0 %2917
          %2919 = vrot.lane.b32.xlu0 %v2828, 32
          %v2920 = vpop.permute.xlu0 %2919
          %2921 = vrot.lane.b32.xlu0 %v2829, 32
          %v2922 = vpop.permute.xlu0 %2921
          %2923 = vrot.lane.b32.xlu0 %v2830, 32
          %v2924 = vpop.permute.xlu0 %2923
          %2925 = vrot.lane.b32.xlu0 %v2831, 32
          %v2926 = vpop.permute.xlu0 %2925
          %2927 = vrot.lane.b32.xlu0 %v2832, 32
          %v2928 = vpop.permute.xlu0 %2927
          %vm2961 = vcmask 290048
          %2962 = vst.msk [vmem:[#allocation3] sm:$0xf] %vm2961, %v2866
          %2963 = vst.msk [vmem:[#allocation3 + $0x4] sm:$0xf] %vm2961, %v2868
          %2964 = vst.msk [vmem:[#allocation3 + $0x8] sm:$0xf] %vm2961, %v2870
          %2965 = vst.msk [vmem:[#allocation3 + $0xc] sm:$0xf] %vm2961, %v2872
          %2966 = vst.msk [vmem:[#allocation3 + $0x10] sm:$0xf] %vm2961, %v2874
          %2967 = vst.msk [vmem:[#allocation3 + $0x14] sm:$0xf] %vm2961, %v2876
          %2968 = vst.msk [vmem:[#allocation3 + $0x18] sm:$0xf] %vm2961, %v2878
          %2969 = vst.msk [vmem:[#allocation3 + $0x1c] sm:$0xf] %vm2961, %v2880
          %2970 = vst.msk [vmem:[#allocation3 + $0x20] sm:$0xf] %vm2961, %v2882
          %2971 = vst.msk [vmem:[#allocation3 + $0x24] sm:$0xf] %vm2961, %v2884
          %2972 = vst.msk [vmem:[#allocation3 + $0x28] sm:$0xf] %vm2961, %v2886
          %2973 = vst.msk [vmem:[#allocation3 + $0x2c] sm:$0xf] %vm2961, %v2888
          %2974 = vst.msk [vmem:[#allocation3 + $0x30] sm:$0xf] %vm2961, %v2890
          %2975 = vst.msk [vmem:[#allocation3 + $0x34] sm:$0xf] %vm2961, %v2892
          %2976 = vst.msk [vmem:[#allocation3 + $0x38] sm:$0xf] %vm2961, %v2894
          %2977 = vst.msk [vmem:[#allocation3 + $0x3c] sm:$0xf] %vm2961, %v2896
          %2978 = vst.msk [vmem:[#allocation3 + $0x40] sm:$0xf] %vm2961, %v2898
          %2979 = vst.msk [vmem:[#allocation3 + $0x44] sm:$0xf] %vm2961, %v2900
          %2980 = vst.msk [vmem:[#allocation3 + $0x48] sm:$0xf] %vm2961, %v2902
          %2981 = vst.msk [vmem:[#allocation3 + $0x4c] sm:$0xf] %vm2961, %v2904
          %2982 = vst.msk [vmem:[#allocation3 + $0x50] sm:$0xf] %vm2961, %v2906
          %2983 = vst.msk [vmem:[#allocation3 + $0x54] sm:$0xf] %vm2961, %v2908
          %2984 = vst.msk [vmem:[#allocation3 + $0x58] sm:$0xf] %vm2961, %v2910
          %2985 = vst.msk [vmem:[#allocation3 + $0x5c] sm:$0xf] %vm2961, %v2912
          %2986 = vst.msk [vmem:[#allocation3 + $0x60] sm:$0xf] %vm2961, %v2914
          %2987 = vst.msk [vmem:[#allocation3 + $0x64] sm:$0xf] %vm2961, %v2916
          %2988 = vst.msk [vmem:[#allocation3 + $0x68] sm:$0xf] %vm2961, %v2918
          %2989 = vst.msk [vmem:[#allocation3 + $0x6c] sm:$0xf] %vm2961, %v2920
          %2990 = vst.msk [vmem:[#allocation3 + $0x70] sm:$0xf] %vm2961, %v2922
          %2991 = vst.msk [vmem:[#allocation3 + $0x74] sm:$0xf] %vm2961, %v2924
          %2992 = vst.msk [vmem:[#allocation3 + $0x78] sm:$0xf] %vm2961, %v2926
          %2993 = vst.msk [vmem:[#allocation3 + $0x7c] sm:$0xf] %vm2961, %v2928
        $region44: #{tpu_custom_call.1} parent=39 // pred_fallthru
          _
        %v2994 = vld [vmem:[#allocation3] sm:$0xf]
        %v2995 = vld [vmem:[#allocation3 + $0x4] sm:$0xf]
        %v2996 = vld [vmem:[#allocation3 + $0x8] sm:$0xf]
        %v2997 = vld [vmem:[#allocation3 + $0xc] sm:$0xf]
        %v2998 = vld [vmem:[#allocation3 + $0x10] sm:$0xf]
        %v2999 = vld [vmem:[#allocation3 + $0x14] sm:$0xf]
        %v3000 = vld [vmem:[#allocation3 + $0x18] sm:$0xf]
        %v3001 = vld [vmem:[#allocation3 + $0x1c] sm:$0xf]
        %v3002 = vld [vmem:[#allocation3 + $0x20] sm:$0xf]
        %v3003 = vld [vmem:[#allocation3 + $0x24] sm:$0xf]
        %v3004 = vld [vmem:[#allocation3 + $0x28] sm:$0xf]
        %v3005 = vld [vmem:[#allocation3 + $0x2c] sm:$0xf]
        %v3006 = vld [vmem:[#allocation3 + $0x30] sm:$0xf]
        %v3007 = vld [vmem:[#allocation3 + $0x34] sm:$0xf]
        %v3008 = vld [vmem:[#allocation3 + $0x38] sm:$0xf]
        %v3009 = vld [vmem:[#allocation3 + $0x3c] sm:$0xf]
        %v3010 = vld [vmem:[#allocation3 + $0x40] sm:$0xf]
        %v3011 = vld [vmem:[#allocation3 + $0x44] sm:$0xf]
        %v3012 = vld [vmem:[#allocation3 + $0x48] sm:$0xf]
        %v3013 = vld [vmem:[#allocation3 + $0x4c] sm:$0xf]
        %v3014 = vld [vmem:[#allocation3 + $0x50] sm:$0xf]
        %v3015 = vld [vmem:[#allocation3 + $0x54] sm:$0xf]
        %v3016 = vld [vmem:[#allocation3 + $0x58] sm:$0xf]
        %v3017 = vld [vmem:[#allocation3 + $0x5c] sm:$0xf]
        %v3018 = vld [vmem:[#allocation3 + $0x60] sm:$0xf]
        %v3019 = vld [vmem:[#allocation3 + $0x64] sm:$0xf]
        %v3020 = vld [vmem:[#allocation3 + $0x68] sm:$0xf]
        %v3021 = vld [vmem:[#allocation3 + $0x6c] sm:$0xf]
        %v3022 = vld [vmem:[#allocation3 + $0x70] sm:$0xf]
        %v3023 = vld [vmem:[#allocation3 + $0x74] sm:$0xf]
        %v3024 = vld [vmem:[#allocation3 + $0x78] sm:$0xf]
        %v3025 = vld [vmem:[#allocation3 + $0x7c] sm:$0xf]
        %v3026 = vld [vmem:[%s264] sm:$0xf]
        %v3027 = vld [vmem:[%s264 + $0x4] sm:$0xf]
        %v3028 = vld [vmem:[%s264 + $0x8] sm:$0xf]
        %v3029 = vld [vmem:[%s264 + $0xc] sm:$0xf]
        %v3030 = vld [vmem:[%s264 + $0x10] sm:$0x3]
        %v3031 = vld [vmem:[%s267] sm:$0x1]
        %v3033 = vperm.slane %v3031, 0
        %v3067 = vunpack.c.l.b16 %v2994
        %v3068 = vunpack.c.l.b16 %v2995
        %v3069 = vunpack.c.l.b16 %v2996
        %v3070 = vunpack.c.l.b16 %v2997
        %v3071 = vunpack.c.l.b16 %v2998
        %v3072 = vunpack.c.l.b16 %v2999
        %v3073 = vunpack.c.l.b16 %v3000
        %v3074 = vunpack.c.l.b16 %v3001
        %v3075 = vunpack.c.l.b16 %v3002
        %v3076 = vunpack.c.l.b16 %v3003
        %v3077 = vunpack.c.l.b16 %v3004
        %v3078 = vunpack.c.l.b16 %v3005
        %v3079 = vunpack.c.l.b16 %v3006
        %v3080 = vunpack.c.l.b16 %v3007
        %v3081 = vunpack.c.l.b16 %v3008
        %v3082 = vunpack.c.l.b16 %v3009
        %v3083 = vunpack.c.l.b16 %v3010
        %v3084 = vunpack.c.l.b16 %v3011
        %v3085 = vunpack.c.l.b16 %v3012
        %v3086 = vunpack.c.l.b16 %v3013
        %v3087 = vunpack.c.l.b16 %v3014
        %v3088 = vunpack.c.l.b16 %v3015
        %v3089 = vunpack.c.l.b16 %v3016
        %v3090 = vunpack.c.l.b16 %v3017
        %v3091 = vunpack.c.l.b16 %v3018
        %v3092 = vunpack.c.l.b16 %v3019
        %v3093 = vunpack.c.l.b16 %v3020
        %v3094 = vunpack.c.l.b16 %v3021
        %v3095 = vunpack.c.l.b16 %v3022
        %v3096 = vunpack.c.l.b16 %v3023
        %v3097 = vunpack.c.l.b16 %v3024
        %v3098 = vunpack.c.l.b16 %v3025
        %v3099 = vpack.c.b16 %v3068, %v3067
        %v3100 = vpack.c.b16 %v3070, %v3069
        %v3101 = vpack.c.b16 %v3072, %v3071
        %v3102 = vpack.c.b16 %v3074, %v3073
        %v3103 = vpack.c.b16 %v3076, %v3075
        %v3104 = vpack.c.b16 %v3078, %v3077
        %v3105 = vpack.c.b16 %v3080, %v3079
        %v3106 = vpack.c.b16 %v3082, %v3081
        %v3107 = vpack.c.b16 %v3084, %v3083
        %v3108 = vpack.c.b16 %v3086, %v3085
        %v3109 = vpack.c.b16 %v3088, %v3087
        %v3110 = vpack.c.b16 %v3090, %v3089
        %v3111 = vpack.c.b16 %v3092, %v3091
        %v3112 = vpack.c.b16 %v3094, %v3093
        %v3113 = vpack.c.b16 %v3096, %v3095
        %v3114 = vpack.c.b16 %v3098, %v3097
        %v3120 = vunpack.c.l.b16 %v3026
        %v3121 = vunpack.c.l.b16 %v3027
        %v3122 = vunpack.c.l.b16 %v3028
        %v3123 = vunpack.c.l.b16 %v3029
        %v3124 = vunpack.c.l.b16 %v3030
        %v3125 = vpack.c.b16 %v3121, %v3120
        %v3126 = vpack.c.b16 %v3123, %v3122
        %v3127 = vpack.c.b16 %v3124, %v3124
        %vm3130 = vcmask 293888
        %v3132 = vsel %vm3130, %v3099, 0
        %v3135 = vsel %vm3130, %v3100, 0
        %v3138 = vsel %vm3130, %v3101, 0
        %v3141 = vsel %vm3130, %v3102, 0
        %v3144 = vsel %vm3130, %v3103, 0
        %v3147 = vsel %vm3130, %v3104, 0
        %v3150 = vsel %vm3130, %v3105, 0
        %v3153 = vsel %vm3130, %v3106, 0
        %v3156 = vsel %vm3130, %v3107, 0
        %v3159 = vsel %vm3130, %v3108, 0
        %v3162 = vsel %vm3130, %v3109, 0
        %v3165 = vsel %vm3130, %v3110, 0
        %v3168 = vsel %vm3130, %v3111, 0
        %v3171 = vsel %vm3130, %v3112, 0
        %v3174 = vsel %vm3130, %v3113, 0
        %v3177 = vsel %vm3130, %v3114, 0
        %vm3179 = vcmask 1041408
        %v3181 = vsel %vm3179, %v3127, 0
        %3183 = vmatpush.bf16.msra.mxu0 0
        %3184 = vmatpush.bf16.msra.mxu0 0
        %3185 = vmatpush.bf16.msra.mxu0 0
        %3186 = vmatpush.bf16.msra.mxu0 0
        %3187 = vmatpush.bf16.msra.mxu0 0
        %3188 = vmatpush.bf16.msra.mxu0 %v3181
        %3189 = vmatpush.bf16.msra.mxu0 %v3126
        %3190 = vmatpush.bf16.msra.mxu0 %v3125
        %3191 = vmatmul.bf16.gmra.mxu0 %v3132
        %v3192 = vpop.f32.mrf.mxu0
        %v3193 = vadd.f32 %v3033, %v3192
        %v3194 = vpop.f32.mrf.mxu0
        %v3195 = vadd.f32 %v3033, %v3194
        %3196 = vmatmul.bf16.gmra.mxu0 %v3135
        %v3197 = vpop.f32.mrf.mxu0
        %v3198 = vadd.f32 %v3033, %v3197
        %v3199 = vpop.f32.mrf.mxu0
        %v3200 = vadd.f32 %v3033, %v3199
        %3201 = vmatmul.bf16.gmra.mxu0 %v3138
        %v3202 = vpop.f32.mrf.mxu0
        %v3203 = vadd.f32 %v3033, %v3202
        %v3204 = vpop.f32.mrf.mxu0
        %v3205 = vadd.f32 %v3033, %v3204
        %3206 = vmatmul.bf16.gmra.mxu0 %v3141
        %v3207 = vpop.f32.mrf.mxu0
        %v3208 = vadd.f32 %v3033, %v3207
        %v3209 = vpop.f32.mrf.mxu0
        %v3210 = vadd.f32 %v3033, %v3209
        %3211 = vmatmul.bf16.gmra.mxu0 %v3144
        %v3212 = vpop.f32.mrf.mxu0
        %v3213 = vadd.f32 %v3033, %v3212
        %v3214 = vpop.f32.mrf.mxu0
        %v3215 = vadd.f32 %v3033, %v3214
        %3216 = vmatmul.bf16.gmra.mxu0 %v3147
        %v3217 = vpop.f32.mrf.mxu0
        %v3218 = vadd.f32 %v3033, %v3217
        %v3219 = vpop.f32.mrf.mxu0
        %v3220 = vadd.f32 %v3033, %v3219
        %3221 = vmatmul.bf16.gmra.mxu0 %v3150
        %v3222 = vpop.f32.mrf.mxu0
        %v3223 = vadd.f32 %v3033, %v3222
        %v3224 = vpop.f32.mrf.mxu0
        %v3225 = vadd.f32 %v3033, %v3224
        %3226 = vmatmul.bf16.gmra.mxu0 %v3153
        %v3227 = vpop.f32.mrf.mxu0
        %v3228 = vadd.f32 %v3033, %v3227
        %v3229 = vpop.f32.mrf.mxu0
        %v3230 = vadd.f32 %v3033, %v3229
        %3231 = vmatmul.bf16.gmra.mxu0 %v3156
        %v3232 = vpop.f32.mrf.mxu0
        %v3233 = vadd.f32 %v3033, %v3232
        %v3234 = vpop.f32.mrf.mxu0
        %v3235 = vadd.f32 %v3033, %v3234
        %3236 = vmatmul.bf16.gmra.mxu0 %v3159
        %v3237 = vpop.f32.mrf.mxu0
        %v3238 = vadd.f32 %v3033, %v3237
        %v3239 = vpop.f32.mrf.mxu0
        %v3240 = vadd.f32 %v3033, %v3239
        %3241 = vmatmul.bf16.gmra.mxu0 %v3162
        %v3242 = vpop.f32.mrf.mxu0
        %v3243 = vadd.f32 %v3033, %v3242
        %v3244 = vpop.f32.mrf.mxu0
        %v3245 = vadd.f32 %v3033, %v3244
        %3246 = vmatmul.bf16.gmra.mxu0 %v3165
        %v3247 = vpop.f32.mrf.mxu0
        %v3248 = vadd.f32 %v3033, %v3247
        %v3249 = vpop.f32.mrf.mxu0
        %v3250 = vadd.f32 %v3033, %v3249
        %3251 = vmatmul.bf16.gmra.mxu0 %v3168
        %v3252 = vpop.f32.mrf.mxu0
        %v3253 = vadd.f32 %v3033, %v3252
        %v3254 = vpop.f32.mrf.mxu0
        %v3255 = vadd.f32 %v3033, %v3254
        %3256 = vmatmul.bf16.gmra.mxu0 %v3171
        %v3257 = vpop.f32.mrf.mxu0
        %v3258 = vadd.f32 %v3033, %v3257
        %v3259 = vpop.f32.mrf.mxu0
        %v3260 = vadd.f32 %v3033, %v3259
        %3261 = vmatmul.bf16.gmra.mxu0 %v3174
        %v3262 = vpop.f32.mrf.mxu0
        %v3263 = vadd.f32 %v3033, %v3262
        %v3264 = vpop.f32.mrf.mxu0
        %v3265 = vadd.f32 %v3033, %v3264
        %3266 = vmatmul.bf16.gmra.mxu0 %v3177
        %v3267 = vpop.f32.mrf.mxu0
        %v3268 = vadd.f32 %v3033, %v3267
        %v3269 = vpop.f32.mrf.mxu0
        %v3270 = vadd.f32 %v3033, %v3269
        %3271 = vdwg.mxu0
        %3272 = vst [vmem:[%s255] sm:$0xff] %v3193
        %3273 = vst [vmem:[%s255 + $0x8] sm:$0xff] %v3195
        %3274 = vst [vmem:[%s255 + $0x10] sm:$0xff] %v3198
        %3275 = vst [vmem:[%s255 + $0x18] sm:$0xff] %v3200
        %3276 = vst [vmem:[%s255 + $0x20] sm:$0xff] %v3203
        %3277 = vst [vmem:[%s255 + $0x28] sm:$0xff] %v3205
        %3278 = vst [vmem:[%s255 + $0x30] sm:$0xff] %v3208
        %3279 = vst [vmem:[%s255 + $0x38] sm:$0xff] %v3210
        %3280 = vst [vmem:[%s255 + $0x40] sm:$0xff] %v3213
        %3281 = vst [vmem:[%s255 + $0x48] sm:$0xff] %v3215
        %3282 = vst [vmem:[%s255 + $0x50] sm:$0xff] %v3218
        %3283 = vst [vmem:[%s255 + $0x58] sm:$0xff] %v3220
        %3284 = vst [vmem:[%s255 + $0x60] sm:$0xff] %v3223
        %3285 = vst [vmem:[%s255 + $0x68] sm:$0xff] %v3225
        %3286 = vst [vmem:[%s255 + $0x70] sm:$0xff] %v3228
        %3287 = vst [vmem:[%s255 + $0x78] sm:$0xff] %v3230
        %3288 = vst [vmem:[%s255 + $0x80] sm:$0xff] %v3233
        %3289 = vst [vmem:[%s255 + $0x88] sm:$0xff] %v3235
        %3290 = vst [vmem:[%s255 + $0x90] sm:$0xff] %v3238
        %3291 = vst [vmem:[%s255 + $0x98] sm:$0xff] %v3240
        %3292 = vst [vmem:[%s255 + $0xa0] sm:$0xff] %v3243
        %3293 = vst [vmem:[%s255 + $0xa8] sm:$0xff] %v3245
        %3294 = vst [vmem:[%s255 + $0xb0] sm:$0xff] %v3248
        %3295 = vst [vmem:[%s255 + $0xb8] sm:$0xff] %v3250
        %3296 = vst [vmem:[%s255 + $0xc0] sm:$0xff] %v3253
        %3297 = vst [vmem:[%s255 + $0xc8] sm:$0xff] %v3255
        %3298 = vst [vmem:[%s255 + $0xd0] sm:$0xff] %v3258
        %3299 = vst [vmem:[%s255 + $0xd8] sm:$0xff] %v3260
        %3300 = vst [vmem:[%s255 + $0xe0] sm:$0xff] %v3263
        %3301 = vst [vmem:[%s255 + $0xe8] sm:$0xff] %v3265
        %3302 = vst [vmem:[%s255 + $0xf0] sm:$0xff] %v3268
        %3303 = vst [vmem:[%s255 + $0xf8] sm:$0xff] %v3270
        %s3304 = sand.u32 %s161, 1
        %s3305 = scalar_lea.sflag [#allocation5], %s3304
        %s3306 = sand.u32 %s161, 1
        %s3307 = smul.addr %s3306, 256
        %s3308 = scalar_lea.vmem [#allocation4], %s3307
        // Predicated region
        $region45: #{tpu_custom_call.1} parent=39 // pred_check
          %p3309 = pneg %p171
        $region46: #{tpu_custom_call.1} parent=39 // pred_check_branch
          %3311 = sbr.rel (%p3309) target = $region48
        $region47: #{tpu_custom_call.1} parent=39 // pred_region
          %3313 = vsyncadd %s3305, 0
          %s3314 = smul.addr %s23, 32
          %s3315 = sadd.s32 %s24, %s3314
          %s3316 = smul.addr %s3315, 8
          %s3317 = scalar_lea.hbm %s5, %s3316
          %s3318 = sshll.u32 %s3308, 4
          %s3319 = int_to_ptr.vmem [resolvable:$true] %s3318
          %s3320 = sshll.u32 %s3317, 4
          %s3321 = int_to_ptr.hbm [resolvable:$true] %s3320
          %3326 = dma.vmem_to_hbm [thread:$0]  %s3319, 4096, %s3321, %s3305, 128, 128, 8
        $region48: #{tpu_custom_call.1} parent=39 // pred_fallthru
          _
      $region40: #{tpu_custom_call.1} parent=5 // pred_fallthru
        _
      %p3327 = scmp.le.s32.totalorder 2, %s14
      // Predicated region
      $region49: #{tpu_custom_call.1} parent=5 // pred_check
        %p3328 = pneg %p3327
      $region50: #{tpu_custom_call.1} parent=5 // pred_check_branch
        %3330 = sbr.rel (%p3328) target = $region52
      $region51: #{tpu_custom_call.1} parent=5 // pred_region
        %s3331 = ssub.s32 %s14, 2
        // Predicated region
        $region53: #{tpu_custom_call.1} parent=51 // pred_check
          %p3332 = pneg %p177
        $region54: #{tpu_custom_call.1} parent=51 // pred_check_branch
          %3334 = sbr.rel (%p3332) target = $region56
        $region55: #{tpu_custom_call.1} parent=51 // pred_region
          %s3335 = sand.u32 %s162, 1
          %s3336 = scalar_lea.sflag [#allocation5], %s3335
          %s3337 = sand.u32 %s162, 1
          %s3338 = smul.addr %s3337, 256
          %s3339 = scalar_lea.vmem [#allocation4], %s3338
          %3341 = dma.done %s3336, 4096
        $region56: #{tpu_custom_call.1} parent=51 // pred_fallthru
          _
      $region52: #{tpu_custom_call.1} parent=5 // pred_fallthru
        _
    $region6: #{tpu_custom_call.1} parent=1 // loop_footer
      %s18 = sadd.s32 1, %s14
    $region7: #{tpu_custom_call.1} parent=1 // loop_footer_branch
      %13 = sbr.rel target = $region3
    $region8: #{tpu_custom_call.1} parent=1 // loop_exit
      _
    %3342 = vsyncpa [#allocation5], 1
    %s3343 = scalar_lea.sflag [#allocation5], 1
    %3344 = vsyncpa %s3343, 1

</llo_original>
